<compile_context>
chip_gen: v6e
topology: v6e:2x2x1
jax: 0.10.0
libtpu: 0.0.40
codegen_flags: <defaults>
</compile_context>

<pallas_src>
import functools
import numpy as np

import jax
import jax.numpy as jnp
from jax.experimental import pallas as pl
from jax.experimental.pallas import tpu as pltpu

# ---- small stand-in sizes (real module uses D=1024, CLS_HID=512; structure identical) ----
D = 256                 # hidden dim
CLS_HID = 128           # cls hidden dim
NUM_CLASS = 4
NUM_CLASS_PAD = 128     # lane-dense padded class dim for the pred output / loss math
B = 2                   # number of graphs / texts
COMMENTS_PER_GRAPH = 3
NODES_PER_GRAPH = 1 + COMMENTS_PER_GRAPH
N = B * NODES_PER_GRAPH
NUM_GIN_LAYERS = 3      # GNNEncoder(num_unit=2, GIN) -> in_conv + 2 convs


# ----------------------------- fused kernel -----------------------------------
def _fused_forward_kernel(
    # inputs
    text_ref, comment_ref, sel_t_ref, sel_c_ref, adj_ref, pool_ref, label_ref,
    wt_ref, bt_ref, wg_ref, bg_ref,
    gw1_ref, gb1_ref, gw2_ref, gb2_ref,
    w1a_ref, w1b_ref, cb1_ref, w2_ref, cb2_ref,
    # outputs
    pred_ref, loss_ref,
    # scratch (resident across grid steps)
    x_sc, t_sc,
):
    layer = pl.program_id(0)
    n_layers = pl.num_programs(0)
    last = layer == n_layers - 1

    # ---- step 0: transfer linears + in-kernel node assembly ------------------
    @pl.when(layer == 0)
    def _init():
        # text_transfer / graph_transfer (text/graph augmentation = None -> plain Linear)
        t = jnp.dot(text_ref[...].astype(jnp.bfloat16), wt_ref[...],
                    preferred_element_type=jnp.float32) + bt_ref[...]
        c = jnp.dot(comment_ref[...].astype(jnp.bfloat16), wg_ref[...],
                    preferred_element_type=jnp.float32) + bg_ref[...]
        t_sc[...] = t
        # node assembly as selection-matrix matmul (text nodes [0,B), comments [B,N);
        # adj / pool matrices are built with the same ordering)
        x_sc[...] = (jnp.dot(sel_t_ref[...], t, preferred_element_type=jnp.float32)
                     + jnp.dot(sel_c_ref[...], c, preferred_element_type=jnp.float32))

    # ---- one GIN conv per grid step (layer weights streamed via BlockSpec) ----
    # GINConv(eps=0): MLP((A + I) @ x),  MLP = Linear -> ReLU -> Linear.
    # TODO(synk): at real node counts pad N to a multiple of 128 for the adj matmul.
    agg = jnp.dot(adj_ref[...], x_sc[...], preferred_element_type=jnp.float32)
    h = jnp.dot(agg.astype(jnp.bfloat16), gw1_ref[0],
                preferred_element_type=jnp.float32) + gb1_ref[0]
    h = jnp.maximum(h, 0.0)
    h = jnp.dot(h.astype(jnp.bfloat16), gw2_ref[0],
                preferred_element_type=jnp.float32) + gb2_ref[0]

    # outer ReLU from GNNEncoder.forward on all but the last conv (dropout = eval identity)
    @pl.when(jnp.logical_not(last))
    def _store_intermediate():
        x_sc[...] = jnp.maximum(h, 0.0)

    # ---- last step: mean pool + cls head + multilabel CE loss ----------------
    @pl.when(last)
    def _finalize():
        pooled = jnp.dot(pool_ref[...], h, preferred_element_type=jnp.float32)  # (B, D)

        # cls: cat([text_reps, pooled]) @ W1 == text_reps @ W1a + pooled @ W1b
        hh = (jnp.dot(t_sc[...].astype(jnp.bfloat16), w1a_ref[...],
                      preferred_element_type=jnp.float32)
              + jnp.dot(pooled.astype(jnp.bfloat16), w1b_ref[...],
                        preferred_element_type=jnp.float32)
              + cb1_ref[...])
        hh = jnp.maximum(hh, 0.0)
        # Dropout(0.5) -> identity at eval
        pred = jnp.dot(hh.astype(jnp.bfloat16), w2_ref[...],
                       preferred_element_type=jnp.float32) + cb2_ref[...]     # (B, 128)
        pred_ref[...] = pred                               # lane-dense output

        # multilabel_categorical_cross_entropy at padded lane width; the padded class
        # columns (pred = 0, label = 0) are masked to -1e12 so they contribute nothing,
        # and the appended zero column of the torch cat([..., zeros]) is analytic.
        col = jax.lax.broadcasted_iota(jnp.int32, (B, NUM_CLASS_PAD), 1)
        valid = (col < NUM_CLASS).astype(jnp.float32)
        yt = label_ref[...]
        z = (1.0 - 2.0 * yt) * pred
        y_neg = z - yt * 1e12 - (1.0 - valid) * 1e12
        y_pos = z - (1.0 - yt) * 1e12                      # padding cols already -1e12

        def lse_with_zero(v):                              # logsumexp([v, 0]), analytic
            m = jnp.maximum(jnp.max(v, axis=-1, keepdims=True), 0.0)
            s = jnp.sum(jnp.exp(v - m), axis=-1, keepdims=True) + jnp.exp(-m)
            return m + jnp.log(s)

        loss = lse_with_zero(y_neg) + lse_with_zero(y_pos)  # (B, 1)
        # (1,1) scalar store is lane-masked but a single scalar — negligible.
        loss_ref[...] = jnp.mean(loss).reshape(1, 1)        # loss.mean(0)


# ----------------------------- wrapper -----------------------------------------
@jax.jit
def forward(packed, text_raw, comment_raw, sel_t, sel_c, adj_plus_i, pool_mat, label_pad):
    grid_spec = pltpu.PrefetchScalarGridSpec(
        num_scalar_prefetch=0,
        grid=(NUM_GIN_LAYERS,),
        in_specs=[
            pl.BlockSpec((B, D), lambda l: (0, 0)),                        # text_raw
            pl.BlockSpec((B * COMMENTS_PER_GRAPH, D), lambda l: (0, 0)),   # comment_raw
            pl.BlockSpec((N, B), lambda l: (0, 0)),                        # sel_t
            pl.BlockSpec((N, B * COMMENTS_PER_GRAPH), lambda l: (0, 0)),   # sel_c
            pl.BlockSpec((N, N), lambda l: (0, 0)),                        # adj + I
            pl.BlockSpec((B, N), lambda l: (0, 0)),                        # pool matrix
            pl.BlockSpec((B, NUM_CLASS_PAD), lambda l: (0, 0)),            # label (padded)
            pl.BlockSpec((D, D), lambda l: (0, 0)),                        # wt (bf16)
            pl.BlockSpec((1, D), lambda l: (0, 0)),                        # bt
            pl.BlockSpec((D, D), lambda l: (0, 0)),                        # wg (bf16)
            pl.BlockSpec((1, D), lambda l: (0, 0)),                        # bg
            pl.BlockSpec((1, D, D), lambda l: (l, 0, 0)),                  # gin w1 (streamed)
            pl.BlockSpec((1, 1, D), lambda l: (l, 0, 0)),                  # gin b1 (streamed)
            pl.BlockSpec((1, D, D), lambda l: (l, 0, 0)),                  # gin w2 (streamed)
            pl.BlockSpec((1, 1, D), lambda l: (l, 0, 0)),                  # gin b2 (streamed)
            pl.BlockSpec((D, CLS_HID), lambda l: (0, 0)),                  # cls w1a (bf16)
            pl.BlockSpec((D, CLS_HID), lambda l: (0, 0)),                  # cls w1b (bf16)
            pl.BlockSpec((1, CLS_HID), lambda l: (0, 0)),                  # cls b1
            pl.BlockSpec((CLS_HID, NUM_CLASS_PAD), lambda l: (0, 0)),      # cls w2 (padded, bf16)
            pl.BlockSpec((1, NUM_CLASS_PAD), lambda l: (0, 0)),            # cls b2 (padded)
        ],
        out_specs=[
            pl.BlockSpec((B, NUM_CLASS_PAD), lambda l: (0, 0)),            # pred (lane-dense)
            pl.BlockSpec((1, 1), lambda l: (0, 0)),                        # loss scalar
        ],
        scratch_shapes=[
            pltpu.VMEM((N, D), jnp.float32),    # node features (GIN state, VMEM-resident)
            pltpu.VMEM((B, D), jnp.float32),    # text_reps (reused by the cls head)
        ],
    )
    pred_pad, loss = pl.pallas_call(
        _fused_forward_kernel,
        out_shape=(
            jax.ShapeDtypeStruct((B, NUM_CLASS_PAD), jnp.float32),
            jax.ShapeDtypeStruct((1, 1), jnp.float32),
        ),
        grid_spec=grid_spec,
        compiler_params=pltpu.CompilerParams(
            dimension_semantics=("arbitrary",),        # sequential layer-state dependency
            vmem_limit_bytes=32 * 1024 * 1024,         # headroom; fits v5e/v6e/v7x budgets
        ),
    )(
        text_raw, comment_raw, sel_t, sel_c, adj_plus_i, pool_mat, label_pad,
        packed["wt"], packed["bt"], packed["wg"], packed["bg"],
        packed["gw1"], packed["gb1"], packed["gw2"], packed["gb2"],
        packed["w1a"], packed["w1b"], packed["cb1"], packed["cw2"], packed["cb2"],
    )
    return pred_pad[:, :NUM_CLASS], loss[0, 0]


# ----------------------------- parameter init / packing ------------------------
def init_linear_params(key, fan_in, fan_out):
    k1, k2 = jax.random.split(key)
    bound = 1.0 / np.sqrt(fan_in)
    w = jax.random.uniform(k1, (fan_in, fan_out), jnp.float32, -bound, bound)
    b = jax.random.uniform(k2, (fan_out,), jnp.float32, -bound, bound)
    return w, b


def init_params(key):
    keys = jax.random.split(key, 12)
    params = {}
    params["text_transfer"] = init_linear_params(keys[0], D, D)
    params["graph_transfer"] = init_linear_params(keys[1], D, D)
    gin = []
    for i in range(NUM_GIN_LAYERS):
        w1, b1 = init_linear_params(keys[2 + 2 * i], D, D)
        w2, b2 = init_linear_params(keys[3 + 2 * i], D, D)
        gin.append((w1, b1, w2, b2))
    params["gin"] = gin
    params["cls1"] = init_linear_params(keys[8], 2 * D, CLS_HID)
    params["cls2"] = init_linear_params(keys[9], CLS_HID, NUM_CLASS)
    return params


def pack_params(params):
    """Pack once: bf16 weights (f32 biases), stacked per-layer GIN weights, split cls1,
    lane-padded cls2 — everything in the layout the fused kernel expects."""
    wt, bt = params["text_transfer"]
    wg, bg = params["graph_transfer"]
    gw1 = jnp.stack([w1 for (w1, _, _, _) in params["gin"]]).astype(jnp.bfloat16)  # (3,D,D)
    gb1 = jnp.stack([b1.reshape(1, -1) for (_, b1, _, _) in params["gin"]])        # (3,1,D)
    gw2 = jnp.stack([w2 for (_, _, w2, _) in params["gin"]]).astype(jnp.bfloat16)
    gb2 = jnp.stack([b2.reshape(1, -1) for (_, _, _, b2) in params["gin"]])
    cw1, cb1 = params["cls1"]
    cw2, cb2 = params["cls2"]
    cw2_pad = jnp.zeros((CLS_HID, NUM_CLASS_PAD), jnp.float32).at[:, :NUM_CLASS].set(cw2)
    cb2_pad = jnp.zeros((1, NUM_CLASS_PAD), jnp.float32).at[0, :NUM_CLASS].set(cb2)
    return dict(
        wt=wt.astype(jnp.bfloat16), bt=bt.reshape(1, -1),
        wg=wg.astype(jnp.bfloat16), bg=bg.reshape(1, -1),
        gw1=gw1, gb1=gb1, gw2=gw2, gb2=gb2,
        w1a=cw1[:D].astype(jnp.bfloat16),     # cat([text, pooled]) @ W1 split
        w1b=cw1[D:].astype(jnp.bfloat16),
        cb1=cb1.reshape(1, -1),
        cw2=cw2_pad.astype(jnp.bfloat16), cb2=cb2_pad,
    )


# ----------------------------- driver -------------------------------------------
if __name__ == "__main__":
    key = jax.random.PRNGKey(0)
    k_params, k_text, k_comm, k_label = jax.random.split(key, 4)

    params = init_params(k_params)
    packed = pack_params(params)

    # simulated mean-pooled DeBERTa hidden states (LM itself is not translatable)
    text_reps_raw = jax.random.normal(k_text, (B, D), jnp.float32)
    comment_reps_raw = jax.random.normal(k_comm, (B * COMMENTS_PER_GRAPH, D), jnp.float32)

    # node ordering: text node of graph g at index g; comment (g, c) at B + g*C + c
    # selection matrices used for in-kernel node assembly
    St = np.zeros((N, B), np.float32)
    Sc = np.zeros((N, B * COMMENTS_PER_GRAPH), np.float32)
    for g in range(B):
        St[g, g] = 1.0
        for c in range(COMMENTS_PER_GRAPH):
            Sc[B + g * COMMENTS_PER_GRAPH + c, g * COMMENTS_PER_GRAPH + c] = 1.0
    sel_t = jnp.asarray(St)
    sel_c = jnp.asarray(Sc)

    # per-graph star topology: text node <-> each of its comment nodes; A[dst, src] = 1
    A = np.zeros((N, N), np.float32)
    for g in range(B):
        for c in range(COMMENTS_PER_GRAPH):
            v = B + g * COMMENTS_PER_GRAPH + c
            A[v, g] = 1.0      # message text -> comment
            A[g, v] = 1.0      # message comment -> text
    adj_plus_i = jnp.asarray(A + np.eye(N, dtype=np.float32))   # A + (1+eps)*I, eps=0

    # global mean pooling matrix (same node ordering)
    P = np.zeros((B, N), np.float32)
    for g in range(B):
        P[g, g] = 1.0 / NODES_PER_GRAPH
        for c in range(COMMENTS_PER_GRAPH):
            P[g, B + g * COMMENTS_PER_GRAPH + c] = 1.0 / NODES_PER_GRAPH
    pool_mat = jnp.asarray(P)

    # multi-hot labels (task != 'TASK1'), lane-padded with zeros to NUM_CLASS_PAD
    label = jax.random.bernoulli(k_label, 0.5, (B, NUM_CLASS)).astype(jnp.float32)
    label_pad = jnp.zeros((B, NUM_CLASS_PAD), jnp.float32).at[:, :NUM_CLASS].set(label)

    pred, loss = forward(packed, text_reps_raw, comment_reps_raw,
                         sel_t, sel_c, adj_plus_i, pool_mat, label_pad)
    jax.block_until_ready((pred, loss))

    assert pred.shape == (B, NUM_CLASS) and pred.dtype == jnp.float32
    assert loss.shape == () and bool(jnp.isfinite(loss))
    print("KERNEL_OK")
</pallas_src>

<mosaic_0001>
module attributes {stable_mosaic.version = 11 : i64} {
  func.func @_fused_forward_kernel(%arg0: i32, %arg1: memref<2x256xf32, #tpu.memory_space<vmem>>, %arg2: memref<6x256xf32, #tpu.memory_space<vmem>>, %arg3: memref<8x2xf32, #tpu.memory_space<vmem>>, %arg4: memref<8x6xf32, #tpu.memory_space<vmem>>, %arg5: memref<8x8xf32, #tpu.memory_space<vmem>>, %arg6: memref<2x8xf32, #tpu.memory_space<vmem>>, %arg7: memref<2x128xf32, #tpu.memory_space<vmem>>, %arg8: memref<256x256xbf16, #tpu.memory_space<vmem>>, %arg9: memref<1x256xf32, #tpu.memory_space<vmem>>, %arg10: memref<256x256xbf16, #tpu.memory_space<vmem>>, %arg11: memref<1x256xf32, #tpu.memory_space<vmem>>, %arg12: memref<1x256x256xbf16, #tpu.memory_space<vmem>>, %arg13: memref<1x1x256xf32, #tpu.memory_space<vmem>>, %arg14: memref<1x256x256xbf16, #tpu.memory_space<vmem>>, %arg15: memref<1x1x256xf32, #tpu.memory_space<vmem>>, %arg16: memref<256x128xbf16, #tpu.memory_space<vmem>>, %arg17: memref<256x128xbf16, #tpu.memory_space<vmem>>, %arg18: memref<1x128xf32, #tpu.memory_space<vmem>>, %arg19: memref<128x128xbf16, #tpu.memory_space<vmem>>, %arg20: memref<1x128xf32, #tpu.memory_space<vmem>>, %arg21: memref<2x128xf32, #tpu.memory_space<vmem>>, %arg22: memref<1x1xf32, #tpu.memory_space<vmem>>, %arg23: memref<8x256xf32, #tpu.memory_space<vmem>>, %arg24: memref<2x256xf32, #tpu.memory_space<vmem>>) attributes {dimension_semantics = [#tpu.dimension_semantics<arbitrary>], iteration_bounds = array<i64: 3>, scalar_prefetch = 0 : i64, scratch_operands = 2 : i64, tpu.core_type = #tpu.core_type<tc>, window_params = [{pipeline_mode = #tpu.pipeline_mode<synchronous>, transform_indices = @transform_0, window_bounds = array<i64: 2, 256>}, {pipeline_mode = #tpu.pipeline_mode<synchronous>, transform_indices = @transform_1, window_bounds = array<i64: 6, 256>}, {pipeline_mode = #tpu.pipeline_mode<synchronous>, transform_indices = @transform_2, window_bounds = array<i64: 8, 2>}, {pipeline_mode = #tpu.pipeline_mode<synchronous>, transform_indices = @transform_3, window_bounds = array<i64: 8, 6>}, {pipeline_mode = #tpu.pipeline_mode<synchronous>, transform_indices = @transform_4, window_bounds = array<i64: 8, 8>}, {pipeline_mode = #tpu.pipeline_mode<synchronous>, transform_indices = @transform_5, window_bounds = array<i64: 2, 8>}, {pipeline_mode = #tpu.pipeline_mode<synchronous>, transform_indices = @transform_6, window_bounds = array<i64: 2, 128>}, {pipeline_mode = #tpu.pipeline_mode<synchronous>, transform_indices = @transform_7, window_bounds = array<i64: 256, 256>}, {pipeline_mode = #tpu.pipeline_mode<synchronous>, transform_indices = @transform_8, window_bounds = array<i64: 1, 256>}, {pipeline_mode = #tpu.pipeline_mode<synchronous>, transform_indices = @transform_9, window_bounds = array<i64: 256, 256>}, {pipeline_mode = #tpu.pipeline_mode<synchronous>, transform_indices = @transform_10, window_bounds = array<i64: 1, 256>}, {transform_indices = @transform_11, window_bounds = array<i64: 1, 256, 256>}, {transform_indices = @transform_12, window_bounds = array<i64: 1, 1, 256>}, {transform_indices = @transform_13, window_bounds = array<i64: 1, 256, 256>}, {transform_indices = @transform_14, window_bounds = array<i64: 1, 1, 256>}, {pipeline_mode = #tpu.pipeline_mode<synchronous>, transform_indices = @transform_15, window_bounds = array<i64: 256, 128>}, {pipeline_mode = #tpu.pipeline_mode<synchronous>, transform_indices = @transform_16, window_bounds = array<i64: 256, 128>}, {pipeline_mode = #tpu.pipeline_mode<synchronous>, transform_indices = @transform_17, window_bounds = array<i64: 1, 128>}, {pipeline_mode = #tpu.pipeline_mode<synchronous>, transform_indices = @transform_18, window_bounds = array<i64: 128, 128>}, {pipeline_mode = #tpu.pipeline_mode<synchronous>, transform_indices = @transform_19, window_bounds = array<i64: 1, 128>}, {pipeline_mode = #tpu.pipeline_mode<synchronous>, transform_indices = @transform_20, window_bounds = array<i64: 2, 128>}, {pipeline_mode = #tpu.pipeline_mode<synchronous>, transform_indices = @transform_21, window_bounds = array<i64: 1, 1>}]} {
    %c2_i32 = arith.constant 2 : i32
    %0 = arith.cmpi eq, %arg0, %c2_i32 : i32
    %c0_i32 = arith.constant 0 : i32
    %1 = arith.cmpi eq, %arg0, %c0_i32 : i32
    %2 = arith.extui %1 : i1 to i32
    %c0_i32_0 = arith.constant 0 : i32
    %3 = arith.cmpi ne, %2, %c0_i32_0 : i32
    scf.if %3 {
      %c0_21 = arith.constant 0 : index
      %c0_22 = arith.constant 0 : index
      %30 = vector.load %arg1[%c0_21, %c0_22] : memref<2x256xf32, #tpu.memory_space<vmem>>, vector<2x256xf32>
      %31 = arith.truncf %30 : vector<2x256xf32> to vector<2x256xbf16>
      %c0_23 = arith.constant 0 : index
      %c0_24 = arith.constant 0 : index
      %32 = vector.load %arg8[%c0_23, %c0_24] : memref<256x256xbf16, #tpu.memory_space<vmem>>, vector<256x256xbf16>
      %cst_25 = arith.constant dense<0.000000e+00> : vector<2x256xf32>
      %33 = tpu.matmul %31, %32, %cst_25 {dimension_numbers = #tpu.dot_dimension_numbers<[1], [0], [0], [1], [0, 0, 1, 1], [], []>} : vector<2x256xbf16>, vector<256x256xbf16>, vector<2x256xf32> -> vector<2x256xf32>
      %c0_26 = arith.constant 0 : index
      %c0_27 = arith.constant 0 : index
      %34 = vector.load %arg9[%c0_26, %c0_27] : memref<1x256xf32, #tpu.memory_space<vmem>>, vector<1x256xf32>
      %35 = vector.broadcast %34 : vector<1x256xf32> to vector<2x256xf32>
      %36 = arith.addf %33, %35 : vector<2x256xf32>
      %c0_28 = arith.constant 0 : index
      %c0_29 = arith.constant 0 : index
      %37 = vector.load %arg2[%c0_28, %c0_29] : memref<6x256xf32, #tpu.memory_space<vmem>>, vector<6x256xf32>
      %38 = arith.truncf %37 : vector<6x256xf32> to vector<6x256xbf16>
      %c0_30 = arith.constant 0 : index
      %c0_31 = arith.constant 0 : index
      %39 = vector.load %arg10[%c0_30, %c0_31] : memref<256x256xbf16, #tpu.memory_space<vmem>>, vector<256x256xbf16>
      %cst_32 = arith.constant dense<0.000000e+00> : vector<6x256xf32>
      %40 = tpu.matmul %38, %39, %cst_32 {dimension_numbers = #tpu.dot_dimension_numbers<[1], [0], [0], [1], [0, 0, 1, 1], [], []>} : vector<6x256xbf16>, vector<256x256xbf16>, vector<6x256xf32> -> vector<6x256xf32>
      %c0_33 = arith.constant 0 : index
      %c0_34 = arith.constant 0 : index
      %41 = vector.load %arg11[%c0_33, %c0_34] : memref<1x256xf32, #tpu.memory_space<vmem>>, vector<1x256xf32>
      %42 = vector.broadcast %41 : vector<1x256xf32> to vector<6x256xf32>
      %43 = arith.addf %40, %42 : vector<6x256xf32>
      %c0_35 = arith.constant 0 : index
      %c0_36 = arith.constant 0 : index
      %44 = vector.load %arg24[%c0_35, %c0_36] : memref<2x256xf32, #tpu.memory_space<vmem>>, vector<2x256xf32>
      tpu.vector_store %arg24[%c0_35, %c0_36], %36 {strides = array<i32>} : memref<2x256xf32, #tpu.memory_space<vmem>>, vector<2x256xf32>,
      %c0_37 = arith.constant 0 : index
      %c0_38 = arith.constant 0 : index
      %45 = vector.load %arg3[%c0_37, %c0_38] : memref<8x2xf32, #tpu.memory_space<vmem>>, vector<8x2xf32>
      %cst_39 = arith.constant dense<0.000000e+00> : vector<8x256xf32>
      %46 = tpu.matmul %45, %36, %cst_39 {dimension_numbers = #tpu.dot_dimension_numbers<[1], [0], [0], [1], [0, 0, 1, 1], [], []>} : vector<8x2xf32>, vector<2x256xf32>, vector<8x256xf32> -> vector<8x256xf32>
      %c0_40 = arith.constant 0 : index
      %c0_41 = arith.constant 0 : index
      %47 = vector.load %arg4[%c0_40, %c0_41] : memref<8x6xf32, #tpu.memory_space<vmem>>, vector<8x6xf32>
      %cst_42 = arith.constant dense<0.000000e+00> : vector<8x256xf32>
      %48 = tpu.matmul %47, %43, %cst_42 {dimension_numbers = #tpu.dot_dimension_numbers<[1], [0], [0], [1], [0, 0, 1, 1], [], []>} : vector<8x6xf32>, vector<6x256xf32>, vector<8x256xf32> -> vector<8x256xf32>
      %49 = arith.addf %46, %48 : vector<8x256xf32>
      %c0_43 = arith.constant 0 : index
      %c0_44 = arith.constant 0 : index
      %50 = vector.load %arg23[%c0_43, %c0_44] : memref<8x256xf32, #tpu.memory_space<vmem>>, vector<8x256xf32>
      tpu.vector_store %arg23[%c0_43, %c0_44], %49 {strides = array<i32>} : memref<8x256xf32, #tpu.memory_space<vmem>>, vector<8x256xf32>,
    } else {
    }
    %c0 = arith.constant 0 : index
    %c0_1 = arith.constant 0 : index
    %4 = vector.load %arg5[%c0, %c0_1] : memref<8x8xf32, #tpu.memory_space<vmem>>, vector<8x8xf32>
    %c0_2 = arith.constant 0 : index
    %c0_3 = arith.constant 0 : index
    %5 = vector.load %arg23[%c0_2, %c0_3] : memref<8x256xf32, #tpu.memory_space<vmem>>, vector<8x256xf32>
    %cst = arith.constant dense<0.000000e+00> : vector<8x256xf32>
    %6 = tpu.matmul %4, %5, %cst {dimension_numbers = #tpu.dot_dimension_numbers<[1], [0], [0], [1], [0, 0, 1, 1], [], []>} : vector<8x8xf32>, vector<8x256xf32>, vector<8x256xf32> -> vector<8x256xf32>
    %7 = arith.truncf %6 : vector<8x256xf32> to vector<8x256xbf16>
    %c0_4 = arith.constant 0 : index
    %c0_5 = arith.constant 0 : index
    %c0_6 = arith.constant 0 : index
    %8 = vector.load %arg12[%c0_4, %c0_5, %c0_6] : memref<1x256x256xbf16, #tpu.memory_space<vmem>>, vector<1x256x256xbf16>
    %9 = vector.shape_cast %8 : vector<1x256x256xbf16> to vector<256x256xbf16>
    %cst_7 = arith.constant dense<0.000000e+00> : vector<8x256xf32>
    %10 = tpu.matmul %7, %9, %cst_7 {dimension_numbers = #tpu.dot_dimension_numbers<[1], [0], [0], [1], [0, 0, 1, 1], [], []>} : vector<8x256xbf16>, vector<256x256xbf16>, vector<8x256xf32> -> vector<8x256xf32>
    %c0_8 = arith.constant 0 : index
    %c0_9 = arith.constant 0 : index
    %c0_10 = arith.constant 0 : index
    %11 = vector.load %arg13[%c0_8, %c0_9, %c0_10] : memref<1x1x256xf32, #tpu.memory_space<vmem>>, vector<1x1x256xf32>
    %12 = vector.shape_cast %11 : vector<1x1x256xf32> to vector<1x256xf32>
    %13 = vector.broadcast %12 : vector<1x256xf32> to vector<8x256xf32>
    %14 = arith.addf %10, %13 : vector<8x256xf32>
    %cst_11 = arith.constant 0.000000e+00 : f32
    %15 = vector.broadcast %cst_11 : f32 to vector<8x256xf32>
    %16 = arith.maximumf %14, %15 : vector<8x256xf32>
    %17 = arith.truncf %16 : vector<8x256xf32> to vector<8x256xbf16>
    %c0_12 = arith.constant 0 : index
    %c0_13 = arith.constant 0 : index
    %c0_14 = arith.constant 0 : index
    %18 = vector.load %arg14[%c0_12, %c0_13, %c0_14] : memref<1x256x256xbf16, #tpu.memory_space<vmem>>, vector<1x256x256xbf16>
    %19 = vector.shape_cast %18 : vector<1x256x256xbf16> to vector<256x256xbf16>
    %cst_15 = arith.constant dense<0.000000e+00> : vector<8x256xf32>
    %20 = tpu.matmul %17, %19, %cst_15 {dimension_numbers = #tpu.dot_dimension_numbers<[1], [0], [0], [1], [0, 0, 1, 1], [], []>} : vector<8x256xbf16>, vector<256x256xbf16>, vector<8x256xf32> -> vector<8x256xf32>
    %c0_16 = arith.constant 0 : index
    %c0_17 = arith.constant 0 : index
    %c0_18 = arith.constant 0 : index
    %21 = vector.load %arg15[%c0_16, %c0_17, %c0_18] : memref<1x1x256xf32, #tpu.memory_space<vmem>>, vector<1x1x256xf32>
    %22 = vector.shape_cast %21 : vector<1x1x256xf32> to vector<1x256xf32>
    %23 = vector.broadcast %22 : vector<1x256xf32> to vector<8x256xf32>
    %24 = arith.addf %20, %23 : vector<8x256xf32>
    %true = arith.constant true
    %25 = arith.xori %0, %true : i1
    %26 = arith.extui %25 : i1 to i32
    %c0_i32_19 = arith.constant 0 : i32
    %27 = arith.cmpi ne, %26, %c0_i32_19 : i32
    scf.if %27 {
      %cst_21 = arith.constant 0.000000e+00 : f32
      %30 = vector.broadcast %cst_21 : f32 to vector<8x256xf32>
      %31 = arith.maximumf %24, %30 : vector<8x256xf32>
      %c0_22 = arith.constant 0 : index
      %c0_23 = arith.constant 0 : index
      %32 = vector.load %arg23[%c0_22, %c0_23] : memref<8x256xf32, #tpu.memory_space<vmem>>, vector<8x256xf32>
      tpu.vector_store %arg23[%c0_22, %c0_23], %31 {strides = array<i32>} : memref<8x256xf32, #tpu.memory_space<vmem>>, vector<8x256xf32>,
    } else {
    }
    %28 = arith.extui %0 : i1 to i32
    %c0_i32_20 = arith.constant 0 : i32
    %29 = arith.cmpi ne, %28, %c0_i32_20 : i32
    scf.if %29 {
      %c0_21 = arith.constant 0 : index
      %c0_22 = arith.constant 0 : index
      %30 = vector.load %arg6[%c0_21, %c0_22] : memref<2x8xf32, #tpu.memory_space<vmem>>, vector<2x8xf32>
      %cst_23 = arith.constant dense<0.000000e+00> : vector<2x256xf32>
      %31 = tpu.matmul %30, %24, %cst_23 {dimension_numbers = #tpu.dot_dimension_numbers<[1], [0], [0], [1], [0, 0, 1, 1], [], []>} : vector<2x8xf32>, vector<8x256xf32>, vector<2x256xf32> -> vector<2x256xf32>
      %c0_24 = arith.constant 0 : index
      %c0_25 = arith.constant 0 : index
      %32 = vector.load %arg24[%c0_24, %c0_25] : memref<2x256xf32, #tpu.memory_space<vmem>>, vector<2x256xf32>
      %33 = arith.truncf %32 : vector<2x256xf32> to vector<2x256xbf16>
      %c0_26 = arith.constant 0 : index
      %c0_27 = arith.constant 0 : index
      %34 = vector.load %arg16[%c0_26, %c0_27] : memref<256x128xbf16, #tpu.memory_space<vmem>>, vector<256x128xbf16>
      %cst_28 = arith.constant dense<0.000000e+00> : vector<2x128xf32>
      %35 = tpu.matmul %33, %34, %cst_28 {dimension_numbers = #tpu.dot_dimension_numbers<[1], [0], [0], [1], [0, 0, 1, 1], [], []>} : vector<2x256xbf16>, vector<256x128xbf16>, vector<2x128xf32> -> vector<2x128xf32>
      %36 = arith.truncf %31 : vector<2x256xf32> to vector<2x256xbf16>
      %c0_29 = arith.constant 0 : index
      %c0_30 = arith.constant 0 : index
      %37 = vector.load %arg17[%c0_29, %c0_30] : memref<256x128xbf16, #tpu.memory_space<vmem>>, vector<256x128xbf16>
      %cst_31 = arith.constant dense<0.000000e+00> : vector<2x128xf32>
      %38 = tpu.matmul %36, %37, %cst_31 {dimension_numbers = #tpu.dot_dimension_numbers<[1], [0], [0], [1], [0, 0, 1, 1], [], []>} : vector<2x256xbf16>, vector<256x128xbf16>, vector<2x128xf32> -> vector<2x128xf32>
      %39 = arith.addf %35, %38 : vector<2x128xf32>
      %c0_32 = arith.constant 0 : index
      %c0_33 = arith.constant 0 : index
      %40 = vector.load %arg18[%c0_32, %c0_33] : memref<1x128xf32, #tpu.memory_space<vmem>>, vector<1x128xf32>
      %41 = vector.broadcast %40 : vector<1x128xf32> to vector<2x128xf32>
      %42 = arith.addf %39, %41 : vector<2x128xf32>
      %cst_34 = arith.constant 0.000000e+00 : f32
      %43 = vector.broadcast %cst_34 : f32 to vector<2x128xf32>
      %44 = arith.maximumf %42, %43 : vector<2x128xf32>
      %45 = arith.truncf %44 : vector<2x128xf32> to vector<2x128xbf16>
      %c0_35 = arith.constant 0 : index
      %c0_36 = arith.constant 0 : index
      %46 = vector.load %arg19[%c0_35, %c0_36] : memref<128x128xbf16, #tpu.memory_space<vmem>>, vector<128x128xbf16>
      %cst_37 = arith.constant dense<0.000000e+00> : vector<2x128xf32>
      %47 = tpu.matmul %45, %46, %cst_37 {dimension_numbers = #tpu.dot_dimension_numbers<[1], [0], [0], [1], [0, 0, 1, 1], [], []>} : vector<2x128xbf16>, vector<128x128xbf16>, vector<2x128xf32> -> vector<2x128xf32>
      %c0_38 = arith.constant 0 : index
      %c0_39 = arith.constant 0 : index
      %48 = vector.load %arg20[%c0_38, %c0_39] : memref<1x128xf32, #tpu.memory_space<vmem>>, vector<1x128xf32>
      %49 = vector.broadcast %48 : vector<1x128xf32> to vector<2x128xf32>
      %50 = arith.addf %47, %49 : vector<2x128xf32>
      %c0_40 = arith.constant 0 : index
      %c0_41 = arith.constant 0 : index
      %51 = vector.load %arg21[%c0_40, %c0_41] : memref<2x128xf32, #tpu.memory_space<vmem>>, vector<2x128xf32>
      tpu.vector_store %arg21[%c0_40, %c0_41], %50 {strides = array<i32>} : memref<2x128xf32, #tpu.memory_space<vmem>>, vector<2x128xf32>,
      %52 = tpu.iota {dimensions = array<i32: 1>} : vector<2x128xi32>
      %c4_i32 = arith.constant 4 : i32
      %53 = vector.broadcast %c4_i32 : i32 to vector<2x128xi32>
      %54 = arith.cmpi slt, %52, %53 : vector<2x128xi32>
      %55 = arith.extui %54 : vector<2x128xi1> to vector<2x128xi32>
      %56 = arith.sitofp %55 : vector<2x128xi32> to vector<2x128xf32>
      %c0_42 = arith.constant 0 : index
      %c0_43 = arith.constant 0 : index
      %57 = vector.load %arg7[%c0_42, %c0_43] : memref<2x128xf32, #tpu.memory_space<vmem>>, vector<2x128xf32>
      %cst_44 = arith.constant 2.000000e+00 : f32
      %58 = vector.broadcast %cst_44 : f32 to vector<2x128xf32>
      %59 = arith.mulf %58, %57 : vector<2x128xf32>
      %cst_45 = arith.constant 1.000000e+00 : f32
      %60 = vector.broadcast %cst_45 : f32 to vector<2x128xf32>
      %61 = arith.subf %60, %59 : vector<2x128xf32>
      %62 = arith.mulf %61, %50 : vector<2x128xf32>
      %cst_46 = arith.constant 9.99999995E+11 : f32
      %63 = vector.broadcast %cst_46 : f32 to vector<2x128xf32>
      %64 = arith.mulf %57, %63 : vector<2x128xf32>
      %65 = arith.subf %62, %64 : vector<2x128xf32>
      %cst_47 = arith.constant 1.000000e+00 : f32
      %66 = vector.broadcast %cst_47 : f32 to vector<2x128xf32>
      %67 = arith.subf %66, %56 : vector<2x128xf32>
      %cst_48 = arith.constant 9.99999995E+11 : f32
      %68 = vector.broadcast %cst_48 : f32 to vector<2x128xf32>
      %69 = arith.mulf %67, %68 : vector<2x128xf32>
      %70 = arith.subf %65, %69 : vector<2x128xf32>
      %cst_49 = arith.constant 1.000000e+00 : f32
      %71 = vector.broadcast %cst_49 : f32 to vector<2x128xf32>
      %72 = arith.subf %71, %57 : vector<2x128xf32>
      %cst_50 = arith.constant 9.99999995E+11 : f32
      %73 = vector.broadcast %cst_50 : f32 to vector<2x128xf32>
      %74 = arith.mulf %72, %73 : vector<2x128xf32>
      %75 = arith.subf %62, %74 : vector<2x128xf32>
      %cst_51 = arith.constant dense<0xFF800000> : vector<2xf32>
      %76 = vector.multi_reduction <maximumf>, %70, %cst_51 [1] : vector<2x128xf32> to vector<2xf32>
      %77 = vector.shape_cast %76 : vector<2xf32> to vector<2x1xf32>
      %cst_52 = arith.constant 0.000000e+00 : f32
      %78 = vector.broadcast %cst_52 : f32 to vector<2x1xf32>
      %79 = arith.maximumf %77, %78 : vector<2x1xf32>
      %80 = vector.broadcast %79 : vector<2x1xf32> to vector<2x128xf32>
      %81 = arith.subf %70, %80 : vector<2x128xf32>
      %82 = math.exp %81 : vector<2x128xf32>
      %cst_53 = arith.constant dense<0.000000e+00> : vector<2xf32>
      %83 = vector.multi_reduction <add>, %82, %cst_53 [1] : vector<2x128xf32> to vector<2xf32>
      %84 = vector.shape_cast %83 : vector<2xf32> to vector<2x1xf32>
      %cst_54 = arith.constant 0.000000e+00 : f32
      %85 = vector.broadcast %cst_54 : f32 to vector<2x1xf32>
      %86 = arith.subf %85, %79 : vector<2x1xf32>
      %87 = math.exp %86 : vector<2x1xf32>
      %88 = arith.addf %84, %87 : vector<2x1xf32>
      %89 = math.log %88 : vector<2x1xf32>
      %90 = arith.addf %79, %89 : vector<2x1xf32>
      %cst_55 = arith.constant dense<0xFF800000> : vector<2xf32>
      %91 = vector.multi_reduction <maximumf>, %75, %cst_55 [1] : vector<2x128xf32> to vector<2xf32>
      %92 = vector.shape_cast %91 : vector<2xf32> to vector<2x1xf32>
      %cst_56 = arith.constant 0.000000e+00 : f32
      %93 = vector.broadcast %cst_56 : f32 to vector<2x1xf32>
      %94 = arith.maximumf %92, %93 : vector<2x1xf32>
      %95 = vector.broadcast %94 : vector<2x1xf32> to vector<2x128xf32>
      %96 = arith.subf %75, %95 : vector<2x128xf32>
      %97 = math.exp %96 : vector<2x128xf32>
      %cst_57 = arith.constant dense<0.000000e+00> : vector<2xf32>
      %98 = vector.multi_reduction <add>, %97, %cst_57 [1] : vector<2x128xf32> to vector<2xf32>
      %99 = vector.shape_cast %98 : vector<2xf32> to vector<2x1xf32>
      %cst_58 = arith.constant 0.000000e+00 : f32
      %100 = vector.broadcast %cst_58 : f32 to vector<2x1xf32>
      %101 = arith.subf %100, %94 : vector<2x1xf32>
      %102 = math.exp %101 : vector<2x1xf32>
      %103 = arith.addf %99, %102 : vector<2x1xf32>
      %104 = math.log %103 : vector<2x1xf32>
      %105 = arith.addf %94, %104 : vector<2x1xf32>
      %106 = arith.addf %90, %105 : vector<2x1xf32>
      %107 = vector.shape_cast %106 : vector<2x1xf32> to vector<1x2x1xf32>
      %cst_59 = arith.constant dense<0.000000e+00> : vector<1xf32>
      %108 = vector.multi_reduction <add>, %107, %cst_59 [1, 2] : vector<1x2x1xf32> to vector<1xf32>
      %109 = vector.shape_cast %108 : vector<1xf32> to vector<1x1x1xf32>
      %110 = vector.extract %109[0, 0, 0] : f32 from vector<1x1x1xf32>
      %cst_60 = arith.constant 2.000000e+00 : f32
      %111 = arith.divf %110, %cst_60 : f32
      %112 = vector.broadcast %111 : f32 to vector<1x1xf32>
      %c0_61 = arith.constant 0 : index
      %c0_62 = arith.constant 0 : index
      %113 = vector.load %arg22[%c0_61, %c0_62] : memref<1x1xf32, #tpu.memory_space<vmem>>, vector<1x1xf32>
      tpu.vector_store %arg22[%c0_61, %c0_62], %112 {strides = array<i32>} : memref<1x1xf32, #tpu.memory_space<vmem>>, vector<1x1xf32>,
    } else {
    }
    return
  }
  func.func @transform_0(%arg0: i32) -> (i32, i32) {
    %c0_i32 = arith.constant 0 : i32
    %c0_i32_0 = arith.constant 0 : i32
    %c0_i32_1 = arith.constant 0 : i32
    return %c0_i32, %c0_i32_0 : i32, i32
  }
  func.func @transform_1(%arg0: i32) -> (i32, i32) {
    %c0_i32 = arith.constant 0 : i32
    %c0_i32_0 = arith.constant 0 : i32
    %c0_i32_1 = arith.constant 0 : i32
    return %c0_i32, %c0_i32_0 : i32, i32
  }
  func.func @transform_2(%arg0: i32) -> (i32, i32) {
    %c0_i32 = arith.constant 0 : i32
    %c0_i32_0 = arith.constant 0 : i32
    %c0_i32_1 = arith.constant 0 : i32
    return %c0_i32, %c0_i32_0 : i32, i32
  }
  func.func @transform_3(%arg0: i32) -> (i32, i32) {
    %c0_i32 = arith.constant 0 : i32
    %c0_i32_0 = arith.constant 0 : i32
    %c0_i32_1 = arith.constant 0 : i32
    return %c0_i32, %c0_i32_0 : i32, i32
  }
  func.func @transform_4(%arg0: i32) -> (i32, i32) {
    %c0_i32 = arith.constant 0 : i32
    %c0_i32_0 = arith.constant 0 : i32
    %c0_i32_1 = arith.constant 0 : i32
    return %c0_i32, %c0_i32_0 : i32, i32
  }
  func.func @transform_5(%arg0: i32) -> (i32, i32) {
    %c0_i32 = arith.constant 0 : i32
    %c0_i32_0 = arith.constant 0 : i32
    %c0_i32_1 = arith.constant 0 : i32
    return %c0_i32, %c0_i32_0 : i32, i32
  }
  func.func @transform_6(%arg0: i32) -> (i32, i32) {
    %c0_i32 = arith.constant 0 : i32
    %c0_i32_0 = arith.constant 0 : i32
    %c0_i32_1 = arith.constant 0 : i32
    return %c0_i32, %c0_i32_0 : i32, i32
  }
  func.func @transform_7(%arg0: i32) -> (i32, i32) {
    %c0_i32 = arith.constant 0 : i32
    %c0_i32_0 = arith.constant 0 : i32
    %c0_i32_1 = arith.constant 0 : i32
    return %c0_i32, %c0_i32_0 : i32, i32
  }
  func.func @transform_8(%arg0: i32) -> (i32, i32) {
    %c0_i32 = arith.constant 0 : i32
    %c0_i32_0 = arith.constant 0 : i32
    %c0_i32_1 = arith.constant 0 : i32
    return %c0_i32, %c0_i32_0 : i32, i32
  }
  func.func @transform_9(%arg0: i32) -> (i32, i32) {
    %c0_i32 = arith.constant 0 : i32
    %c0_i32_0 = arith.constant 0 : i32
    %c0_i32_1 = arith.constant 0 : i32
    return %c0_i32, %c0_i32_0 : i32, i32
  }
  func.func @transform_10(%arg0: i32) -> (i32, i32) {
    %c0_i32 = arith.constant 0 : i32
    %c0_i32_0 = arith.constant 0 : i32
    %c0_i32_1 = arith.constant 0 : i32
    return %c0_i32, %c0_i32_0 : i32, i32
  }
  func.func @transform_11(%arg0: i32) -> (i32, i32, i32) {
    %c0_i32 = arith.constant 0 : i32
    %c0_i32_0 = arith.constant 0 : i32
    %c0_i32_1 = arith.constant 0 : i32
    return %arg0, %c0_i32, %c0_i32_0 : i32, i32, i32
  }
  func.func @transform_12(%arg0: i32) -> (i32, i32, i32) {
    %c0_i32 = arith.constant 0 : i32
    %c0_i32_0 = arith.constant 0 : i32
    %c0_i32_1 = arith.constant 0 : i32
    return %arg0, %c0_i32, %c0_i32_0 : i32, i32, i32
  }
  func.func @transform_13(%arg0: i32) -> (i32, i32, i32) {
    %c0_i32 = arith.constant 0 : i32
    %c0_i32_0 = arith.constant 0 : i32
    %c0_i32_1 = arith.constant 0 : i32
    return %arg0, %c0_i32, %c0_i32_0 : i32, i32, i32
  }
  func.func @transform_14(%arg0: i32) -> (i32, i32, i32) {
    %c0_i32 = arith.constant 0 : i32
    %c0_i32_0 = arith.constant 0 : i32
    %c0_i32_1 = arith.constant 0 : i32
    return %arg0, %c0_i32, %c0_i32_0 : i32, i32, i32
  }
  func.func @transform_15(%arg0: i32) -> (i32, i32) {
    %c0_i32 = arith.constant 0 : i32
    %c0_i32_0 = arith.constant 0 : i32
    %c0_i32_1 = arith.constant 0 : i32
    return %c0_i32, %c0_i32_0 : i32, i32
  }
  func.func @transform_16(%arg0: i32) -> (i32, i32) {
    %c0_i32 = arith.constant 0 : i32
    %c0_i32_0 = arith.constant 0 : i32
    %c0_i32_1 = arith.constant 0 : i32
    return %c0_i32, %c0_i32_0 : i32, i32
  }
  func.func @transform_17(%arg0: i32) -> (i32, i32) {
    %c0_i32 = arith.constant 0 : i32
    %c0_i32_0 = arith.constant 0 : i32
    %c0_i32_1 = arith.constant 0 : i32
    return %c0_i32, %c0_i32_0 : i32, i32
  }
  func.func @transform_18(%arg0: i32) -> (i32, i32) {
    %c0_i32 = arith.constant 0 : i32
    %c0_i32_0 = arith.constant 0 : i32
    %c0_i32_1 = arith.constant 0 : i32
    return %c0_i32, %c0_i32_0 : i32, i32
  }
  func.func @transform_19(%arg0: i32) -> (i32, i32) {
    %c0_i32 = arith.constant 0 : i32
    %c0_i32_0 = arith.constant 0 : i32
    %c0_i32_1 = arith.constant 0 : i32
    return %c0_i32, %c0_i32_0 : i32, i32
  }
  func.func @transform_20(%arg0: i32) -> (i32, i32) {
    %c0_i32 = arith.constant 0 : i32
    %c0_i32_0 = arith.constant 0 : i32
    %c0_i32_1 = arith.constant 0 : i32
    return %c0_i32, %c0_i32_0 : i32, i32
  }
  func.func @transform_21(%arg0: i32) -> (i32, i32) {
    %c0_i32 = arith.constant 0 : i32
    %c0_i32_0 = arith.constant 0 : i32
    %c0_i32_1 = arith.constant 0 : i32
    return %c0_i32, %c0_i32_0 : i32, i32
  }
}

</mosaic_0001>

<llo_original>
// kernel: forward.1
$region0: #{forward.1}
  #allocation0 [shape = 'u32[]', space=smem, size = 0x4, offset = 0x4, fixed_abs, tag = 'smem constant byte address 0x4 - core index']
  #allocation1 [shape = 'u32[144,128]{1,0:T(1,128)}', space=vmem, size = 0x12000, scoped, tag = 'internal scratch']
  #allocation2 [shape = 'f32[8,256]{1,0:T(8,128)}', space=vmem, size = 0x2000, scoped, tag = 'scratch operand']
  #allocation3 [shape = 'f32[2,256]{1,0:T(2,128)}', space=vmem, size = 0x800, scoped, tag = 'scratch operand']
  %s0 = inlined_call_operand.hbm [shape: f32[2,256], index: 0, kind: input, shape index: {}]
  %s1 = inlined_call_operand.vmem [shape: f32[6,256], index: 1, kind: input, shape index: {}]
  %s2 = inlined_call_operand.vmem [shape: f32[8,2], index: 2, kind: input, shape index: {}]
  %s3 = inlined_call_operand.vmem [shape: f32[8,6], index: 3, kind: input, shape index: {}]
  %s4 = inlined_call_operand.vmem [shape: f32[8,8], index: 4, kind: input, shape index: {}]
  %s5 = inlined_call_operand.vmem [shape: f32[2,8], index: 5, kind: input, shape index: {}]
  %s6 = inlined_call_operand.vmem [shape: f32[2,128], index: 6, kind: input, shape index: {}]
  %s7 = inlined_call_operand.hbm [shape: bf16[256,256], index: 7, kind: input, shape index: {}]
  %s8 = inlined_call_operand.hbm [shape: f32[1,256], index: 8, kind: input, shape index: {}]
  %s9 = inlined_call_operand.hbm [shape: bf16[256,256], index: 9, kind: input, shape index: {}]
  %s10 = inlined_call_operand.hbm [shape: f32[1,256], index: 10, kind: input, shape index: {}]
  %s11 = inlined_call_operand.hbm [shape: bf16[3,256,256], index: 11, kind: input, shape index: {}]
  %s12 = inlined_call_operand.hbm [shape: f32[3,1,256], index: 12, kind: input, shape index: {}]
  %s13 = inlined_call_operand.hbm [shape: bf16[3,256,256], index: 13, kind: input, shape index: {}]
  %s14 = inlined_call_operand.hbm [shape: f32[3,1,256], index: 14, kind: input, shape index: {}]
  %s15 = inlined_call_operand.hbm [shape: bf16[256,128], index: 15, kind: input, shape index: {}]
  %s16 = inlined_call_operand.hbm [shape: bf16[256,128], index: 16, kind: input, shape index: {}]
  %s17 = inlined_call_operand.vmem [shape: f32[1,128], index: 17, kind: input, shape index: {}]
  %s18 = inlined_call_operand.hbm [shape: bf16[128,128], index: 18, kind: input, shape index: {}]
  %s19 = inlined_call_operand.hbm [shape: f32[1,128], index: 19, kind: input, shape index: {}]
  %s20 = inlined_call_operand.hbm [shape: f32[2,128], index: 20, kind: output, shape index: {0}]
  %s21 = inlined_call_operand.hbm [shape: f32[1,1], index: 21, kind: output, shape index: {1}]
  %22 = xla_tuple %s20, %s21
  %s23 = sld [smem:[#allocation0]]
  $region185: #{forward.1} parent=0
    _
  %s25 = ssub.s32 1, %s23
  %s26 = scalar_select 0, %s25, %s23
  $region1: #{forward.1} parent=0
    #allocation4 [shape = 'u8[2048]{0}', space=vmem, size = 0x800, scoped, tag = 'input window, operand 0, single buffered']
    #allocation5 [shape = 's32[2]{0}', space=sflag, size = 0x8, scoped, tag = 'scoped memory for forward.1']
    #allocation6 [shape = 's32[2]{0}', space=sflag, size = 0x8, scoped, tag = 'scoped memory for forward.1']
    #allocation7 [shape = 'u8[131072]{0}', space=vmem, size = 0x20000, scoped, tag = 'input window, operand 7, single buffered']
    #allocation8 [shape = 's32[1]{0}', space=sflag, size = 0x4, scoped, tag = 'scoped memory for forward.1']
    #allocation9 [shape = 'u8[1024]{0}', space=vmem, size = 0x400, scoped, tag = 'input window, operand 8, single buffered']
    #allocation10 [shape = 'u8[131072]{0}', space=vmem, size = 0x20000, scoped, tag = 'input window, operand 9, single buffered']
    #allocation11 [shape = 's32[1]{0}', space=sflag, size = 0x4, scoped, tag = 'scoped memory for forward.1']
    #allocation12 [shape = 'u8[1024]{0}', space=vmem, size = 0x400, scoped, tag = 'input window, operand 10, single buffered']
    #allocation13 [shape = 'u8[262144]{0}', space=vmem, size = 0x40000, scoped, tag = 'input window, operand 11']
    #allocation14 [shape = 's32[2]{0}', space=sflag, size = 0x8, scoped, tag = 'scoped memory for forward.1']
    #allocation15 [shape = 'u8[2048]{0}', space=vmem, size = 0x800, scoped, tag = 'input window, operand 12']
    #allocation16 [shape = 'u8[262144]{0}', space=vmem, size = 0x40000, scoped, tag = 'input window, operand 13']
    #allocation17 [shape = 's32[2]{0}', space=sflag, size = 0x8, scoped, tag = 'scoped memory for forward.1']
    #allocation18 [shape = 'u8[2048]{0}', space=vmem, size = 0x800, scoped, tag = 'input window, operand 14']
    #allocation19 [shape = 'u8[65536]{0}', space=vmem, size = 0x10000, scoped, tag = 'input window, operand 15, single buffered']
    #allocation20 [shape = 's32[1]{0}', space=sflag, size = 0x4, scoped, tag = 'scoped memory for forward.1']
    #allocation21 [shape = 'u8[65536]{0}', space=vmem, size = 0x10000, scoped, tag = 'input window, operand 16, single buffered']
    #allocation22 [shape = 'u8[32768]{0}', space=vmem, size = 0x8000, scoped, tag = 'input window, operand 18, single buffered']
    #allocation23 [shape = 's32[1]{0}', space=sflag, size = 0x4, scoped, tag = 'scoped memory for forward.1']
    #allocation24 [shape = 'u8[512]{0}', space=vmem, size = 0x400, scoped, tag = 'input window, operand 19, single buffered']
    #allocation25 [shape = 'u8[1024]{0}', space=vmem, size = 0x400, scoped, tag = 'output window, operand 0, single buffered']
    #allocation26 [shape = 'u8[512]{0}', space=vmem, size = 0x400, scoped, tag = 'output window, operand 1, single buffered']
    #allocation27 [shape = 's32[1]{0}', space=sflag, size = 0x4, scoped, tag = 'scoped memory for forward.1']
    %27 = vsyncpa [#allocation5], 0
    %28 = vsyncpa [#allocation8], 0
    %29 = vsyncpa [#allocation11], 0
    %30 = vsyncpa [#allocation14], 0
    %s31 = scalar_lea.sflag [#allocation14], 1
    %32 = vsyncpa %s31, 0
    %33 = vsyncpa [#allocation17], 0
    %s34 = scalar_lea.sflag [#allocation17], 1
    %35 = vsyncpa %s34, 0
    %36 = vsyncpa [#allocation20], 0
    %37 = vsyncpa [#allocation23], 0
    %38 = vsyncpa [#allocation6], 0
    %39 = vsyncpa [#allocation27], 0
    loop: start=0, step=1, limit=5
    $region2: #{forward.1} parent=1 // loop_pre_header
      _
    $region3: #{forward.1} parent=1 // loop_header
      %s41 = sphi 0, %s45
      %p42 = scmp.ge.s32.totalorder %s41, 5
      %s49 = sphi 0, %s49
      %s51 = sphi 0, %s49
      %s52 = sphi 0, %s51
      %s66 = sphi 0, %s52
      %s70 = sphi 0, %s70
      %s72 = sphi 0, %s70
      %s73 = sphi 0, %s72
      %s87 = sphi 0, %s73
      %s91 = sphi 0, %s91
      %s93 = sphi 0, %s91
      %s94 = sphi 0, %s93
      %s108 = sphi 0, %s94
      %s112 = sphi 0, %s112
      %s114 = sphi 0, %s112
      %s115 = sphi 0, %s114
      %s129 = sphi 0, %s115
      %s133 = sphi 0, %s133
      %s135 = sphi 0, %s133
      %s136 = sphi 0, %s135
      %s150 = sphi 0, %s136
      %s154 = sphi 0, %s154
      %s156 = sphi 0, %s154
      %s157 = sphi 0, %s156
      %s171 = sphi 0, %s157
      %s175 = sphi 0, %s175
      %s177 = sphi 0, %s175
      %s178 = sphi 0, %s177
      %s192 = sphi 0, %s178
      %s196 = sphi 0, %s196
      %s198 = sphi 0, %s196
      %s199 = sphi 0, %s198
      %s213 = sphi 0, %s199
      %s217 = sphi 0, %s217
      %s219 = sphi 0, %s217
      %s220 = sphi 0, %s219
      %s234 = sphi 0, %s220
      %s238 = sphi 0, %s238
      %s240 = sphi 0, %s238
      %s241 = sphi 0, %s240
      %s255 = sphi 0, %s241
      %s259 = sphi 0, %s259
      %s261 = sphi 0, %s259
      %s262 = sphi 0, %s261
      %s276 = sphi 0, %s262
      %s282 = sphi 0, %s284
      %s285 = sphi 0, %s282
      %s286 = sphi 0, %s285
      %s302 = sphi 0, %s286
      %s308 = sphi 0, %s310
      %s311 = sphi 0, %s308
      %s312 = sphi 0, %s311
      %s328 = sphi 0, %s312
      %s334 = sphi 0, %s336
      %s337 = sphi 0, %s334
      %s338 = sphi 0, %s337
      %s354 = sphi 0, %s338
      %s360 = sphi 0, %s362
      %s363 = sphi 0, %s360
      %s364 = sphi 0, %s363
      %s380 = sphi 0, %s364
      %s384 = sphi 0, %s384
      %s386 = sphi 0, %s384
      %s387 = sphi 0, %s386
      %s401 = sphi 0, %s387
      %s405 = sphi 0, %s405
      %s407 = sphi 0, %s405
      %s408 = sphi 0, %s407
      %s422 = sphi 0, %s408
      %s426 = sphi 0, %s426
      %s428 = sphi 0, %s426
      %s429 = sphi 0, %s428
      %s443 = sphi 0, %s429
      %s447 = sphi 0, %s447
      %s449 = sphi 0, %s447
      %s450 = sphi 0, %s449
      %s464 = sphi 0, %s450
      %s468 = sphi 0, %s468
      %s470 = sphi 0, %s468
      %s471 = sphi 0, %s470
      %s485 = sphi 0, %s471
      %s489 = sphi 0, %s489
      %s491 = sphi 0, %s489
      %s492 = sphi 0, %s491
      %s506 = sphi 0, %s492
      %s510 = sphi 0, %s510
      %s512 = sphi 0, %s510
      %s513 = sphi 0, %s512
      %s527 = sphi 0, %s513
    $region4: #{forward.1} parent=1 // loop_header_branch
      %44 = sbr.rel (%p42) target = $region8
    $region5: #{forward.1} parent=1 // loop_body
      %s46 = ssub.s32 %s41, 1
      %s47 = ssub.s32 %s41, 2
      %s48 = sadd.s32 %s41, 1
      %s50 = sadd.s32 %s49, 1
      %p53 = scmp.eq.s32.totalorder %s41, 2
      %p54 = scmp.ne.s32.totalorder %s49, %s51
      %p55 = scmp.eq.s32.totalorder %s41, 0
      %p56 = por %p54, %p55
      %p57 = scmp.ne.s32.totalorder %s49, %s51
      %p58 = scmp.eq.s32.totalorder %s46, 2
      %p59 = por %p57, %p58
      %p60 = scmp.ne.s32.totalorder %s51, %s52
      %p61 = scmp.eq.s32.totalorder %s46, 0
      %p62 = por %p60, %p61
      %p63 = scmp.ne.s32.totalorder %s51, %s52
      %p64 = scmp.eq.s32.totalorder %s47, 2
      %p65 = por %p63, %p64
      %p67 = scmp.ne.s32.totalorder %s52, %s66
      %p68 = scmp.eq.s32.totalorder %s47, 0
      %p69 = por %p67, %p68
      %s71 = sadd.s32 %s70, 1
      %p74 = scmp.eq.s32.totalorder %s41, 2
      %p75 = scmp.ne.s32.totalorder %s70, %s72
      %p76 = scmp.eq.s32.totalorder %s41, 0
      %p77 = por %p75, %p76
      %p78 = scmp.ne.s32.totalorder %s70, %s72
      %p79 = scmp.eq.s32.totalorder %s46, 2
      %p80 = por %p78, %p79
      %p81 = scmp.ne.s32.totalorder %s72, %s73
      %p82 = scmp.eq.s32.totalorder %s46, 0
      %p83 = por %p81, %p82
      %p84 = scmp.ne.s32.totalorder %s72, %s73
      %p85 = scmp.eq.s32.totalorder %s47, 2
      %p86 = por %p84, %p85
      %p88 = scmp.ne.s32.totalorder %s73, %s87
      %p89 = scmp.eq.s32.totalorder %s47, 0
      %p90 = por %p88, %p89
      %s92 = sadd.s32 %s91, 1
      %p95 = scmp.eq.s32.totalorder %s41, 2
      %p96 = scmp.ne.s32.totalorder %s91, %s93
      %p97 = scmp.eq.s32.totalorder %s41, 0
      %p98 = por %p96, %p97
      %p99 = scmp.ne.s32.totalorder %s91, %s93
      %p100 = scmp.eq.s32.totalorder %s46, 2
      %p101 = por %p99, %p100
      %p102 = scmp.ne.s32.totalorder %s93, %s94
      %p103 = scmp.eq.s32.totalorder %s46, 0
      %p104 = por %p102, %p103
      %p105 = scmp.ne.s32.totalorder %s93, %s94
      %p106 = scmp.eq.s32.totalorder %s47, 2
      %p107 = por %p105, %p106
      %p109 = scmp.ne.s32.totalorder %s94, %s108
      %p110 = scmp.eq.s32.totalorder %s47, 0
      %p111 = por %p109, %p110
      %s113 = sadd.s32 %s112, 1
      %p116 = scmp.eq.s32.totalorder %s41, 2
      %p117 = scmp.ne.s32.totalorder %s112, %s114
      %p118 = scmp.eq.s32.totalorder %s41, 0
      %p119 = por %p117, %p118
      %p120 = scmp.ne.s32.totalorder %s112, %s114
      %p121 = scmp.eq.s32.totalorder %s46, 2
      %p122 = por %p120, %p121
      %p123 = scmp.ne.s32.totalorder %s114, %s115
      %p124 = scmp.eq.s32.totalorder %s46, 0
      %p125 = por %p123, %p124
      %p126 = scmp.ne.s32.totalorder %s114, %s115
      %p127 = scmp.eq.s32.totalorder %s47, 2
      %p128 = por %p126, %p127
      %p130 = scmp.ne.s32.totalorder %s115, %s129
      %p131 = scmp.eq.s32.totalorder %s47, 0
      %p132 = por %p130, %p131
      %s134 = sadd.s32 %s133, 1
      %p137 = scmp.eq.s32.totalorder %s41, 2
      %p138 = scmp.ne.s32.totalorder %s133, %s135
      %p139 = scmp.eq.s32.totalorder %s41, 0
      %p140 = por %p138, %p139
      %p141 = scmp.ne.s32.totalorder %s133, %s135
      %p142 = scmp.eq.s32.totalorder %s46, 2
      %p143 = por %p141, %p142
      %p144 = scmp.ne.s32.totalorder %s135, %s136
      %p145 = scmp.eq.s32.totalorder %s46, 0
      %p146 = por %p144, %p145
      %p147 = scmp.ne.s32.totalorder %s135, %s136
      %p148 = scmp.eq.s32.totalorder %s47, 2
      %p149 = por %p147, %p148
      %p151 = scmp.ne.s32.totalorder %s136, %s150
      %p152 = scmp.eq.s32.totalorder %s47, 0
      %p153 = por %p151, %p152
      %s155 = sadd.s32 %s154, 1
      %p158 = scmp.eq.s32.totalorder %s41, 2
      %p159 = scmp.ne.s32.totalorder %s154, %s156
      %p160 = scmp.eq.s32.totalorder %s41, 0
      %p161 = por %p159, %p160
      %p162 = scmp.ne.s32.totalorder %s154, %s156
      %p163 = scmp.eq.s32.totalorder %s46, 2
      %p164 = por %p162, %p163
      %p165 = scmp.ne.s32.totalorder %s156, %s157
      %p166 = scmp.eq.s32.totalorder %s46, 0
      %p167 = por %p165, %p166
      %p168 = scmp.ne.s32.totalorder %s156, %s157
      %p169 = scmp.eq.s32.totalorder %s47, 2
      %p170 = por %p168, %p169
      %p172 = scmp.ne.s32.totalorder %s157, %s171
      %p173 = scmp.eq.s32.totalorder %s47, 0
      %p174 = por %p172, %p173
      %s176 = sadd.s32 %s175, 1
      %p179 = scmp.eq.s32.totalorder %s41, 2
      %p180 = scmp.ne.s32.totalorder %s175, %s177
      %p181 = scmp.eq.s32.totalorder %s41, 0
      %p182 = por %p180, %p181
      %p183 = scmp.ne.s32.totalorder %s175, %s177
      %p184 = scmp.eq.s32.totalorder %s46, 2
      %p185 = por %p183, %p184
      %p186 = scmp.ne.s32.totalorder %s177, %s178
      %p187 = scmp.eq.s32.totalorder %s46, 0
      %p188 = por %p186, %p187
      %p189 = scmp.ne.s32.totalorder %s177, %s178
      %p190 = scmp.eq.s32.totalorder %s47, 2
      %p191 = por %p189, %p190
      %p193 = scmp.ne.s32.totalorder %s178, %s192
      %p194 = scmp.eq.s32.totalorder %s47, 0
      %p195 = por %p193, %p194
      %s197 = sadd.s32 %s196, 1
      %p200 = scmp.eq.s32.totalorder %s41, 2
      %p201 = scmp.ne.s32.totalorder %s196, %s198
      %p202 = scmp.eq.s32.totalorder %s41, 0
      %p203 = por %p201, %p202
      %p204 = scmp.ne.s32.totalorder %s196, %s198
      %p205 = scmp.eq.s32.totalorder %s46, 2
      %p206 = por %p204, %p205
      %p207 = scmp.ne.s32.totalorder %s198, %s199
      %p208 = scmp.eq.s32.totalorder %s46, 0
      %p209 = por %p207, %p208
      %p210 = scmp.ne.s32.totalorder %s198, %s199
      %p211 = scmp.eq.s32.totalorder %s47, 2
      %p212 = por %p210, %p211
      %p214 = scmp.ne.s32.totalorder %s199, %s213
      %p215 = scmp.eq.s32.totalorder %s47, 0
      %p216 = por %p214, %p215
      %s218 = sadd.s32 %s217, 1
      %p221 = scmp.eq.s32.totalorder %s41, 2
      %p222 = scmp.ne.s32.totalorder %s217, %s219
      %p223 = scmp.eq.s32.totalorder %s41, 0
      %p224 = por %p222, %p223
      %p225 = scmp.ne.s32.totalorder %s217, %s219
      %p226 = scmp.eq.s32.totalorder %s46, 2
      %p227 = por %p225, %p226
      %p228 = scmp.ne.s32.totalorder %s219, %s220
      %p229 = scmp.eq.s32.totalorder %s46, 0
      %p230 = por %p228, %p229
      %p231 = scmp.ne.s32.totalorder %s219, %s220
      %p232 = scmp.eq.s32.totalorder %s47, 2
      %p233 = por %p231, %p232
      %p235 = scmp.ne.s32.totalorder %s220, %s234
      %p236 = scmp.eq.s32.totalorder %s47, 0
      %p237 = por %p235, %p236
      %s239 = sadd.s32 %s238, 1
      %p242 = scmp.eq.s32.totalorder %s41, 2
      %p243 = scmp.ne.s32.totalorder %s238, %s240
      %p244 = scmp.eq.s32.totalorder %s41, 0
      %p245 = por %p243, %p244
      %p246 = scmp.ne.s32.totalorder %s238, %s240
      %p247 = scmp.eq.s32.totalorder %s46, 2
      %p248 = por %p246, %p247
      %p249 = scmp.ne.s32.totalorder %s240, %s241
      %p250 = scmp.eq.s32.totalorder %s46, 0
      %p251 = por %p249, %p250
      %p252 = scmp.ne.s32.totalorder %s240, %s241
      %p253 = scmp.eq.s32.totalorder %s47, 2
      %p254 = por %p252, %p253
      %p256 = scmp.ne.s32.totalorder %s241, %s255
      %p257 = scmp.eq.s32.totalorder %s47, 0
      %p258 = por %p256, %p257
      %s260 = sadd.s32 %s259, 1
      %p263 = scmp.eq.s32.totalorder %s41, 2
      %p264 = scmp.ne.s32.totalorder %s259, %s261
      %p265 = scmp.eq.s32.totalorder %s41, 0
      %p266 = por %p264, %p265
      %p267 = scmp.ne.s32.totalorder %s259, %s261
      %p268 = scmp.eq.s32.totalorder %s46, 2
      %p269 = por %p267, %p268
      %p270 = scmp.ne.s32.totalorder %s261, %s262
      %p271 = scmp.eq.s32.totalorder %s46, 0
      %p272 = por %p270, %p271
      %p273 = scmp.ne.s32.totalorder %s261, %s262
      %p274 = scmp.eq.s32.totalorder %s47, 2
      %p275 = por %p273, %p274
      %p277 = scmp.ne.s32.totalorder %s262, %s276
      %p278 = scmp.eq.s32.totalorder %s47, 0
      %p279 = por %p277, %p278
      %s280 = ssub.s32 %s41, %s48
      %p281 = scmp.eq.s32.totalorder %s280, 0
      %s283 = sadd.s32 %s282, 1
      %s284 = scalar_select %p281, %s282, %s283
      %p287 = pneg %p281
      %p288 = scmp.eq.s32.totalorder %s41, 2
      %p289 = por %p287, %p288
      %p290 = scmp.ne.s32.totalorder %s282, %s285
      %p291 = scmp.eq.s32.totalorder %s41, 0
      %p292 = por %p290, %p291
      %p293 = scmp.ne.s32.totalorder %s282, %s285
      %p294 = scmp.eq.s32.totalorder %s46, 2
      %p295 = por %p293, %p294
      %p296 = scmp.ne.s32.totalorder %s285, %s286
      %p297 = scmp.eq.s32.totalorder %s46, 0
      %p298 = por %p296, %p297
      %p299 = scmp.ne.s32.totalorder %s285, %s286
      %p300 = scmp.eq.s32.totalorder %s47, 2
      %p301 = por %p299, %p300
      %p303 = scmp.ne.s32.totalorder %s286, %s302
      %p304 = scmp.eq.s32.totalorder %s47, 0
      %p305 = por %p303, %p304
      %s306 = ssub.s32 %s41, %s48
      %p307 = scmp.eq.s32.totalorder %s306, 0
      %s309 = sadd.s32 %s308, 1
      %s310 = scalar_select %p307, %s308, %s309
      %p313 = pneg %p307
      %p314 = scmp.eq.s32.totalorder %s41, 2
      %p315 = por %p313, %p314
      %p316 = scmp.ne.s32.totalorder %s308, %s311
      %p317 = scmp.eq.s32.totalorder %s41, 0
      %p318 = por %p316, %p317
      %p319 = scmp.ne.s32.totalorder %s308, %s311
      %p320 = scmp.eq.s32.totalorder %s46, 2
      %p321 = por %p319, %p320
      %p322 = scmp.ne.s32.totalorder %s311, %s312
      %p323 = scmp.eq.s32.totalorder %s46, 0
      %p324 = por %p322, %p323
      %p325 = scmp.ne.s32.totalorder %s311, %s312
      %p326 = scmp.eq.s32.totalorder %s47, 2
      %p327 = por %p325, %p326
      %p329 = scmp.ne.s32.totalorder %s312, %s328
      %p330 = scmp.eq.s32.totalorder %s47, 0
      %p331 = por %p329, %p330
      %s332 = ssub.s32 %s41, %s48
      %p333 = scmp.eq.s32.totalorder %s332, 0
      %s335 = sadd.s32 %s334, 1
      %s336 = scalar_select %p333, %s334, %s335
      %p339 = pneg %p333
      %p340 = scmp.eq.s32.totalorder %s41, 2
      %p341 = por %p339, %p340
      %p342 = scmp.ne.s32.totalorder %s334, %s337
      %p343 = scmp.eq.s32.totalorder %s41, 0
      %p344 = por %p342, %p343
      %p345 = scmp.ne.s32.totalorder %s334, %s337
      %p346 = scmp.eq.s32.totalorder %s46, 2
      %p347 = por %p345, %p346
      %p348 = scmp.ne.s32.totalorder %s337, %s338
      %p349 = scmp.eq.s32.totalorder %s46, 0
      %p350 = por %p348, %p349
      %p351 = scmp.ne.s32.totalorder %s337, %s338
      %p352 = scmp.eq.s32.totalorder %s47, 2
      %p353 = por %p351, %p352
      %p355 = scmp.ne.s32.totalorder %s338, %s354
      %p356 = scmp.eq.s32.totalorder %s47, 0
      %p357 = por %p355, %p356
      %s358 = ssub.s32 %s41, %s48
      %p359 = scmp.eq.s32.totalorder %s358, 0
      %s361 = sadd.s32 %s360, 1
      %s362 = scalar_select %p359, %s360, %s361
      %p365 = pneg %p359
      %p366 = scmp.eq.s32.totalorder %s41, 2
      %p367 = por %p365, %p366
      %p368 = scmp.ne.s32.totalorder %s360, %s363
      %p369 = scmp.eq.s32.totalorder %s41, 0
      %p370 = por %p368, %p369
      %p371 = scmp.ne.s32.totalorder %s360, %s363
      %p372 = scmp.eq.s32.totalorder %s46, 2
      %p373 = por %p371, %p372
      %p374 = scmp.ne.s32.totalorder %s363, %s364
      %p375 = scmp.eq.s32.totalorder %s46, 0
      %p376 = por %p374, %p375
      %p377 = scmp.ne.s32.totalorder %s363, %s364
      %p378 = scmp.eq.s32.totalorder %s47, 2
      %p379 = por %p377, %p378
      %p381 = scmp.ne.s32.totalorder %s364, %s380
      %p382 = scmp.eq.s32.totalorder %s47, 0
      %p383 = por %p381, %p382
      %s385 = sadd.s32 %s384, 1
      %p388 = scmp.eq.s32.totalorder %s41, 2
      %p389 = scmp.ne.s32.totalorder %s384, %s386
      %p390 = scmp.eq.s32.totalorder %s41, 0
      %p391 = por %p389, %p390
      %p392 = scmp.ne.s32.totalorder %s384, %s386
      %p393 = scmp.eq.s32.totalorder %s46, 2
      %p394 = por %p392, %p393
      %p395 = scmp.ne.s32.totalorder %s386, %s387
      %p396 = scmp.eq.s32.totalorder %s46, 0
      %p397 = por %p395, %p396
      %p398 = scmp.ne.s32.totalorder %s386, %s387
      %p399 = scmp.eq.s32.totalorder %s47, 2
      %p400 = por %p398, %p399
      %p402 = scmp.ne.s32.totalorder %s387, %s401
      %p403 = scmp.eq.s32.totalorder %s47, 0
      %p404 = por %p402, %p403
      %s406 = sadd.s32 %s405, 1
      %p409 = scmp.eq.s32.totalorder %s41, 2
      %p410 = scmp.ne.s32.totalorder %s405, %s407
      %p411 = scmp.eq.s32.totalorder %s41, 0
      %p412 = por %p410, %p411
      %p413 = scmp.ne.s32.totalorder %s405, %s407
      %p414 = scmp.eq.s32.totalorder %s46, 2
      %p415 = por %p413, %p414
      %p416 = scmp.ne.s32.totalorder %s407, %s408
      %p417 = scmp.eq.s32.totalorder %s46, 0
      %p418 = por %p416, %p417
      %p419 = scmp.ne.s32.totalorder %s407, %s408
      %p420 = scmp.eq.s32.totalorder %s47, 2
      %p421 = por %p419, %p420
      %p423 = scmp.ne.s32.totalorder %s408, %s422
      %p424 = scmp.eq.s32.totalorder %s47, 0
      %p425 = por %p423, %p424
      %s427 = sadd.s32 %s426, 1
      %p430 = scmp.eq.s32.totalorder %s41, 2
      %p431 = scmp.ne.s32.totalorder %s426, %s428
      %p432 = scmp.eq.s32.totalorder %s41, 0
      %p433 = por %p431, %p432
      %p434 = scmp.ne.s32.totalorder %s426, %s428
      %p435 = scmp.eq.s32.totalorder %s46, 2
      %p436 = por %p434, %p435
      %p437 = scmp.ne.s32.totalorder %s428, %s429
      %p438 = scmp.eq.s32.totalorder %s46, 0
      %p439 = por %p437, %p438
      %p440 = scmp.ne.s32.totalorder %s428, %s429
      %p441 = scmp.eq.s32.totalorder %s47, 2
      %p442 = por %p440, %p441
      %p444 = scmp.ne.s32.totalorder %s429, %s443
      %p445 = scmp.eq.s32.totalorder %s47, 0
      %p446 = por %p444, %p445
      %s448 = sadd.s32 %s447, 1
      %p451 = scmp.eq.s32.totalorder %s41, 2
      %p452 = scmp.ne.s32.totalorder %s447, %s449
      %p453 = scmp.eq.s32.totalorder %s41, 0
      %p454 = por %p452, %p453
      %p455 = scmp.ne.s32.totalorder %s447, %s449
      %p456 = scmp.eq.s32.totalorder %s46, 2
      %p457 = por %p455, %p456
      %p458 = scmp.ne.s32.totalorder %s449, %s450
      %p459 = scmp.eq.s32.totalorder %s46, 0
      %p460 = por %p458, %p459
      %p461 = scmp.ne.s32.totalorder %s449, %s450
      %p462 = scmp.eq.s32.totalorder %s47, 2
      %p463 = por %p461, %p462
      %p465 = scmp.ne.s32.totalorder %s450, %s464
      %p466 = scmp.eq.s32.totalorder %s47, 0
      %p467 = por %p465, %p466
      %s469 = sadd.s32 %s468, 1
      %p472 = scmp.eq.s32.totalorder %s41, 2
      %p473 = scmp.ne.s32.totalorder %s468, %s470
      %p474 = scmp.eq.s32.totalorder %s41, 0
      %p475 = por %p473, %p474
      %p476 = scmp.ne.s32.totalorder %s468, %s470
      %p477 = scmp.eq.s32.totalorder %s46, 2
      %p478 = por %p476, %p477
      %p479 = scmp.ne.s32.totalorder %s470, %s471
      %p480 = scmp.eq.s32.totalorder %s46, 0
      %p481 = por %p479, %p480
      %p482 = scmp.ne.s32.totalorder %s470, %s471
      %p483 = scmp.eq.s32.totalorder %s47, 2
      %p484 = por %p482, %p483
      %p486 = scmp.ne.s32.totalorder %s471, %s485
      %p487 = scmp.eq.s32.totalorder %s47, 0
      %p488 = por %p486, %p487
      %s490 = sadd.s32 %s489, 1
      %p493 = scmp.eq.s32.totalorder %s41, 2
      %p494 = scmp.ne.s32.totalorder %s489, %s491
      %p495 = scmp.eq.s32.totalorder %s41, 0
      %p496 = por %p494, %p495
      %p497 = scmp.ne.s32.totalorder %s489, %s491
      %p498 = scmp.eq.s32.totalorder %s46, 2
      %p499 = por %p497, %p498
      %p500 = scmp.ne.s32.totalorder %s491, %s492
      %p501 = scmp.eq.s32.totalorder %s46, 0
      %p502 = por %p500, %p501
      %p503 = scmp.ne.s32.totalorder %s491, %s492
      %p504 = scmp.eq.s32.totalorder %s47, 2
      %p505 = por %p503, %p504
      %p507 = scmp.ne.s32.totalorder %s492, %s506
      %p508 = scmp.eq.s32.totalorder %s47, 0
      %p509 = por %p507, %p508
      %s511 = sadd.s32 %s510, 1
      %p514 = scmp.eq.s32.totalorder %s41, 2
      %p515 = scmp.ne.s32.totalorder %s510, %s512
      %p516 = scmp.eq.s32.totalorder %s41, 0
      %p517 = por %p515, %p516
      %p518 = scmp.ne.s32.totalorder %s510, %s512
      %p519 = scmp.eq.s32.totalorder %s46, 2
      %p520 = por %p518, %p519
      %p521 = scmp.ne.s32.totalorder %s512, %s513
      %p522 = scmp.eq.s32.totalorder %s46, 0
      %p523 = por %p521, %p522
      %p524 = scmp.ne.s32.totalorder %s512, %s513
      %p525 = scmp.eq.s32.totalorder %s47, 2
      %p526 = por %p524, %p525
      %p528 = scmp.ne.s32.totalorder %s513, %s527
      %p529 = scmp.eq.s32.totalorder %s47, 0
      %p530 = por %p528, %p529
      %p531 = scmp.le.s32.totalorder 1, %s41
      %p532 = scmp.lt.s32.totalorder %s41, 4
      %p533 = pnand %p531, %p532
      %p534 = pneg %p533
      // Predicated region
      $region9: #{forward.1} parent=5 // pred_check
        _
      $region10: #{forward.1} parent=5 // pred_check_branch
        %536 = sbr.rel (%p533) target = $region12
      $region11: #{forward.1} parent=5 // pred_region
        %s537 = ssub.s32 %s41, 1
        // Predicated region
        $region13: #{forward.1} parent=11 // pred_check
          %p538 = pneg %p62
        $region14: #{forward.1} parent=11 // pred_check_branch
          %540 = sbr.rel (%p538) target = $region16
        $region15: #{forward.1} parent=11 // pred_region
          %s542 = ssub.s32 64, 64
          %543 = vsyncadd [#allocation5], %s542
          %s545 = sshll.u32 [#allocation4], 4
          %s546 = int_to_ptr.vmem [resolvable:$true] %s545
          %548 = dma.hbm_to_vmem [thread:$0]  %s0, 64, %s546, [#allocation5]
        $region16: #{forward.1} parent=11 // pred_fallthru
          _
        // Predicated region
        $region17: #{forward.1} parent=11 // pred_check
          %p549 = pneg %p83
        $region18: #{forward.1} parent=11 // pred_check_branch
          %551 = sbr.rel (%p549) target = $region20
        $region19: #{forward.1} parent=11 // pred_region
          _
        $region20: #{forward.1} parent=11 // pred_fallthru
          _
        // Predicated region
        $region21: #{forward.1} parent=11 // pred_check
          %p552 = pneg %p104
        $region22: #{forward.1} parent=11 // pred_check_branch
          %554 = sbr.rel (%p552) target = $region24
        $region23: #{forward.1} parent=11 // pred_region
          _
        $region24: #{forward.1} parent=11 // pred_fallthru
          _
        // Predicated region
        $region25: #{forward.1} parent=11 // pred_check
          %p555 = pneg %p125
        $region26: #{forward.1} parent=11 // pred_check_branch
          %557 = sbr.rel (%p555) target = $region28
        $region27: #{forward.1} parent=11 // pred_region
          _
        $region28: #{forward.1} parent=11 // pred_fallthru
          _
        // Predicated region
        $region29: #{forward.1} parent=11 // pred_check
          %p558 = pneg %p146
        $region30: #{forward.1} parent=11 // pred_check_branch
          %560 = sbr.rel (%p558) target = $region32
        $region31: #{forward.1} parent=11 // pred_region
          _
        $region32: #{forward.1} parent=11 // pred_fallthru
          _
        // Predicated region
        $region33: #{forward.1} parent=11 // pred_check
          %p561 = pneg %p167
        $region34: #{forward.1} parent=11 // pred_check_branch
          %563 = sbr.rel (%p561) target = $region36
        $region35: #{forward.1} parent=11 // pred_region
          _
        $region36: #{forward.1} parent=11 // pred_fallthru
          _
        // Predicated region
        $region37: #{forward.1} parent=11 // pred_check
          %p564 = pneg %p188
        $region38: #{forward.1} parent=11 // pred_check_branch
          %566 = sbr.rel (%p564) target = $region40
        $region39: #{forward.1} parent=11 // pred_region
          _
        $region40: #{forward.1} parent=11 // pred_fallthru
          _
        // Predicated region
        $region41: #{forward.1} parent=11 // pred_check
          %p567 = pneg %p209
        $region42: #{forward.1} parent=11 // pred_check_branch
          %569 = sbr.rel (%p567) target = $region44
        $region43: #{forward.1} parent=11 // pred_region
          %s571 = ssub.s32 4096, 4096
          %572 = vsyncadd [#allocation8], %s571
          %s573 = sshll.u32 [#allocation7], 4
          %s574 = int_to_ptr.vmem [resolvable:$true] %s573
          %579 = dma.hbm_to_vmem [thread:$0]  %s7, 4096, %s574, [#allocation8], 128, 128, 8
        $region44: #{forward.1} parent=11 // pred_fallthru
          _
        // Predicated region
        $region45: #{forward.1} parent=11 // pred_check
          %p580 = pneg %p230
        $region46: #{forward.1} parent=11 // pred_check_branch
          %582 = sbr.rel (%p580) target = $region48
        $region47: #{forward.1} parent=11 // pred_region
          %s584 = ssub.s32 32, 32
          %585 = vsyncadd [#allocation8], %s584
          %s587 = sshll.u32 [#allocation9], 4
          %s588 = int_to_ptr.vmem [resolvable:$true] %s587
          %590 = dma.hbm_to_vmem [thread:$0]  %s8, 32, %s588, [#allocation8]
        $region48: #{forward.1} parent=11 // pred_fallthru
          _
        // Predicated region
        $region49: #{forward.1} parent=11 // pred_check
          %p591 = pneg %p251
        $region50: #{forward.1} parent=11 // pred_check_branch
          %593 = sbr.rel (%p591) target = $region52
        $region51: #{forward.1} parent=11 // pred_region
          %s595 = ssub.s32 4096, 4096
          %596 = vsyncadd [#allocation11], %s595
          %s597 = sshll.u32 [#allocation10], 4
          %s598 = int_to_ptr.vmem [resolvable:$true] %s597
          %603 = dma.hbm_to_vmem [thread:$0]  %s9, 4096, %s598, [#allocation11], 128, 128, 8
        $region52: #{forward.1} parent=11 // pred_fallthru
          _
        // Predicated region
        $region53: #{forward.1} parent=11 // pred_check
          %p604 = pneg %p272
        $region54: #{forward.1} parent=11 // pred_check_branch
          %606 = sbr.rel (%p604) target = $region56
        $region55: #{forward.1} parent=11 // pred_region
          %s608 = ssub.s32 32, 32
          %609 = vsyncadd [#allocation11], %s608
          %s611 = sshll.u32 [#allocation12], 4
          %s612 = int_to_ptr.vmem [resolvable:$true] %s611
          %614 = dma.hbm_to_vmem [thread:$0]  %s10, 32, %s612, [#allocation11]
        $region56: #{forward.1} parent=11 // pred_fallthru
          _
        // Predicated region
        $region57: #{forward.1} parent=11 // pred_check
          %p615 = pneg %p397
        $region58: #{forward.1} parent=11 // pred_check_branch
          %617 = sbr.rel (%p615) target = $region60
        $region59: #{forward.1} parent=11 // pred_region
          %s619 = ssub.s32 2048, 2048
          %620 = vsyncadd [#allocation20], %s619
          %s621 = sshll.u32 [#allocation19], 4
          %s622 = int_to_ptr.vmem [resolvable:$true] %s621
          %627 = dma.hbm_to_vmem [thread:$0]  %s15, 2048, %s622, [#allocation20], 64, 64, 4
        $region60: #{forward.1} parent=11 // pred_fallthru
          _
        // Predicated region
        $region61: #{forward.1} parent=11 // pred_check
          %p628 = pneg %p418
        $region62: #{forward.1} parent=11 // pred_check_branch
          %630 = sbr.rel (%p628) target = $region64
        $region63: #{forward.1} parent=11 // pred_region
          %s632 = ssub.s32 2048, 2048
          %633 = vsyncadd [#allocation20], %s632
          %s634 = sshll.u32 [#allocation21], 4
          %s635 = int_to_ptr.vmem [resolvable:$true] %s634
          %640 = dma.hbm_to_vmem [thread:$0]  %s16, 2048, %s635, [#allocation20], 64, 64, 4
        $region64: #{forward.1} parent=11 // pred_fallthru
          _
        // Predicated region
        $region65: #{forward.1} parent=11 // pred_check
          %p641 = pneg %p439
        $region66: #{forward.1} parent=11 // pred_check_branch
          %643 = sbr.rel (%p641) target = $region68
        $region67: #{forward.1} parent=11 // pred_region
          _
        $region68: #{forward.1} parent=11 // pred_fallthru
          _
        // Predicated region
        $region69: #{forward.1} parent=11 // pred_check
          %p644 = pneg %p460
        $region70: #{forward.1} parent=11 // pred_check_branch
          %646 = sbr.rel (%p644) target = $region72
        $region71: #{forward.1} parent=11 // pred_region
          %s648 = ssub.s32 1024, 1024
          %649 = vsyncadd [#allocation23], %s648
          %s650 = sshll.u32 [#allocation22], 4
          %s651 = int_to_ptr.vmem [resolvable:$true] %s650
          %656 = dma.hbm_to_vmem [thread:$0]  %s18, 1024, %s651, [#allocation23], 64, 64, 4
        $region72: #{forward.1} parent=11 // pred_fallthru
          _
        // Predicated region
        $region73: #{forward.1} parent=11 // pred_check
          %p657 = pneg %p481
        $region74: #{forward.1} parent=11 // pred_check_branch
          %659 = sbr.rel (%p657) target = $region76
        $region75: #{forward.1} parent=11 // pred_region
          %s661 = ssub.s32 16, 16
          %662 = vsyncadd [#allocation23], %s661
          %s664 = sshll.u32 [#allocation24], 4
          %s665 = int_to_ptr.vmem [resolvable:$true] %s664
          %667 = dma.hbm_to_vmem [thread:$0]  %s19, 16, %s665, [#allocation23]
        $region76: #{forward.1} parent=11 // pred_fallthru
          _
      $region12: #{forward.1} parent=5 // pred_fallthru
        _
      %p668 = scmp.lt.s32.totalorder %s41, 3
      // Predicated region
      $region77: #{forward.1} parent=5 // pred_check
        %p669 = pneg %p668
      $region78: #{forward.1} parent=5 // pred_check_branch
        %671 = sbr.rel (%p669) target = $region80
      $region79: #{forward.1} parent=5 // pred_region
        // Predicated region
        $region81: #{forward.1} parent=79 // pred_check
          %p672 = pneg %p292
        $region82: #{forward.1} parent=79 // pred_check_branch
          %674 = sbr.rel (%p672) target = $region84
        $region83: #{forward.1} parent=79 // pred_region
          %s675 = sand.u32 %s41, 1
          %s676 = scalar_lea.sflag [#allocation14], %s675
          %s677 = sand.u32 %s282, 1
          %s678 = smul.addr %s677, 256
          %s679 = scalar_lea.vmem [#allocation13], %s678
          %s681 = ssub.s32 4096, 4096
          %682 = vsyncadd %s676, %s681
          %s683 = smul.addr %s41, 64
          %s684 = smul.addr %s683, 64
          %s685 = scalar_lea.hbm %s11, %s684
          %s686 = sshll.u32 %s679, 4
          %s687 = int_to_ptr.vmem [resolvable:$true] %s686
          %692 = dma.hbm_to_vmem [thread:$0]  %s685, 4096, %s687, %s676, 128, 128, 8
        $region84: #{forward.1} parent=79 // pred_fallthru
          _
        // Predicated region
        $region85: #{forward.1} parent=79 // pred_check
          %p693 = pneg %p318
        $region86: #{forward.1} parent=79 // pred_check_branch
          %695 = sbr.rel (%p693) target = $region88
        $region87: #{forward.1} parent=79 // pred_region
          %s696 = sand.u32 %s41, 1
          %s697 = scalar_lea.sflag [#allocation14], %s696
          %s698 = sand.u32 %s308, 1
          %s699 = smul.addr %s698, 2
          %s700 = scalar_lea.vmem [#allocation15], %s699
          %s702 = ssub.s32 32, 32
          %703 = vsyncadd %s697, %s702
          %s704 = smul.addr %s41, 2
          %s705 = smul.addr %s704, 16
          %s706 = scalar_lea.hbm %s12, %s705
          %s708 = sshll.u32 %s700, 4
          %s709 = int_to_ptr.vmem [resolvable:$true] %s708
          %711 = dma.hbm_to_vmem [thread:$0]  %s706, 32, %s709, %s697
        $region88: #{forward.1} parent=79 // pred_fallthru
          _
        // Predicated region
        $region89: #{forward.1} parent=79 // pred_check
          %p712 = pneg %p344
        $region90: #{forward.1} parent=79 // pred_check_branch
          %714 = sbr.rel (%p712) target = $region92
        $region91: #{forward.1} parent=79 // pred_region
          %s715 = sand.u32 %s41, 1
          %s716 = scalar_lea.sflag [#allocation17], %s715
          %s717 = sand.u32 %s334, 1
          %s718 = smul.addr %s717, 256
          %s719 = scalar_lea.vmem [#allocation16], %s718
          %s721 = ssub.s32 4096, 4096
          %722 = vsyncadd %s716, %s721
          %s723 = smul.addr %s41, 64
          %s724 = smul.addr %s723, 64
          %s725 = scalar_lea.hbm %s13, %s724
          %s726 = sshll.u32 %s719, 4
          %s727 = int_to_ptr.vmem [resolvable:$true] %s726
          %732 = dma.hbm_to_vmem [thread:$0]  %s725, 4096, %s727, %s716, 128, 128, 8
        $region92: #{forward.1} parent=79 // pred_fallthru
          _
        // Predicated region
        $region93: #{forward.1} parent=79 // pred_check
          %p733 = pneg %p370
        $region94: #{forward.1} parent=79 // pred_check_branch
          %735 = sbr.rel (%p733) target = $region96
        $region95: #{forward.1} parent=79 // pred_region
          %s736 = sand.u32 %s41, 1
          %s737 = scalar_lea.sflag [#allocation17], %s736
          %s738 = sand.u32 %s360, 1
          %s739 = smul.addr %s738, 2
          %s740 = scalar_lea.vmem [#allocation18], %s739
          %s742 = ssub.s32 32, 32
          %743 = vsyncadd %s737, %s742
          %s744 = smul.addr %s41, 2
          %s745 = smul.addr %s744, 16
          %s746 = scalar_lea.hbm %s14, %s745
          %s748 = sshll.u32 %s740, 4
          %s749 = int_to_ptr.vmem [resolvable:$true] %s748
          %751 = dma.hbm_to_vmem [thread:$0]  %s746, 32, %s749, %s737
        $region96: #{forward.1} parent=79 // pred_fallthru
          _
      $region80: #{forward.1} parent=5 // pred_fallthru
        _
      %p752 = scmp.le.s32.totalorder 1, %s41
      %p753 = scmp.lt.s32.totalorder %s41, 4
      %p754 = pnand %p752, %p753
      %p755 = pneg %p754
      // Predicated region
      $region97: #{forward.1} parent=5 // pred_check
        _
      $region98: #{forward.1} parent=5 // pred_check_branch
        %757 = sbr.rel (%p754) target = $region100
      $region99: #{forward.1} parent=5 // pred_region
        %s758 = ssub.s32 %s41, 1
        // Predicated region
        $region101: #{forward.1} parent=99 // pred_check
          %p759 = pneg %p62
        $region102: #{forward.1} parent=99 // pred_check_branch
          %761 = sbr.rel (%p759) target = $region104
        $region103: #{forward.1} parent=99 // pred_region
          %762 = dma.done [#allocation5], 64
        $region104: #{forward.1} parent=99 // pred_fallthru
          _
        // Predicated region
        $region105: #{forward.1} parent=99 // pred_check
          %p763 = pneg %p209
        $region106: #{forward.1} parent=99 // pred_check_branch
          %765 = sbr.rel (%p763) target = $region108
        $region107: #{forward.1} parent=99 // pred_region
          %766 = dma.done [#allocation8], 4096
        $region108: #{forward.1} parent=99 // pred_fallthru
          _
        // Predicated region
        $region109: #{forward.1} parent=99 // pred_check
          %p767 = pneg %p230
        $region110: #{forward.1} parent=99 // pred_check_branch
          %769 = sbr.rel (%p767) target = $region112
        $region111: #{forward.1} parent=99 // pred_region
          %770 = dma.done [#allocation8], 32
        $region112: #{forward.1} parent=99 // pred_fallthru
          _
        // Predicated region
        $region113: #{forward.1} parent=99 // pred_check
          %p771 = pneg %p251
        $region114: #{forward.1} parent=99 // pred_check_branch
          %773 = sbr.rel (%p771) target = $region116
        $region115: #{forward.1} parent=99 // pred_region
          %774 = dma.done [#allocation11], 4096
        $region116: #{forward.1} parent=99 // pred_fallthru
          _
        // Predicated region
        $region117: #{forward.1} parent=99 // pred_check
          %p775 = pneg %p272
        $region118: #{forward.1} parent=99 // pred_check_branch
          %777 = sbr.rel (%p775) target = $region120
        $region119: #{forward.1} parent=99 // pred_region
          %778 = dma.done [#allocation11], 32
        $region120: #{forward.1} parent=99 // pred_fallthru
          _
        %s779 = sand.u32 %s46, 1
        %s780 = scalar_lea.sflag [#allocation14], %s779
        %s781 = sand.u32 %s285, 1
        %s782 = smul.addr %s781, 256
        %s783 = scalar_lea.vmem [#allocation13], %s782
        // Predicated region
        $region121: #{forward.1} parent=99 // pred_check
          %p784 = pneg %p298
        $region122: #{forward.1} parent=99 // pred_check_branch
          %786 = sbr.rel (%p784) target = $region124
        $region123: #{forward.1} parent=99 // pred_region
          %787 = dma.done %s780, 4096
        $region124: #{forward.1} parent=99 // pred_fallthru
          _
        %s788 = sand.u32 %s46, 1
        %s789 = scalar_lea.sflag [#allocation14], %s788
        %s790 = sand.u32 %s311, 1
        %s791 = smul.addr %s790, 2
        %s792 = scalar_lea.vmem [#allocation15], %s791
        // Predicated region
        $region125: #{forward.1} parent=99 // pred_check
          %p793 = pneg %p324
        $region126: #{forward.1} parent=99 // pred_check_branch
          %795 = sbr.rel (%p793) target = $region128
        $region127: #{forward.1} parent=99 // pred_region
          %796 = dma.done %s789, 32
        $region128: #{forward.1} parent=99 // pred_fallthru
          _
        %s797 = sand.u32 %s46, 1
        %s798 = scalar_lea.sflag [#allocation17], %s797
        %s799 = sand.u32 %s337, 1
        %s800 = smul.addr %s799, 256
        %s801 = scalar_lea.vmem [#allocation16], %s800
        // Predicated region
        $region129: #{forward.1} parent=99 // pred_check
          %p802 = pneg %p350
        $region130: #{forward.1} parent=99 // pred_check_branch
          %804 = sbr.rel (%p802) target = $region132
        $region131: #{forward.1} parent=99 // pred_region
          %805 = dma.done %s798, 4096
        $region132: #{forward.1} parent=99 // pred_fallthru
          _
        %s806 = sand.u32 %s46, 1
        %s807 = scalar_lea.sflag [#allocation17], %s806
        %s808 = sand.u32 %s363, 1
        %s809 = smul.addr %s808, 2
        %s810 = scalar_lea.vmem [#allocation18], %s809
        // Predicated region
        $region133: #{forward.1} parent=99 // pred_check
          %p811 = pneg %p376
        $region134: #{forward.1} parent=99 // pred_check_branch
          %813 = sbr.rel (%p811) target = $region136
        $region135: #{forward.1} parent=99 // pred_region
          %814 = dma.done %s807, 32
        $region136: #{forward.1} parent=99 // pred_fallthru
          _
        // Predicated region
        $region137: #{forward.1} parent=99 // pred_check
          %p815 = pneg %p397
        $region138: #{forward.1} parent=99 // pred_check_branch
          %817 = sbr.rel (%p815) target = $region140
        $region139: #{forward.1} parent=99 // pred_region
          %818 = dma.done [#allocation20], 2048
        $region140: #{forward.1} parent=99 // pred_fallthru
          _
        // Predicated region
        $region141: #{forward.1} parent=99 // pred_check
          %p819 = pneg %p418
        $region142: #{forward.1} parent=99 // pred_check_branch
          %821 = sbr.rel (%p819) target = $region144
        $region143: #{forward.1} parent=99 // pred_region
          %822 = dma.done [#allocation20], 2048
        $region144: #{forward.1} parent=99 // pred_fallthru
          _
        // Predicated region
        $region145: #{forward.1} parent=99 // pred_check
          %p823 = pneg %p460
        $region146: #{forward.1} parent=99 // pred_check_branch
          %825 = sbr.rel (%p823) target = $region148
        $region147: #{forward.1} parent=99 // pred_region
          %826 = dma.done [#allocation23], 1024
        $region148: #{forward.1} parent=99 // pred_fallthru
          _
        // Predicated region
        $region149: #{forward.1} parent=99 // pred_check
          %p827 = pneg %p481
        $region150: #{forward.1} parent=99 // pred_check_branch
          %829 = sbr.rel (%p827) target = $region152
        $region151: #{forward.1} parent=99 // pred_region
          %830 = dma.done [#allocation23], 16
        $region152: #{forward.1} parent=99 // pred_fallthru
          _
        %p831 = pneg %p62
        %p832 = pneg %p59
        %p833 = pneg %p83
        %p834 = pneg %p80
        %p835 = pneg %p104
        %p836 = pneg %p101
        %p837 = pneg %p125
        %p838 = pneg %p122
        %p839 = pneg %p146
        %p840 = pneg %p143
        %p841 = pneg %p167
        %p842 = pneg %p164
        %p843 = pneg %p188
        %p844 = pneg %p185
        %p845 = pneg %p209
        %p846 = pneg %p206
        %p847 = pneg %p230
        %p848 = pneg %p227
        %p849 = pneg %p251
        %p850 = pneg %p248
        %p851 = pneg %p272
        %p852 = pneg %p269
        %s853 = sand.u32 %s46, 1
        %s854 = scalar_lea.sflag [#allocation14], %s853
        %s855 = sand.u32 %s285, 1
        %s856 = smul.addr %s855, 256
        %s857 = scalar_lea.vmem [#allocation13], %s856
        %p858 = pneg %p298
        %p859 = pneg %p295
        %s860 = sand.u32 %s46, 1
        %s861 = scalar_lea.sflag [#allocation14], %s860
        %s862 = sand.u32 %s311, 1
        %s863 = smul.addr %s862, 2
        %s864 = scalar_lea.vmem [#allocation15], %s863
        %p865 = pneg %p324
        %p866 = pneg %p321
        %s867 = sand.u32 %s46, 1
        %s868 = scalar_lea.sflag [#allocation17], %s867
        %s869 = sand.u32 %s337, 1
        %s870 = smul.addr %s869, 256
        %s871 = scalar_lea.vmem [#allocation16], %s870
        %p872 = pneg %p350
        %p873 = pneg %p347
        %s874 = sand.u32 %s46, 1
        %s875 = scalar_lea.sflag [#allocation17], %s874
        %s876 = sand.u32 %s363, 1
        %s877 = smul.addr %s876, 2
        %s878 = scalar_lea.vmem [#allocation18], %s877
        %p879 = pneg %p376
        %p880 = pneg %p373
        %p881 = pneg %p397
        %p882 = pneg %p394
        %p883 = pneg %p418
        %p884 = pneg %p415
        %p885 = pneg %p439
        %p886 = pneg %p436
        %p887 = pneg %p460
        %p888 = pneg %p457
        %p889 = pneg %p481
        %p890 = pneg %p478
        %p891 = pneg %p502
        %p892 = pneg %p499
        %p893 = pneg %p523
        %p894 = pneg %p520
        %p896 = scmp.eq.s32.totalorder %s46, 2
        %p897 = scmp.eq.s32.totalorder %s46, 0
        // Predicated region
        $region153: #{forward.1} parent=99 // pred_check
          %p898 = pneg %p897
        $region154: #{forward.1} parent=99 // pred_check_branch
          %900 = sbr.rel (%p898) target = $region156
        $region155: #{forward.1} parent=99 // pred_region
          %v901 = vld [vmem:[#allocation4] sm:$0xf]
          %v904 = vunpack.c.l.s4 1983009808
          %v905 = vunpack.c.0.s8 %v904
          %v906 = vlaneseq
          %v907 = vshrl.u32 %v906, 7
          %v908 = vsub.s32 %v905, %v907
          %v909 = vrot.slane %v901, %v908
          %v910 = vcombine.high %v909, %v909
          %v913 = vpack.c.bf16 %v909, %v909
          %v914 = vpack.c.bf16 %v910, %v910
          %v915 = vld [vmem:[#allocation7] sm:$0xff]
          %v916 = vld [vmem:[#allocation7 + $0x8] sm:$0xff]
          %v917 = vld [vmem:[#allocation7 + $0x10] sm:$0xff]
          %v918 = vld [vmem:[#allocation7 + $0x18] sm:$0xff]
          %v919 = vld [vmem:[#allocation7 + $0x20] sm:$0xff]
          %v920 = vld [vmem:[#allocation7 + $0x28] sm:$0xff]
          %v921 = vld [vmem:[#allocation7 + $0x30] sm:$0xff]
          %v922 = vld [vmem:[#allocation7 + $0x38] sm:$0xff]
          %v923 = vld [vmem:[#allocation7 + $0x40] sm:$0xff]
          %v924 = vld [vmem:[#allocation7 + $0x48] sm:$0xff]
          %v925 = vld [vmem:[#allocation7 + $0x50] sm:$0xff]
          %v926 = vld [vmem:[#allocation7 + $0x58] sm:$0xff]
          %v927 = vld [vmem:[#allocation7 + $0x60] sm:$0xff]
          %v928 = vld [vmem:[#allocation7 + $0x68] sm:$0xff]
          %v929 = vld [vmem:[#allocation7 + $0x70] sm:$0xff]
          %v930 = vld [vmem:[#allocation7 + $0x78] sm:$0xff]
          %v931 = vld [vmem:[#allocation7 + $0x80] sm:$0xff]
          %v932 = vld [vmem:[#allocation7 + $0x88] sm:$0xff]
          %v933 = vld [vmem:[#allocation7 + $0x90] sm:$0xff]
          %v934 = vld [vmem:[#allocation7 + $0x98] sm:$0xff]
          %v935 = vld [vmem:[#allocation7 + $0xa0] sm:$0xff]
          %v936 = vld [vmem:[#allocation7 + $0xa8] sm:$0xff]
          %v937 = vld [vmem:[#allocation7 + $0xb0] sm:$0xff]
          %v938 = vld [vmem:[#allocation7 + $0xb8] sm:$0xff]
          %v939 = vld [vmem:[#allocation7 + $0xc0] sm:$0xff]
          %v940 = vld [vmem:[#allocation7 + $0xc8] sm:$0xff]
          %v941 = vld [vmem:[#allocation7 + $0xd0] sm:$0xff]
          %v942 = vld [vmem:[#allocation7 + $0xd8] sm:$0xff]
          %v943 = vld [vmem:[#allocation7 + $0xe0] sm:$0xff]
          %v944 = vld [vmem:[#allocation7 + $0xe8] sm:$0xff]
          %v945 = vld [vmem:[#allocation7 + $0xf0] sm:$0xff]
          %v946 = vld [vmem:[#allocation7 + $0xf8] sm:$0xff]
          %v947 = vld [vmem:[#allocation9] sm:$0x3]
          %v949 = vlaneseq
          %v950 = vshrl.u32 %v949, 7
          %v951 = vsub.s32 0, %v950
          %v952 = vrot.slane %v947, %v951
          %v953 = vlaneseq
          %v954 = vshrl.u32 %v953, 7
          %v955 = vsub.s32 1, %v954
          %v956 = vrot.slane %v947, %v955
          %v991 = vunpack.c.l.b16 %v915
          %v992 = vunpack.c.h.b16 %v915
          %v993 = vunpack.c.l.b16 %v916
          %v994 = vunpack.c.h.b16 %v916
          %v995 = vunpack.c.l.b16 %v917
          %v996 = vunpack.c.h.b16 %v917
          %v997 = vunpack.c.l.b16 %v918
          %v998 = vunpack.c.h.b16 %v918
          %v999 = vunpack.c.l.b16 %v919
          %v1000 = vunpack.c.h.b16 %v919
          %v1001 = vunpack.c.l.b16 %v920
          %v1002 = vunpack.c.h.b16 %v920
          %v1003 = vunpack.c.l.b16 %v921
          %v1004 = vunpack.c.h.b16 %v921
          %v1005 = vunpack.c.l.b16 %v922
          %v1006 = vunpack.c.h.b16 %v922
          %v1007 = vunpack.c.l.b16 %v923
          %v1008 = vunpack.c.h.b16 %v923
          %v1009 = vunpack.c.l.b16 %v924
          %v1010 = vunpack.c.h.b16 %v924
          %v1011 = vunpack.c.l.b16 %v925
          %v1012 = vunpack.c.h.b16 %v925
          %v1013 = vunpack.c.l.b16 %v926
          %v1014 = vunpack.c.h.b16 %v926
          %v1015 = vunpack.c.l.b16 %v927
          %v1016 = vunpack.c.h.b16 %v927
          %v1017 = vunpack.c.l.b16 %v928
          %v1018 = vunpack.c.h.b16 %v928
          %v1019 = vunpack.c.l.b16 %v929
          %v1020 = vunpack.c.h.b16 %v929
          %v1021 = vunpack.c.l.b16 %v930
          %v1022 = vunpack.c.h.b16 %v930
          %v1023 = vunpack.c.l.b16 %v931
          %v1024 = vunpack.c.h.b16 %v931
          %v1025 = vunpack.c.l.b16 %v932
          %v1026 = vunpack.c.h.b16 %v932
          %v1027 = vunpack.c.l.b16 %v933
          %v1028 = vunpack.c.h.b16 %v933
          %v1029 = vunpack.c.l.b16 %v934
          %v1030 = vunpack.c.h.b16 %v934
          %v1031 = vunpack.c.l.b16 %v935
          %v1032 = vunpack.c.h.b16 %v935
          %v1033 = vunpack.c.l.b16 %v936
          %v1034 = vunpack.c.h.b16 %v936
          %v1035 = vunpack.c.l.b16 %v937
          %v1036 = vunpack.c.h.b16 %v937
          %v1037 = vunpack.c.l.b16 %v938
          %v1038 = vunpack.c.h.b16 %v938
          %v1039 = vunpack.c.l.b16 %v939
          %v1040 = vunpack.c.h.b16 %v939
          %v1041 = vunpack.c.l.b16 %v940
          %v1042 = vunpack.c.h.b16 %v940
          %v1043 = vunpack.c.l.b16 %v941
          %v1044 = vunpack.c.h.b16 %v941
          %v1045 = vunpack.c.l.b16 %v942
          %v1046 = vunpack.c.h.b16 %v942
          %v1047 = vunpack.c.l.b16 %v943
          %v1048 = vunpack.c.h.b16 %v943
          %v1049 = vunpack.c.l.b16 %v944
          %v1050 = vunpack.c.h.b16 %v944
          %v1051 = vunpack.c.l.b16 %v945
          %v1052 = vunpack.c.h.b16 %v945
          %v1053 = vunpack.c.l.b16 %v946
          %v1054 = vunpack.c.h.b16 %v946
          %v1055 = vpack.c.b16 %v993, %v991
          %v1056 = vpack.c.b16 %v994, %v992
          %v1057 = vpack.c.b16 %v997, %v995
          %v1058 = vpack.c.b16 %v998, %v996
          %v1059 = vpack.c.b16 %v1001, %v999
          %v1060 = vpack.c.b16 %v1002, %v1000
          %v1061 = vpack.c.b16 %v1005, %v1003
          %v1062 = vpack.c.b16 %v1006, %v1004
          %v1063 = vpack.c.b16 %v1009, %v1007
          %v1064 = vpack.c.b16 %v1010, %v1008
          %v1065 = vpack.c.b16 %v1013, %v1011
          %v1066 = vpack.c.b16 %v1014, %v1012
          %v1067 = vpack.c.b16 %v1017, %v1015
          %v1068 = vpack.c.b16 %v1018, %v1016
          %v1069 = vpack.c.b16 %v1021, %v1019
          %v1070 = vpack.c.b16 %v1022, %v1020
          %v1071 = vpack.c.b16 %v1025, %v1023
          %v1072 = vpack.c.b16 %v1026, %v1024
          %v1073 = vpack.c.b16 %v1029, %v1027
          %v1074 = vpack.c.b16 %v1030, %v1028
          %v1075 = vpack.c.b16 %v1033, %v1031
          %v1076 = vpack.c.b16 %v1034, %v1032
          %v1077 = vpack.c.b16 %v1037, %v1035
          %v1078 = vpack.c.b16 %v1038, %v1036
          %v1079 = vpack.c.b16 %v1041, %v1039
          %v1080 = vpack.c.b16 %v1042, %v1040
          %v1081 = vpack.c.b16 %v1045, %v1043
          %v1082 = vpack.c.b16 %v1046, %v1044
          %v1083 = vpack.c.b16 %v1049, %v1047
          %v1084 = vpack.c.b16 %v1050, %v1048
          %v1085 = vpack.c.b16 %v1053, %v1051
          %v1086 = vpack.c.b16 %v1054, %v1052
          %1119 = vmatprep.subr.bf16.mxu0 %v1070
          %1120 = vmatpush1.bf16.msra.mxu0 %v1069
          %1121 = vmatprep.subr.bf16.mxu0 %v1068
          %1122 = vmatpush1.bf16.msra.mxu0 %v1067
          %1123 = vmatprep.subr.bf16.mxu0 %v1066
          %1124 = vmatpush1.bf16.msra.mxu0 %v1065
          %1125 = vmatprep.subr.bf16.mxu0 %v1064
          %1126 = vmatpush1.bf16.msra.mxu0 %v1063
          %1127 = vmatprep.subr.bf16.mxu0 %v1062
          %1128 = vmatpush1.bf16.msra.mxu0 %v1061
          %1129 = vmatprep.subr.bf16.mxu0 %v1060
          %1130 = vmatpush1.bf16.msra.mxu0 %v1059
          %1131 = vmatprep.subr.bf16.mxu0 %v1058
          %1132 = vmatpush1.bf16.msra.mxu0 %v1057
          %1133 = vmatprep.subr.bf16.mxu0 %v1056
          %1134 = vmatpush1.bf16.msra.mxu0 %v1055
          %1135 = vmatprep.subr.bf16.mxu0 %v1086
          %1136 = vmatpush2.bf16.msra.mxu0 %v1085
          %1137 = vmatprep.subr.bf16.mxu0 %v1084
          %1138 = vmatpush2.bf16.msra.mxu0 %v1083
          %1139 = vmatprep.subr.bf16.mxu0 %v1082
          %1140 = vmatpush2.bf16.msra.mxu0 %v1081
          %1141 = vmatprep.subr.bf16.mxu0 %v1080
          %1142 = vmatpush2.bf16.msra.mxu0 %v1079
          %1143 = vmatprep.subr.bf16.mxu0 %v1078
          %1144 = vmatpush2.bf16.msra.mxu0 %v1077
          %1145 = vmatprep.subr.bf16.mxu0 %v1076
          %1146 = vmatpush2.bf16.msra.mxu0 %v1075
          %1147 = vmatprep.subr.bf16.mxu0 %v1074
          %1148 = vmatpush2.bf16.msra.mxu0 %v1073
          %1149 = vmatprep.subr.bf16.mxu0 %v1072
          %1150 = vmatpush2.bf16.msra.mxu0 %v1071
          %1151 = vmatprep.mubr.bf16.mxu0 %v914
          %1152 = vmatmul.mubr.bf16.gmra.mxu0 %v913
          %v1153 = vpop.f32.mrf.mxu0
          %v1154 = vadd.f32 %v952, %v1153
          %v1155 = vpop.f32.mrf.mxu0
          %v1156 = vadd.f32 %v956, %v1155
          %v1157 = vpop.f32.mrf.mxu0
          %v1158 = vpop.f32.mrf.mxu0
          %1159 = vdwg.mxu0
          %v1160 = vld [vmem:[%s1] sm:$0x3f]
          %v1161 = vld [vmem:[%s1 + $0x8] sm:$0x3f]
          %v1162 = vpack.c.bf16 %v1160, %v1160
          %v1163 = vpack.c.bf16 %v1161, %v1161
          %v1164 = vld [vmem:[#allocation10] sm:$0xff]
          %v1165 = vld [vmem:[#allocation10 + $0x8] sm:$0xff]
          %v1166 = vld [vmem:[#allocation10 + $0x10] sm:$0xff]
          %v1167 = vld [vmem:[#allocation10 + $0x18] sm:$0xff]
          %v1168 = vld [vmem:[#allocation10 + $0x20] sm:$0xff]
          %v1169 = vld [vmem:[#allocation10 + $0x28] sm:$0xff]
          %v1170 = vld [vmem:[#allocation10 + $0x30] sm:$0xff]
          %v1171 = vld [vmem:[#allocation10 + $0x38] sm:$0xff]
          %v1172 = vld [vmem:[#allocation10 + $0x40] sm:$0xff]
          %v1173 = vld [vmem:[#allocation10 + $0x48] sm:$0xff]
          %v1174 = vld [vmem:[#allocation10 + $0x50] sm:$0xff]
          %v1175 = vld [vmem:[#allocation10 + $0x58] sm:$0xff]
          %v1176 = vld [vmem:[#allocation10 + $0x60] sm:$0xff]
          %v1177 = vld [vmem:[#allocation10 + $0x68] sm:$0xff]
          %v1178 = vld [vmem:[#allocation10 + $0x70] sm:$0xff]
          %v1179 = vld [vmem:[#allocation10 + $0x78] sm:$0xff]
          %v1180 = vld [vmem:[#allocation10 + $0x80] sm:$0xff]
          %v1181 = vld [vmem:[#allocation10 + $0x88] sm:$0xff]
          %v1182 = vld [vmem:[#allocation10 + $0x90] sm:$0xff]
          %v1183 = vld [vmem:[#allocation10 + $0x98] sm:$0xff]
          %v1184 = vld [vmem:[#allocation10 + $0xa0] sm:$0xff]
          %v1185 = vld [vmem:[#allocation10 + $0xa8] sm:$0xff]
          %v1186 = vld [vmem:[#allocation10 + $0xb0] sm:$0xff]
          %v1187 = vld [vmem:[#allocation10 + $0xb8] sm:$0xff]
          %v1188 = vld [vmem:[#allocation10 + $0xc0] sm:$0xff]
          %v1189 = vld [vmem:[#allocation10 + $0xc8] sm:$0xff]
          %v1190 = vld [vmem:[#allocation10 + $0xd0] sm:$0xff]
          %v1191 = vld [vmem:[#allocation10 + $0xd8] sm:$0xff]
          %v1192 = vld [vmem:[#allocation10 + $0xe0] sm:$0xff]
          %v1193 = vld [vmem:[#allocation10 + $0xe8] sm:$0xff]
          %v1194 = vld [vmem:[#allocation10 + $0xf0] sm:$0xff]
          %v1195 = vld [vmem:[#allocation10 + $0xf8] sm:$0xff]
          %v1196 = vld [vmem:[#allocation12] sm:$0x3]
          %v1198 = vlaneseq
          %v1199 = vshrl.u32 %v1198, 7
          %v1200 = vsub.s32 0, %v1199
          %v1201 = vrot.slane %v1196, %v1200
          %v1202 = vlaneseq
          %v1203 = vshrl.u32 %v1202, 7
          %v1204 = vsub.s32 1, %v1203
          %v1205 = vrot.slane %v1196, %v1204
          %v1240 = vunpack.c.l.b16 %v1164
          %v1241 = vunpack.c.h.b16 %v1164
          %v1242 = vunpack.c.l.b16 %v1165
          %v1243 = vunpack.c.h.b16 %v1165
          %v1244 = vunpack.c.l.b16 %v1166
          %v1245 = vunpack.c.h.b16 %v1166
          %v1246 = vunpack.c.l.b16 %v1167
          %v1247 = vunpack.c.h.b16 %v1167
          %v1248 = vunpack.c.l.b16 %v1168
          %v1249 = vunpack.c.h.b16 %v1168
          %v1250 = vunpack.c.l.b16 %v1169
          %v1251 = vunpack.c.h.b16 %v1169
          %v1252 = vunpack.c.l.b16 %v1170
          %v1253 = vunpack.c.h.b16 %v1170
          %v1254 = vunpack.c.l.b16 %v1171
          %v1255 = vunpack.c.h.b16 %v1171
          %v1256 = vunpack.c.l.b16 %v1172
          %v1257 = vunpack.c.h.b16 %v1172
          %v1258 = vunpack.c.l.b16 %v1173
          %v1259 = vunpack.c.h.b16 %v1173
          %v1260 = vunpack.c.l.b16 %v1174
          %v1261 = vunpack.c.h.b16 %v1174
          %v1262 = vunpack.c.l.b16 %v1175
          %v1263 = vunpack.c.h.b16 %v1175
          %v1264 = vunpack.c.l.b16 %v1176
          %v1265 = vunpack.c.h.b16 %v1176
          %v1266 = vunpack.c.l.b16 %v1177
          %v1267 = vunpack.c.h.b16 %v1177
          %v1268 = vunpack.c.l.b16 %v1178
          %v1269 = vunpack.c.h.b16 %v1178
          %v1270 = vunpack.c.l.b16 %v1179
          %v1271 = vunpack.c.h.b16 %v1179
          %v1272 = vunpack.c.l.b16 %v1180
          %v1273 = vunpack.c.h.b16 %v1180
          %v1274 = vunpack.c.l.b16 %v1181
          %v1275 = vunpack.c.h.b16 %v1181
          %v1276 = vunpack.c.l.b16 %v1182
          %v1277 = vunpack.c.h.b16 %v1182
          %v1278 = vunpack.c.l.b16 %v1183
          %v1279 = vunpack.c.h.b16 %v1183
          %v1280 = vunpack.c.l.b16 %v1184
          %v1281 = vunpack.c.h.b16 %v1184
          %v1282 = vunpack.c.l.b16 %v1185
          %v1283 = vunpack.c.h.b16 %v1185
          %v1284 = vunpack.c.l.b16 %v1186
          %v1285 = vunpack.c.h.b16 %v1186
          %v1286 = vunpack.c.l.b16 %v1187
          %v1287 = vunpack.c.h.b16 %v1187
          %v1288 = vunpack.c.l.b16 %v1188
          %v1289 = vunpack.c.h.b16 %v1188
          %v1290 = vunpack.c.l.b16 %v1189
          %v1291 = vunpack.c.h.b16 %v1189
          %v1292 = vunpack.c.l.b16 %v1190
          %v1293 = vunpack.c.h.b16 %v1190
          %v1294 = vunpack.c.l.b16 %v1191
          %v1295 = vunpack.c.h.b16 %v1191
          %v1296 = vunpack.c.l.b16 %v1192
          %v1297 = vunpack.c.h.b16 %v1192
          %v1298 = vunpack.c.l.b16 %v1193
          %v1299 = vunpack.c.h.b16 %v1193
          %v1300 = vunpack.c.l.b16 %v1194
          %v1301 = vunpack.c.h.b16 %v1194
          %v1302 = vunpack.c.l.b16 %v1195
          %v1303 = vunpack.c.h.b16 %v1195
          %v1304 = vpack.c.b16 %v1242, %v1240
          %v1305 = vpack.c.b16 %v1243, %v1241
          %v1306 = vpack.c.b16 %v1246, %v1244
          %v1307 = vpack.c.b16 %v1247, %v1245
          %v1308 = vpack.c.b16 %v1250, %v1248
          %v1309 = vpack.c.b16 %v1251, %v1249
          %v1310 = vpack.c.b16 %v1254, %v1252
          %v1311 = vpack.c.b16 %v1255, %v1253
          %v1312 = vpack.c.b16 %v1258, %v1256
          %v1313 = vpack.c.b16 %v1259, %v1257
          %v1314 = vpack.c.b16 %v1262, %v1260
          %v1315 = vpack.c.b16 %v1263, %v1261
          %v1316 = vpack.c.b16 %v1266, %v1264
          %v1317 = vpack.c.b16 %v1267, %v1265
          %v1318 = vpack.c.b16 %v1270, %v1268
          %v1319 = vpack.c.b16 %v1271, %v1269
          %v1320 = vpack.c.b16 %v1274, %v1272
          %v1321 = vpack.c.b16 %v1275, %v1273
          %v1322 = vpack.c.b16 %v1278, %v1276
          %v1323 = vpack.c.b16 %v1279, %v1277
          %v1324 = vpack.c.b16 %v1282, %v1280
          %v1325 = vpack.c.b16 %v1283, %v1281
          %v1326 = vpack.c.b16 %v1286, %v1284
          %v1327 = vpack.c.b16 %v1287, %v1285
          %v1328 = vpack.c.b16 %v1290, %v1288
          %v1329 = vpack.c.b16 %v1291, %v1289
          %v1330 = vpack.c.b16 %v1294, %v1292
          %v1331 = vpack.c.b16 %v1295, %v1293
          %v1332 = vpack.c.b16 %v1298, %v1296
          %v1333 = vpack.c.b16 %v1299, %v1297
          %v1334 = vpack.c.b16 %v1302, %v1300
          %v1335 = vpack.c.b16 %v1303, %v1301
          %1368 = vmatprep.subr.bf16.mxu0 %v1319
          %1369 = vmatpush1.bf16.msra.mxu0 %v1318
          %1370 = vmatprep.subr.bf16.mxu0 %v1317
          %1371 = vmatpush1.bf16.msra.mxu0 %v1316
          %1372 = vmatprep.subr.bf16.mxu0 %v1315
          %1373 = vmatpush1.bf16.msra.mxu0 %v1314
          %1374 = vmatprep.subr.bf16.mxu0 %v1313
          %1375 = vmatpush1.bf16.msra.mxu0 %v1312
          %1376 = vmatprep.subr.bf16.mxu0 %v1311
          %1377 = vmatpush1.bf16.msra.mxu0 %v1310
          %1378 = vmatprep.subr.bf16.mxu0 %v1309
          %1379 = vmatpush1.bf16.msra.mxu0 %v1308
          %1380 = vmatprep.subr.bf16.mxu0 %v1307
          %1381 = vmatpush1.bf16.msra.mxu0 %v1306
          %1382 = vmatprep.subr.bf16.mxu0 %v1305
          %1383 = vmatpush1.bf16.msra.mxu0 %v1304
          %1384 = vmatprep.subr.bf16.mxu0 %v1335
          %1385 = vmatpush2.bf16.msra.mxu0 %v1334
          %1386 = vmatprep.subr.bf16.mxu0 %v1333
          %1387 = vmatpush2.bf16.msra.mxu0 %v1332
          %1388 = vmatprep.subr.bf16.mxu0 %v1331
          %1389 = vmatpush2.bf16.msra.mxu0 %v1330
          %1390 = vmatprep.subr.bf16.mxu0 %v1329
          %1391 = vmatpush2.bf16.msra.mxu0 %v1328
          %1392 = vmatprep.subr.bf16.mxu0 %v1327
          %1393 = vmatpush2.bf16.msra.mxu0 %v1326
          %1394 = vmatprep.subr.bf16.mxu0 %v1325
          %1395 = vmatpush2.bf16.msra.mxu0 %v1324
          %1396 = vmatprep.subr.bf16.mxu0 %v1323
          %1397 = vmatpush2.bf16.msra.mxu0 %v1322
          %1398 = vmatprep.subr.bf16.mxu0 %v1321
          %1399 = vmatpush2.bf16.msra.mxu0 %v1320
          %1400 = vmatprep.mubr.bf16.mxu0 %v1163
          %1401 = vmatmul.mubr.bf16.gmra.mxu0 %v1162
          %v1402 = vpop.f32.mrf.mxu0
          %v1403 = vadd.f32 %v1201, %v1402
          %v1404 = vpop.f32.mrf.mxu0
          %v1405 = vadd.f32 %v1205, %v1404
          %v1406 = vpop.f32.mrf.mxu0
          %v1407 = vpop.f32.mrf.mxu0
          %1408 = vdwg.mxu0
          %v1411 = vcombine.low %v1154, %v1156
          %v1413 = vunpack.c.l.s4 1983009808
          %v1414 = vunpack.c.0.s8 %v1413
          %v1415 = vlaneseq
          %v1416 = vshrl.u32 %v1415, 7
          %v1417 = vsub.s32 %v1414, %v1416
          %v1418 = vrot.slane %v1411, %v1417
          %1420 = vst [vmem:[#allocation3] sm:$0xf] %v1418
          %v1421 = vld [vmem:[%s2] sm:$0xff]
          %v1422 = vld [vmem:[%s3] sm:$0xff]
          %vm1423 = vcmask 48128
          %v1425 = vsel %vm1423, %v1422, 0
          %vm1427 = vcmask 1045504
          %v1429 = vsel %vm1427, %v1403, 0
          %v1432 = vsel %vm1427, %v1405, 0
          %1434 = vmatprep.subr.mxu0 0.0
          %1435 = vmatpush1.msra.mxu0 0.0
          %1436 = vmatprep.subr.mxu0 0.0
          %1437 = vmatpush1.msra.mxu0 0.0
          %1438 = vmatprep.subr.mxu0 0.0
          %1439 = vmatpush1.msra.mxu0 0.0
          %1440 = vmatprep.subr.mxu0 0.0
          %1441 = vmatpush1.msra.mxu0 0.0
          %1442 = vmatprep.subr.mxu0 0.0
          %1443 = vmatpush1.msra.mxu0 0.0
          %1444 = vmatprep.subr.mxu0 0.0
          %1445 = vmatpush1.msra.mxu0 0.0
          %1446 = vmatprep.subr.mxu0 0.0
          %1447 = vmatpush1.msra.mxu0 0.0
          %1448 = vmatprep.subr.mxu0 0.0
          %1449 = vmatpush1.msra.mxu0 0.0
          %1450 = vmatprep.subr.mxu0 0.0
          %1451 = vmatpush1.msra.mxu0 0.0
          %1452 = vmatprep.subr.mxu0 0.0
          %1453 = vmatpush1.msra.mxu0 0.0
          %1454 = vmatprep.subr.mxu0 0.0
          %1455 = vmatpush1.msra.mxu0 0.0
          %1456 = vmatprep.subr.mxu0 0.0
          %1457 = vmatpush1.msra.mxu0 0.0
          %1458 = vmatprep.subr.mxu0 0.0
          %1459 = vmatpush1.msra.mxu0 0.0
          %1460 = vmatprep.subr.mxu0 0.0
          %1461 = vmatpush1.msra.mxu0 0.0
          %1462 = vmatprep.subr.mxu0 0.0
          %1463 = vmatpush1.msra.mxu0 0.0
          %1464 = vmatprep.subr.mxu0 %v1432
          %1465 = vmatpush1.msra.mxu0 %v1429
          %1466 = vmatprep.subr.mxu0 0.0
          %1467 = vmatpush2.msra.mxu0 0.0
          %1468 = vmatprep.subr.mxu0 0.0
          %1469 = vmatpush2.msra.mxu0 0.0
          %1470 = vmatprep.subr.mxu0 0.0
          %1471 = vmatpush2.msra.mxu0 0.0
          %1472 = vmatprep.subr.mxu0 0.0
          %1473 = vmatpush2.msra.mxu0 0.0
          %1474 = vmatprep.subr.mxu0 0.0
          %1475 = vmatpush2.msra.mxu0 0.0
          %1476 = vmatprep.subr.mxu0 0.0
          %1477 = vmatpush2.msra.mxu0 0.0
          %1478 = vmatprep.subr.mxu0 0.0
          %1479 = vmatpush2.msra.mxu0 0.0
          %1480 = vmatprep.subr.mxu0 0.0
          %1481 = vmatpush2.msra.mxu0 0.0
          %1482 = vmatprep.subr.mxu0 0.0
          %1483 = vmatpush2.msra.mxu0 0.0
          %1484 = vmatprep.subr.mxu0 0.0
          %1485 = vmatpush2.msra.mxu0 0.0
          %1486 = vmatprep.subr.mxu0 0.0
          %1487 = vmatpush2.msra.mxu0 0.0
          %1488 = vmatprep.subr.mxu0 0.0
          %1489 = vmatpush2.msra.mxu0 0.0
          %1490 = vmatprep.subr.mxu0 0.0
          %1491 = vmatpush2.msra.mxu0 0.0
          %1492 = vmatprep.subr.mxu0 0.0
          %1493 = vmatpush2.msra.mxu0 0.0
          %1494 = vmatprep.subr.mxu0 0.0
          %1495 = vmatpush2.msra.mxu0 0.0
          %1496 = vmatprep.subr.mxu0 0.0
          %1497 = vmatpush2.msra.mxu0 0.0
          %1498 = vmatprep.mubr.f32.mxu0 0.0
          %1499 = vmatmul.mubr.f32.gmra.mxu0 %v1425
          %v1500 = vpop.f32.mrf.mxu0
          %v1501 = vadd.f32 0.0, %v1500
          %v1502 = vpop.f32.mrf.mxu0
          %v1503 = vadd.f32 0.0, %v1502
          %1504 = vdwg.mxu0
          %vm1505 = vcmask 15360
          %v1507 = vsel %vm1505, %v1421, 0
          %vm1509 = vcmask 1041408
          %v1510 = vsel %vm1509, %v1154, 0
          %v1512 = vsel %vm1509, %v1156, 0
          %1514 = vmatprep.subr.mxu0 0.0
          %1515 = vmatpush1.msra.mxu0 0.0
          %1516 = vmatprep.subr.mxu0 0.0
          %1517 = vmatpush1.msra.mxu0 0.0
          %1518 = vmatprep.subr.mxu0 0.0
          %1519 = vmatpush1.msra.mxu0 0.0
          %1520 = vmatprep.subr.mxu0 0.0
          %1521 = vmatpush1.msra.mxu0 0.0
          %1522 = vmatprep.subr.mxu0 0.0
          %1523 = vmatpush1.msra.mxu0 0.0
          %1524 = vmatprep.subr.mxu0 0.0
          %1525 = vmatpush1.msra.mxu0 0.0
          %1526 = vmatprep.subr.mxu0 0.0
          %1527 = vmatpush1.msra.mxu0 0.0
          %1528 = vmatprep.subr.mxu0 0.0
          %1529 = vmatpush1.msra.mxu0 0.0
          %1530 = vmatprep.subr.mxu0 0.0
          %1531 = vmatpush1.msra.mxu0 0.0
          %1532 = vmatprep.subr.mxu0 0.0
          %1533 = vmatpush1.msra.mxu0 0.0
          %1534 = vmatprep.subr.mxu0 0.0
          %1535 = vmatpush1.msra.mxu0 0.0
          %1536 = vmatprep.subr.mxu0 0.0
          %1537 = vmatpush1.msra.mxu0 0.0
          %1538 = vmatprep.subr.mxu0 0.0
          %1539 = vmatpush1.msra.mxu0 0.0
          %1540 = vmatprep.subr.mxu0 0.0
          %1541 = vmatpush1.msra.mxu0 0.0
          %1542 = vmatprep.subr.mxu0 0.0
          %1543 = vmatpush1.msra.mxu0 0.0
          %1544 = vmatprep.subr.mxu0 %v1512
          %1545 = vmatpush1.msra.mxu0 %v1510
          %1546 = vmatprep.subr.mxu0 0.0
          %1547 = vmatpush2.msra.mxu0 0.0
          %1548 = vmatprep.subr.mxu0 0.0
          %1549 = vmatpush2.msra.mxu0 0.0
          %1550 = vmatprep.subr.mxu0 0.0
          %1551 = vmatpush2.msra.mxu0 0.0
          %1552 = vmatprep.subr.mxu0 0.0
          %1553 = vmatpush2.msra.mxu0 0.0
          %1554 = vmatprep.subr.mxu0 0.0
          %1555 = vmatpush2.msra.mxu0 0.0
          %1556 = vmatprep.subr.mxu0 0.0
          %1557 = vmatpush2.msra.mxu0 0.0
          %1558 = vmatprep.subr.mxu0 0.0
          %1559 = vmatpush2.msra.mxu0 0.0
          %1560 = vmatprep.subr.mxu0 0.0
          %1561 = vmatpush2.msra.mxu0 0.0
          %1562 = vmatprep.subr.mxu0 0.0
          %1563 = vmatpush2.msra.mxu0 0.0
          %1564 = vmatprep.subr.mxu0 0.0
          %1565 = vmatpush2.msra.mxu0 0.0
          %1566 = vmatprep.subr.mxu0 0.0
          %1567 = vmatpush2.msra.mxu0 0.0
          %1568 = vmatprep.subr.mxu0 0.0
          %1569 = vmatpush2.msra.mxu0 0.0
          %1570 = vmatprep.subr.mxu0 0.0
          %1571 = vmatpush2.msra.mxu0 0.0
          %1572 = vmatprep.subr.mxu0 0.0
          %1573 = vmatpush2.msra.mxu0 0.0
          %1574 = vmatprep.subr.mxu0 0.0
          %1575 = vmatpush2.msra.mxu0 0.0
          %1576 = vmatprep.subr.mxu0 0.0
          %1577 = vmatpush2.msra.mxu0 0.0
          %1578 = vmatprep.mubr.f32.mxu0 0.0
          %1579 = vmatmul.mubr.f32.gmra.mxu0 %v1507
          %v1580 = vpop.f32.mrf.mxu0
          %v1581 = vadd.f32 %v1501, %v1580
          %v1582 = vpop.f32.mrf.mxu0
          %v1583 = vadd.f32 %v1503, %v1582
          %1584 = vdwg.mxu0
          %1585 = vst [vmem:[#allocation2] sm:$0xff] %v1581
          %1586 = vst [vmem:[#allocation2 + $0x8] sm:$0xff] %v1583
        $region156: #{forward.1} parent=99 // pred_fallthru
          _
        %v1587 = vld [vmem:[%s4] sm:$0xff]
        %v1588 = vld [vmem:[#allocation2] sm:$0xff]
        %v1589 = vld [vmem:[#allocation2 + $0x8] sm:$0xff]
        %vm1590 = vcmask 64512
        %v1592 = vsel %vm1590, %v1587, 0
        %1594 = vmatprep.subr.mxu0 0.0
        %1595 = vmatpush1.msra.mxu0 0.0
        %1596 = vmatprep.subr.mxu0 0.0
        %1597 = vmatpush1.msra.mxu0 0.0
        %1598 = vmatprep.subr.mxu0 0.0
        %1599 = vmatpush1.msra.mxu0 0.0
        %1600 = vmatprep.subr.mxu0 0.0
        %1601 = vmatpush1.msra.mxu0 0.0
        %1602 = vmatprep.subr.mxu0 0.0
        %1603 = vmatpush1.msra.mxu0 0.0
        %1604 = vmatprep.subr.mxu0 0.0
        %1605 = vmatpush1.msra.mxu0 0.0
        %1606 = vmatprep.subr.mxu0 0.0
        %1607 = vmatpush1.msra.mxu0 0.0
        %1608 = vmatprep.subr.mxu0 0.0
        %1609 = vmatpush1.msra.mxu0 0.0
        %1610 = vmatprep.subr.mxu0 0.0
        %1611 = vmatpush1.msra.mxu0 0.0
        %1612 = vmatprep.subr.mxu0 0.0
        %1613 = vmatpush1.msra.mxu0 0.0
        %1614 = vmatprep.subr.mxu0 0.0
        %1615 = vmatpush1.msra.mxu0 0.0
        %1616 = vmatprep.subr.mxu0 0.0
        %1617 = vmatpush1.msra.mxu0 0.0
        %1618 = vmatprep.subr.mxu0 0.0
        %1619 = vmatpush1.msra.mxu0 0.0
        %1620 = vmatprep.subr.mxu0 0.0
        %1621 = vmatpush1.msra.mxu0 0.0
        %1622 = vmatprep.subr.mxu0 0.0
        %1623 = vmatpush1.msra.mxu0 0.0
        %1624 = vmatprep.subr.mxu0 %v1589
        %1625 = vmatpush1.msra.mxu0 %v1588
        %1626 = vmatprep.subr.mxu0 0.0
        %1627 = vmatpush2.msra.mxu0 0.0
        %1628 = vmatprep.subr.mxu0 0.0
        %1629 = vmatpush2.msra.mxu0 0.0
        %1630 = vmatprep.subr.mxu0 0.0
        %1631 = vmatpush2.msra.mxu0 0.0
        %1632 = vmatprep.subr.mxu0 0.0
        %1633 = vmatpush2.msra.mxu0 0.0
        %1634 = vmatprep.subr.mxu0 0.0
        %1635 = vmatpush2.msra.mxu0 0.0
        %1636 = vmatprep.subr.mxu0 0.0
        %1637 = vmatpush2.msra.mxu0 0.0
        %1638 = vmatprep.subr.mxu0 0.0
        %1639 = vmatpush2.msra.mxu0 0.0
        %1640 = vmatprep.subr.mxu0 0.0
        %1641 = vmatpush2.msra.mxu0 0.0
        %1642 = vmatprep.subr.mxu0 0.0
        %1643 = vmatpush2.msra.mxu0 0.0
        %1644 = vmatprep.subr.mxu0 0.0
        %1645 = vmatpush2.msra.mxu0 0.0
        %1646 = vmatprep.subr.mxu0 0.0
        %1647 = vmatpush2.msra.mxu0 0.0
        %1648 = vmatprep.subr.mxu0 0.0
        %1649 = vmatpush2.msra.mxu0 0.0
        %1650 = vmatprep.subr.mxu0 0.0
        %1651 = vmatpush2.msra.mxu0 0.0
        %1652 = vmatprep.subr.mxu0 0.0
        %1653 = vmatpush2.msra.mxu0 0.0
        %1654 = vmatprep.subr.mxu0 0.0
        %1655 = vmatpush2.msra.mxu0 0.0
        %1656 = vmatprep.subr.mxu0 0.0
        %1657 = vmatpush2.msra.mxu0 0.0
        %1658 = vmatprep.mubr.f32.mxu0 0.0
        %1659 = vmatmul.mubr.f32.gmra.mxu0 %v1592
        %v1660 = vpop.f32.mrf.mxu0
        %v1661 = vadd.f32 0.0, %v1660
        %v1662 = vpop.f32.mrf.mxu0
        %v1663 = vadd.f32 0.0, %v1662
        %1664 = vdwg.mxu0
        %v1665 = vpack.c.bf16 %v1661, %v1661
        %v1666 = vpack.c.bf16 %v1663, %v1663
        %v1667 = vld [vmem:[%s783] sm:$0xff]
        %v1668 = vld [vmem:[%s783 + $0x8] sm:$0xff]
        %v1669 = vld [vmem:[%s783 + $0x10] sm:$0xff]
        %v1670 = vld [vmem:[%s783 + $0x18] sm:$0xff]
        %v1671 = vld [vmem:[%s783 + $0x20] sm:$0xff]
        %v1672 = vld [vmem:[%s783 + $0x28] sm:$0xff]
        %v1673 = vld [vmem:[%s783 + $0x30] sm:$0xff]
        %v1674 = vld [vmem:[%s783 + $0x38] sm:$0xff]
        %v1675 = vld [vmem:[%s783 + $0x40] sm:$0xff]
        %v1676 = vld [vmem:[%s783 + $0x48] sm:$0xff]
        %v1677 = vld [vmem:[%s783 + $0x50] sm:$0xff]
        %v1678 = vld [vmem:[%s783 + $0x58] sm:$0xff]
        %v1679 = vld [vmem:[%s783 + $0x60] sm:$0xff]
        %v1680 = vld [vmem:[%s783 + $0x68] sm:$0xff]
        %v1681 = vld [vmem:[%s783 + $0x70] sm:$0xff]
        %v1682 = vld [vmem:[%s783 + $0x78] sm:$0xff]
        %v1683 = vld [vmem:[%s783 + $0x80] sm:$0xff]
        %v1684 = vld [vmem:[%s783 + $0x88] sm:$0xff]
        %v1685 = vld [vmem:[%s783 + $0x90] sm:$0xff]
        %v1686 = vld [vmem:[%s783 + $0x98] sm:$0xff]
        %v1687 = vld [vmem:[%s783 + $0xa0] sm:$0xff]
        %v1688 = vld [vmem:[%s783 + $0xa8] sm:$0xff]
        %v1689 = vld [vmem:[%s783 + $0xb0] sm:$0xff]
        %v1690 = vld [vmem:[%s783 + $0xb8] sm:$0xff]
        %v1691 = vld [vmem:[%s783 + $0xc0] sm:$0xff]
        %v1692 = vld [vmem:[%s783 + $0xc8] sm:$0xff]
        %v1693 = vld [vmem:[%s783 + $0xd0] sm:$0xff]
        %v1694 = vld [vmem:[%s783 + $0xd8] sm:$0xff]
        %v1695 = vld [vmem:[%s783 + $0xe0] sm:$0xff]
        %v1696 = vld [vmem:[%s783 + $0xe8] sm:$0xff]
        %v1697 = vld [vmem:[%s783 + $0xf0] sm:$0xff]
        %v1698 = vld [vmem:[%s783 + $0xf8] sm:$0xff]
        %v1699 = vld [vmem:[%s792] sm:$0x3]
        %v1701 = vlaneseq
        %v1702 = vshrl.u32 %v1701, 7
        %v1703 = vsub.s32 0, %v1702
        %v1704 = vrot.slane %v1699, %v1703
        %v1705 = vlaneseq
        %v1706 = vshrl.u32 %v1705, 7
        %v1707 = vsub.s32 1, %v1706
        %v1708 = vrot.slane %v1699, %v1707
        %v1743 = vunpack.c.l.b16 %v1667
        %v1744 = vunpack.c.h.b16 %v1667
        %v1745 = vunpack.c.l.b16 %v1668
        %v1746 = vunpack.c.h.b16 %v1668
        %v1747 = vunpack.c.l.b16 %v1669
        %v1748 = vunpack.c.h.b16 %v1669
        %v1749 = vunpack.c.l.b16 %v1670
        %v1750 = vunpack.c.h.b16 %v1670
        %v1751 = vunpack.c.l.b16 %v1671
        %v1752 = vunpack.c.h.b16 %v1671
        %v1753 = vunpack.c.l.b16 %v1672
        %v1754 = vunpack.c.h.b16 %v1672
        %v1755 = vunpack.c.l.b16 %v1673
        %v1756 = vunpack.c.h.b16 %v1673
        %v1757 = vunpack.c.l.b16 %v1674
        %v1758 = vunpack.c.h.b16 %v1674
        %v1759 = vunpack.c.l.b16 %v1675
        %v1760 = vunpack.c.h.b16 %v1675
        %v1761 = vunpack.c.l.b16 %v1676
        %v1762 = vunpack.c.h.b16 %v1676
        %v1763 = vunpack.c.l.b16 %v1677
        %v1764 = vunpack.c.h.b16 %v1677
        %v1765 = vunpack.c.l.b16 %v1678
        %v1766 = vunpack.c.h.b16 %v1678
        %v1767 = vunpack.c.l.b16 %v1679
        %v1768 = vunpack.c.h.b16 %v1679
        %v1769 = vunpack.c.l.b16 %v1680
        %v1770 = vunpack.c.h.b16 %v1680
        %v1771 = vunpack.c.l.b16 %v1681
        %v1772 = vunpack.c.h.b16 %v1681
        %v1773 = vunpack.c.l.b16 %v1682
        %v1774 = vunpack.c.h.b16 %v1682
        %v1775 = vunpack.c.l.b16 %v1683
        %v1776 = vunpack.c.h.b16 %v1683
        %v1777 = vunpack.c.l.b16 %v1684
        %v1778 = vunpack.c.h.b16 %v1684
        %v1779 = vunpack.c.l.b16 %v1685
        %v1780 = vunpack.c.h.b16 %v1685
        %v1781 = vunpack.c.l.b16 %v1686
        %v1782 = vunpack.c.h.b16 %v1686
        %v1783 = vunpack.c.l.b16 %v1687
        %v1784 = vunpack.c.h.b16 %v1687
        %v1785 = vunpack.c.l.b16 %v1688
        %v1786 = vunpack.c.h.b16 %v1688
        %v1787 = vunpack.c.l.b16 %v1689
        %v1788 = vunpack.c.h.b16 %v1689
        %v1789 = vunpack.c.l.b16 %v1690
        %v1790 = vunpack.c.h.b16 %v1690
        %v1791 = vunpack.c.l.b16 %v1691
        %v1792 = vunpack.c.h.b16 %v1691
        %v1793 = vunpack.c.l.b16 %v1692
        %v1794 = vunpack.c.h.b16 %v1692
        %v1795 = vunpack.c.l.b16 %v1693
        %v1796 = vunpack.c.h.b16 %v1693
        %v1797 = vunpack.c.l.b16 %v1694
        %v1798 = vunpack.c.h.b16 %v1694
        %v1799 = vunpack.c.l.b16 %v1695
        %v1800 = vunpack.c.h.b16 %v1695
        %v1801 = vunpack.c.l.b16 %v1696
        %v1802 = vunpack.c.h.b16 %v1696
        %v1803 = vunpack.c.l.b16 %v1697
        %v1804 = vunpack.c.h.b16 %v1697
        %v1805 = vunpack.c.l.b16 %v1698
        %v1806 = vunpack.c.h.b16 %v1698
        %v1807 = vpack.c.b16 %v1745, %v1743
        %v1808 = vpack.c.b16 %v1746, %v1744
        %v1809 = vpack.c.b16 %v1749, %v1747
        %v1810 = vpack.c.b16 %v1750, %v1748
        %v1811 = vpack.c.b16 %v1753, %v1751
        %v1812 = vpack.c.b16 %v1754, %v1752
        %v1813 = vpack.c.b16 %v1757, %v1755
        %v1814 = vpack.c.b16 %v1758, %v1756
        %v1815 = vpack.c.b16 %v1761, %v1759
        %v1816 = vpack.c.b16 %v1762, %v1760
        %v1817 = vpack.c.b16 %v1765, %v1763
        %v1818 = vpack.c.b16 %v1766, %v1764
        %v1819 = vpack.c.b16 %v1769, %v1767
        %v1820 = vpack.c.b16 %v1770, %v1768
        %v1821 = vpack.c.b16 %v1773, %v1771
        %v1822 = vpack.c.b16 %v1774, %v1772
        %v1823 = vpack.c.b16 %v1777, %v1775
        %v1824 = vpack.c.b16 %v1778, %v1776
        %v1825 = vpack.c.b16 %v1781, %v1779
        %v1826 = vpack.c.b16 %v1782, %v1780
        %v1827 = vpack.c.b16 %v1785, %v1783
        %v1828 = vpack.c.b16 %v1786, %v1784
        %v1829 = vpack.c.b16 %v1789, %v1787
        %v1830 = vpack.c.b16 %v1790, %v1788
        %v1831 = vpack.c.b16 %v1793, %v1791
        %v1832 = vpack.c.b16 %v1794, %v1792
        %v1833 = vpack.c.b16 %v1797, %v1795
        %v1834 = vpack.c.b16 %v1798, %v1796
        %v1835 = vpack.c.b16 %v1801, %v1799
        %v1836 = vpack.c.b16 %v1802, %v1800
        %v1837 = vpack.c.b16 %v1805, %v1803
        %v1838 = vpack.c.b16 %v1806, %v1804
        %1871 = vmatprep.subr.bf16.mxu0 %v1822
        %1872 = vmatpush1.bf16.msra.mxu0 %v1821
        %1873 = vmatprep.subr.bf16.mxu0 %v1820
        %1874 = vmatpush1.bf16.msra.mxu0 %v1819
        %1875 = vmatprep.subr.bf16.mxu0 %v1818
        %1876 = vmatpush1.bf16.msra.mxu0 %v1817
        %1877 = vmatprep.subr.bf16.mxu0 %v1816
        %1878 = vmatpush1.bf16.msra.mxu0 %v1815
        %1879 = vmatprep.subr.bf16.mxu0 %v1814
        %1880 = vmatpush1.bf16.msra.mxu0 %v1813
        %1881 = vmatprep.subr.bf16.mxu0 %v1812
        %1882 = vmatpush1.bf16.msra.mxu0 %v1811
        %1883 = vmatprep.subr.bf16.mxu0 %v1810
        %1884 = vmatpush1.bf16.msra.mxu0 %v1809
        %1885 = vmatprep.subr.bf16.mxu0 %v1808
        %1886 = vmatpush1.bf16.msra.mxu0 %v1807
        %1887 = vmatprep.subr.bf16.mxu0 %v1838
        %1888 = vmatpush2.bf16.msra.mxu0 %v1837
        %1889 = vmatprep.subr.bf16.mxu0 %v1836
        %1890 = vmatpush2.bf16.msra.mxu0 %v1835
        %1891 = vmatprep.subr.bf16.mxu0 %v1834
        %1892 = vmatpush2.bf16.msra.mxu0 %v1833
        %1893 = vmatprep.subr.bf16.mxu0 %v1832
        %1894 = vmatpush2.bf16.msra.mxu0 %v1831
        %1895 = vmatprep.subr.bf16.mxu0 %v1830
        %1896 = vmatpush2.bf16.msra.mxu0 %v1829
        %1897 = vmatprep.subr.bf16.mxu0 %v1828
        %1898 = vmatpush2.bf16.msra.mxu0 %v1827
        %1899 = vmatprep.subr.bf16.mxu0 %v1826
        %1900 = vmatpush2.bf16.msra.mxu0 %v1825
        %1901 = vmatprep.subr.bf16.mxu0 %v1824
        %1902 = vmatpush2.bf16.msra.mxu0 %v1823
        %1903 = vmatprep.mubr.bf16.mxu0 %v1666
        %1904 = vmatmul.mubr.bf16.gmra.mxu0 %v1665
        %v1905 = vpop.f32.mrf.mxu0
        %v1906 = vadd.f32 %v1704, %v1905
        %v1907 = vpop.f32.mrf.mxu0
        %v1908 = vadd.f32 %v1708, %v1907
        %v1909 = vpop.f32.mrf.mxu0
        %v1910 = vpop.f32.mrf.mxu0
        %1911 = vdwg.mxu0
        %v1912 = vmax.f32 %v1906, 0.0
        %v1913 = vmax.f32 %v1908, 0.0
        %v1914 = vpack.c.bf16 %v1912, %v1912
        %v1915 = vpack.c.bf16 %v1913, %v1913
        %v1916 = vld [vmem:[%s801] sm:$0xff]
        %v1917 = vld [vmem:[%s801 + $0x8] sm:$0xff]
        %v1918 = vld [vmem:[%s801 + $0x10] sm:$0xff]
        %v1919 = vld [vmem:[%s801 + $0x18] sm:$0xff]
        %v1920 = vld [vmem:[%s801 + $0x20] sm:$0xff]
        %v1921 = vld [vmem:[%s801 + $0x28] sm:$0xff]
        %v1922 = vld [vmem:[%s801 + $0x30] sm:$0xff]
        %v1923 = vld [vmem:[%s801 + $0x38] sm:$0xff]
        %v1924 = vld [vmem:[%s801 + $0x40] sm:$0xff]
        %v1925 = vld [vmem:[%s801 + $0x48] sm:$0xff]
        %v1926 = vld [vmem:[%s801 + $0x50] sm:$0xff]
        %v1927 = vld [vmem:[%s801 + $0x58] sm:$0xff]
        %v1928 = vld [vmem:[%s801 + $0x60] sm:$0xff]
        %v1929 = vld [vmem:[%s801 + $0x68] sm:$0xff]
        %v1930 = vld [vmem:[%s801 + $0x70] sm:$0xff]
        %v1931 = vld [vmem:[%s801 + $0x78] sm:$0xff]
        %v1932 = vld [vmem:[%s801 + $0x80] sm:$0xff]
        %v1933 = vld [vmem:[%s801 + $0x88] sm:$0xff]
        %v1934 = vld [vmem:[%s801 + $0x90] sm:$0xff]
        %v1935 = vld [vmem:[%s801 + $0x98] sm:$0xff]
        %v1936 = vld [vmem:[%s801 + $0xa0] sm:$0xff]
        %v1937 = vld [vmem:[%s801 + $0xa8] sm:$0xff]
        %v1938 = vld [vmem:[%s801 + $0xb0] sm:$0xff]
        %v1939 = vld [vmem:[%s801 + $0xb8] sm:$0xff]
        %v1940 = vld [vmem:[%s801 + $0xc0] sm:$0xff]
        %v1941 = vld [vmem:[%s801 + $0xc8] sm:$0xff]
        %v1942 = vld [vmem:[%s801 + $0xd0] sm:$0xff]
        %v1943 = vld [vmem:[%s801 + $0xd8] sm:$0xff]
        %v1944 = vld [vmem:[%s801 + $0xe0] sm:$0xff]
        %v1945 = vld [vmem:[%s801 + $0xe8] sm:$0xff]
        %v1946 = vld [vmem:[%s801 + $0xf0] sm:$0xff]
        %v1947 = vld [vmem:[%s801 + $0xf8] sm:$0xff]
        %v1948 = vld [vmem:[%s810] sm:$0x3]
        %v1950 = vlaneseq
        %v1951 = vshrl.u32 %v1950, 7
        %v1952 = vsub.s32 0, %v1951
        %v1953 = vrot.slane %v1948, %v1952
        %v1954 = vlaneseq
        %v1955 = vshrl.u32 %v1954, 7
        %v1956 = vsub.s32 1, %v1955
        %v1957 = vrot.slane %v1948, %v1956
        %v1992 = vunpack.c.l.b16 %v1916
        %v1993 = vunpack.c.h.b16 %v1916
        %v1994 = vunpack.c.l.b16 %v1917
        %v1995 = vunpack.c.h.b16 %v1917
        %v1996 = vunpack.c.l.b16 %v1918
        %v1997 = vunpack.c.h.b16 %v1918
        %v1998 = vunpack.c.l.b16 %v1919
        %v1999 = vunpack.c.h.b16 %v1919
        %v2000 = vunpack.c.l.b16 %v1920
        %v2001 = vunpack.c.h.b16 %v1920
        %v2002 = vunpack.c.l.b16 %v1921
        %v2003 = vunpack.c.h.b16 %v1921
        %v2004 = vunpack.c.l.b16 %v1922
        %v2005 = vunpack.c.h.b16 %v1922
        %v2006 = vunpack.c.l.b16 %v1923
        %v2007 = vunpack.c.h.b16 %v1923
        %v2008 = vunpack.c.l.b16 %v1924
        %v2009 = vunpack.c.h.b16 %v1924
        %v2010 = vunpack.c.l.b16 %v1925
        %v2011 = vunpack.c.h.b16 %v1925
        %v2012 = vunpack.c.l.b16 %v1926
        %v2013 = vunpack.c.h.b16 %v1926
        %v2014 = vunpack.c.l.b16 %v1927
        %v2015 = vunpack.c.h.b16 %v1927
        %v2016 = vunpack.c.l.b16 %v1928
        %v2017 = vunpack.c.h.b16 %v1928
        %v2018 = vunpack.c.l.b16 %v1929
        %v2019 = vunpack.c.h.b16 %v1929
        %v2020 = vunpack.c.l.b16 %v1930
        %v2021 = vunpack.c.h.b16 %v1930
        %v2022 = vunpack.c.l.b16 %v1931
        %v2023 = vunpack.c.h.b16 %v1931
        %v2024 = vunpack.c.l.b16 %v1932
        %v2025 = vunpack.c.h.b16 %v1932
        %v2026 = vunpack.c.l.b16 %v1933
        %v2027 = vunpack.c.h.b16 %v1933
        %v2028 = vunpack.c.l.b16 %v1934
        %v2029 = vunpack.c.h.b16 %v1934
        %v2030 = vunpack.c.l.b16 %v1935
        %v2031 = vunpack.c.h.b16 %v1935
        %v2032 = vunpack.c.l.b16 %v1936
        %v2033 = vunpack.c.h.b16 %v1936
        %v2034 = vunpack.c.l.b16 %v1937
        %v2035 = vunpack.c.h.b16 %v1937
        %v2036 = vunpack.c.l.b16 %v1938
        %v2037 = vunpack.c.h.b16 %v1938
        %v2038 = vunpack.c.l.b16 %v1939
        %v2039 = vunpack.c.h.b16 %v1939
        %v2040 = vunpack.c.l.b16 %v1940
        %v2041 = vunpack.c.h.b16 %v1940
        %v2042 = vunpack.c.l.b16 %v1941
        %v2043 = vunpack.c.h.b16 %v1941
        %v2044 = vunpack.c.l.b16 %v1942
        %v2045 = vunpack.c.h.b16 %v1942
        %v2046 = vunpack.c.l.b16 %v1943
        %v2047 = vunpack.c.h.b16 %v1943
        %v2048 = vunpack.c.l.b16 %v1944
        %v2049 = vunpack.c.h.b16 %v1944
        %v2050 = vunpack.c.l.b16 %v1945
        %v2051 = vunpack.c.h.b16 %v1945
        %v2052 = vunpack.c.l.b16 %v1946
        %v2053 = vunpack.c.h.b16 %v1946
        %v2054 = vunpack.c.l.b16 %v1947
        %v2055 = vunpack.c.h.b16 %v1947
        %v2056 = vpack.c.b16 %v1994, %v1992
        %v2057 = vpack.c.b16 %v1995, %v1993
        %v2058 = vpack.c.b16 %v1998, %v1996
        %v2059 = vpack.c.b16 %v1999, %v1997
        %v2060 = vpack.c.b16 %v2002, %v2000
        %v2061 = vpack.c.b16 %v2003, %v2001
        %v2062 = vpack.c.b16 %v2006, %v2004
        %v2063 = vpack.c.b16 %v2007, %v2005
        %v2064 = vpack.c.b16 %v2010, %v2008
        %v2065 = vpack.c.b16 %v2011, %v2009
        %v2066 = vpack.c.b16 %v2014, %v2012
        %v2067 = vpack.c.b16 %v2015, %v2013
        %v2068 = vpack.c.b16 %v2018, %v2016
        %v2069 = vpack.c.b16 %v2019, %v2017
        %v2070 = vpack.c.b16 %v2022, %v2020
        %v2071 = vpack.c.b16 %v2023, %v2021
        %v2072 = vpack.c.b16 %v2026, %v2024
        %v2073 = vpack.c.b16 %v2027, %v2025
        %v2074 = vpack.c.b16 %v2030, %v2028
        %v2075 = vpack.c.b16 %v2031, %v2029
        %v2076 = vpack.c.b16 %v2034, %v2032
        %v2077 = vpack.c.b16 %v2035, %v2033
        %v2078 = vpack.c.b16 %v2038, %v2036
        %v2079 = vpack.c.b16 %v2039, %v2037
        %v2080 = vpack.c.b16 %v2042, %v2040
        %v2081 = vpack.c.b16 %v2043, %v2041
        %v2082 = vpack.c.b16 %v2046, %v2044
        %v2083 = vpack.c.b16 %v2047, %v2045
        %v2084 = vpack.c.b16 %v2050, %v2048
        %v2085 = vpack.c.b16 %v2051, %v2049
        %v2086 = vpack.c.b16 %v2054, %v2052
        %v2087 = vpack.c.b16 %v2055, %v2053
        %2120 = vmatprep.subr.bf16.mxu0 %v2071
        %2121 = vmatpush1.bf16.msra.mxu0 %v2070
        %2122 = vmatprep.subr.bf16.mxu0 %v2069
        %2123 = vmatpush1.bf16.msra.mxu0 %v2068
        %2124 = vmatprep.subr.bf16.mxu0 %v2067
        %2125 = vmatpush1.bf16.msra.mxu0 %v2066
        %2126 = vmatprep.subr.bf16.mxu0 %v2065
        %2127 = vmatpush1.bf16.msra.mxu0 %v2064
        %2128 = vmatprep.subr.bf16.mxu0 %v2063
        %2129 = vmatpush1.bf16.msra.mxu0 %v2062
        %2130 = vmatprep.subr.bf16.mxu0 %v2061
        %2131 = vmatpush1.bf16.msra.mxu0 %v2060
        %2132 = vmatprep.subr.bf16.mxu0 %v2059
        %2133 = vmatpush1.bf16.msra.mxu0 %v2058
        %2134 = vmatprep.subr.bf16.mxu0 %v2057
        %2135 = vmatpush1.bf16.msra.mxu0 %v2056
        %2136 = vmatprep.subr.bf16.mxu0 %v2087
        %2137 = vmatpush2.bf16.msra.mxu0 %v2086
        %2138 = vmatprep.subr.bf16.mxu0 %v2085
        %2139 = vmatpush2.bf16.msra.mxu0 %v2084
        %2140 = vmatprep.subr.bf16.mxu0 %v2083
        %2141 = vmatpush2.bf16.msra.mxu0 %v2082
        %2142 = vmatprep.subr.bf16.mxu0 %v2081
        %2143 = vmatpush2.bf16.msra.mxu0 %v2080
        %2144 = vmatprep.subr.bf16.mxu0 %v2079
        %2145 = vmatpush2.bf16.msra.mxu0 %v2078
        %2146 = vmatprep.subr.bf16.mxu0 %v2077
        %2147 = vmatpush2.bf16.msra.mxu0 %v2076
        %2148 = vmatprep.subr.bf16.mxu0 %v2075
        %2149 = vmatpush2.bf16.msra.mxu0 %v2074
        %2150 = vmatprep.subr.bf16.mxu0 %v2073
        %2151 = vmatpush2.bf16.msra.mxu0 %v2072
        %2152 = vmatprep.mubr.bf16.mxu0 %v1915
        %2153 = vmatmul.mubr.bf16.gmra.mxu0 %v1914
        %v2154 = vpop.f32.mrf.mxu0
        %v2155 = vadd.f32 %v1953, %v2154
        %v2156 = vpop.f32.mrf.mxu0
        %v2157 = vadd.f32 %v1957, %v2156
        %v2158 = vpop.f32.mrf.mxu0
        %v2159 = vpop.f32.mrf.mxu0
        %2160 = vdwg.mxu0
        %p2161 = scmp.ne.s32.totalorder %s46, 2
        // Predicated region
        $region157: #{forward.1} parent=99 // pred_check
          %p2162 = pneg %p2161
        $region158: #{forward.1} parent=99 // pred_check_branch
          %2164 = sbr.rel (%p2162) target = $region160
        $region159: #{forward.1} parent=99 // pred_region
          %v2165 = vmax.f32 %v2155, 0.0
          %v2166 = vmax.f32 %v2157, 0.0
          %2167 = vst [vmem:[#allocation2] sm:$0xff] %v2165
          %2168 = vst [vmem:[#allocation2 + $0x8] sm:$0xff] %v2166
        $region160: #{forward.1} parent=99 // pred_fallthru
          _
        // Predicated region
        $region161: #{forward.1} parent=99 // pred_check
          %p2169 = pneg %p896
        $region162: #{forward.1} parent=99 // pred_check_branch
          %2171 = sbr.rel (%p2169) target = $region164
        $region163: #{forward.1} parent=99 // pred_region
          %v2172 = vld [vmem:[%s5] sm:$0x3]
          %v2174 = vsel %vm1590, %v2172, 0
          %2176 = vmatprep.subr.mxu0 0.0
          %2177 = vmatpush1.msra.mxu0 0.0
          %2178 = vmatprep.subr.mxu0 0.0
          %2179 = vmatpush1.msra.mxu0 0.0
          %2180 = vmatprep.subr.mxu0 0.0
          %2181 = vmatpush1.msra.mxu0 0.0
          %2182 = vmatprep.subr.mxu0 0.0
          %2183 = vmatpush1.msra.mxu0 0.0
          %2184 = vmatprep.subr.mxu0 0.0
          %2185 = vmatpush1.msra.mxu0 0.0
          %2186 = vmatprep.subr.mxu0 0.0
          %2187 = vmatpush1.msra.mxu0 0.0
          %2188 = vmatprep.subr.mxu0 0.0
          %2189 = vmatpush1.msra.mxu0 0.0
          %2190 = vmatprep.subr.mxu0 0.0
          %2191 = vmatpush1.msra.mxu0 0.0
          %2192 = vmatprep.subr.mxu0 0.0
          %2193 = vmatpush1.msra.mxu0 0.0
          %2194 = vmatprep.subr.mxu0 0.0
          %2195 = vmatpush1.msra.mxu0 0.0
          %2196 = vmatprep.subr.mxu0 0.0
          %2197 = vmatpush1.msra.mxu0 0.0
          %2198 = vmatprep.subr.mxu0 0.0
          %2199 = vmatpush1.msra.mxu0 0.0
          %2200 = vmatprep.subr.mxu0 0.0
          %2201 = vmatpush1.msra.mxu0 0.0
          %2202 = vmatprep.subr.mxu0 0.0
          %2203 = vmatpush1.msra.mxu0 0.0
          %2204 = vmatprep.subr.mxu0 0.0
          %2205 = vmatpush1.msra.mxu0 0.0
          %2206 = vmatprep.subr.mxu0 %v2157
          %2207 = vmatpush1.msra.mxu0 %v2155
          %2208 = vmatprep.subr.mxu0 0.0
          %2209 = vmatpush2.msra.mxu0 0.0
          %2210 = vmatprep.subr.mxu0 0.0
          %2211 = vmatpush2.msra.mxu0 0.0
          %2212 = vmatprep.subr.mxu0 0.0
          %2213 = vmatpush2.msra.mxu0 0.0
          %2214 = vmatprep.subr.mxu0 0.0
          %2215 = vmatpush2.msra.mxu0 0.0
          %2216 = vmatprep.subr.mxu0 0.0
          %2217 = vmatpush2.msra.mxu0 0.0
          %2218 = vmatprep.subr.mxu0 0.0
          %2219 = vmatpush2.msra.mxu0 0.0
          %2220 = vmatprep.subr.mxu0 0.0
          %2221 = vmatpush2.msra.mxu0 0.0
          %2222 = vmatprep.subr.mxu0 0.0
          %2223 = vmatpush2.msra.mxu0 0.0
          %2224 = vmatprep.subr.mxu0 0.0
          %2225 = vmatpush2.msra.mxu0 0.0
          %2226 = vmatprep.subr.mxu0 0.0
          %2227 = vmatpush2.msra.mxu0 0.0
          %2228 = vmatprep.subr.mxu0 0.0
          %2229 = vmatpush2.msra.mxu0 0.0
          %2230 = vmatprep.subr.mxu0 0.0
          %2231 = vmatpush2.msra.mxu0 0.0
          %2232 = vmatprep.subr.mxu0 0.0
          %2233 = vmatpush2.msra.mxu0 0.0
          %2234 = vmatprep.subr.mxu0 0.0
          %2235 = vmatpush2.msra.mxu0 0.0
          %2236 = vmatprep.subr.mxu0 0.0
          %2237 = vmatpush2.msra.mxu0 0.0
          %2238 = vmatprep.subr.mxu0 0.0
          %2239 = vmatpush2.msra.mxu0 0.0
          %2240 = vmatprep.mubr.f32.mxu0 0.0
          %2241 = vmatmul.mubr.f32.gmra.mxu0 %v2174
          %v2242 = vpop.f32.mrf.mxu0
          %v2243 = vadd.f32 0.0, %v2242
          %v2244 = vpop.f32.mrf.mxu0
          %v2245 = vadd.f32 0.0, %v2244
          %2246 = vdwg.mxu0
          %v2247 = vld [vmem:[#allocation3] sm:$0xf]
          %v2250 = vunpack.c.l.s4 1983009808
          %v2251 = vunpack.c.0.s8 %v2250
          %v2252 = vlaneseq
          %v2253 = vshrl.u32 %v2252, 7
          %v2254 = vsub.s32 %v2251, %v2253
          %v2255 = vrot.slane %v2247, %v2254
          %v2256 = vcombine.high %v2255, %v2255
          %v2259 = vpack.c.bf16 %v2255, %v2255
          %v2260 = vpack.c.bf16 %v2256, %v2256
          %v2261 = vld [vmem:[#allocation19] sm:$0xf]
          %v2262 = vld [vmem:[#allocation19 + $0x4] sm:$0xf]
          %v2263 = vld [vmem:[#allocation19 + $0x8] sm:$0xf]
          %v2264 = vld [vmem:[#allocation19 + $0xc] sm:$0xf]
          %v2265 = vld [vmem:[#allocation19 + $0x10] sm:$0xf]
          %v2266 = vld [vmem:[#allocation19 + $0x14] sm:$0xf]
          %v2267 = vld [vmem:[#allocation19 + $0x18] sm:$0xf]
          %v2268 = vld [vmem:[#allocation19 + $0x1c] sm:$0xf]
          %v2269 = vld [vmem:[#allocation19 + $0x20] sm:$0xf]
          %v2270 = vld [vmem:[#allocation19 + $0x24] sm:$0xf]
          %v2271 = vld [vmem:[#allocation19 + $0x28] sm:$0xf]
          %v2272 = vld [vmem:[#allocation19 + $0x2c] sm:$0xf]
          %v2273 = vld [vmem:[#allocation19 + $0x30] sm:$0xf]
          %v2274 = vld [vmem:[#allocation19 + $0x34] sm:$0xf]
          %v2275 = vld [vmem:[#allocation19 + $0x38] sm:$0xf]
          %v2276 = vld [vmem:[#allocation19 + $0x3c] sm:$0xf]
          %v2277 = vld [vmem:[#allocation19 + $0x40] sm:$0xf]
          %v2278 = vld [vmem:[#allocation19 + $0x44] sm:$0xf]
          %v2279 = vld [vmem:[#allocation19 + $0x48] sm:$0xf]
          %v2280 = vld [vmem:[#allocation19 + $0x4c] sm:$0xf]
          %v2281 = vld [vmem:[#allocation19 + $0x50] sm:$0xf]
          %v2282 = vld [vmem:[#allocation19 + $0x54] sm:$0xf]
          %v2283 = vld [vmem:[#allocation19 + $0x58] sm:$0xf]
          %v2284 = vld [vmem:[#allocation19 + $0x5c] sm:$0xf]
          %v2285 = vld [vmem:[#allocation19 + $0x60] sm:$0xf]
          %v2286 = vld [vmem:[#allocation19 + $0x64] sm:$0xf]
          %v2287 = vld [vmem:[#allocation19 + $0x68] sm:$0xf]
          %v2288 = vld [vmem:[#allocation19 + $0x6c] sm:$0xf]
          %v2289 = vld [vmem:[#allocation19 + $0x70] sm:$0xf]
          %v2290 = vld [vmem:[#allocation19 + $0x74] sm:$0xf]
          %v2291 = vld [vmem:[#allocation19 + $0x78] sm:$0xf]
          %v2292 = vld [vmem:[#allocation19 + $0x7c] sm:$0xf]
          %v2293 = vpack.c.bf16 %v2243, %v2243
          %v2294 = vpack.c.bf16 %v2245, %v2245
          %v2295 = vld [vmem:[#allocation21] sm:$0xf]
          %v2296 = vld [vmem:[#allocation21 + $0x4] sm:$0xf]
          %v2297 = vld [vmem:[#allocation21 + $0x8] sm:$0xf]
          %v2298 = vld [vmem:[#allocation21 + $0xc] sm:$0xf]
          %v2299 = vld [vmem:[#allocation21 + $0x10] sm:$0xf]
          %v2300 = vld [vmem:[#allocation21 + $0x14] sm:$0xf]
          %v2301 = vld [vmem:[#allocation21 + $0x18] sm:$0xf]
          %v2302 = vld [vmem:[#allocation21 + $0x1c] sm:$0xf]
          %v2303 = vld [vmem:[#allocation21 + $0x20] sm:$0xf]
          %v2304 = vld [vmem:[#allocation21 + $0x24] sm:$0xf]
          %v2305 = vld [vmem:[#allocation21 + $0x28] sm:$0xf]
          %v2306 = vld [vmem:[#allocation21 + $0x2c] sm:$0xf]
          %v2307 = vld [vmem:[#allocation21 + $0x30] sm:$0xf]
          %v2308 = vld [vmem:[#allocation21 + $0x34] sm:$0xf]
          %v2309 = vld [vmem:[#allocation21 + $0x38] sm:$0xf]
          %v2310 = vld [vmem:[#allocation21 + $0x3c] sm:$0xf]
          %v2311 = vld [vmem:[#allocation21 + $0x40] sm:$0xf]
          %v2312 = vld [vmem:[#allocation21 + $0x44] sm:$0xf]
          %v2313 = vld [vmem:[#allocation21 + $0x48] sm:$0xf]
          %v2314 = vld [vmem:[#allocation21 + $0x4c] sm:$0xf]
          %v2315 = vld [vmem:[#allocation21 + $0x50] sm:$0xf]
          %v2316 = vld [vmem:[#allocation21 + $0x54] sm:$0xf]
          %v2317 = vld [vmem:[#allocation21 + $0x58] sm:$0xf]
          %v2318 = vld [vmem:[#allocation21 + $0x5c] sm:$0xf]
          %v2319 = vld [vmem:[#allocation21 + $0x60] sm:$0xf]
          %v2320 = vld [vmem:[#allocation21 + $0x64] sm:$0xf]
          %v2321 = vld [vmem:[#allocation21 + $0x68] sm:$0xf]
          %v2322 = vld [vmem:[#allocation21 + $0x6c] sm:$0xf]
          %v2323 = vld [vmem:[#allocation21 + $0x70] sm:$0xf]
          %v2324 = vld [vmem:[#allocation21 + $0x74] sm:$0xf]
          %v2325 = vld [vmem:[#allocation21 + $0x78] sm:$0xf]
          %v2326 = vld [vmem:[#allocation21 + $0x7c] sm:$0xf]
          %v2359 = vunpack.c.l.b16 %v2295
          %v2360 = vunpack.c.l.b16 %v2296
          %v2361 = vunpack.c.l.b16 %v2297
          %v2362 = vunpack.c.l.b16 %v2298
          %v2363 = vunpack.c.l.b16 %v2299
          %v2364 = vunpack.c.l.b16 %v2300
          %v2365 = vunpack.c.l.b16 %v2301
          %v2366 = vunpack.c.l.b16 %v2302
          %v2367 = vunpack.c.l.b16 %v2303
          %v2368 = vunpack.c.l.b16 %v2304
          %v2369 = vunpack.c.l.b16 %v2305
          %v2370 = vunpack.c.l.b16 %v2306
          %v2371 = vunpack.c.l.b16 %v2307
          %v2372 = vunpack.c.l.b16 %v2308
          %v2373 = vunpack.c.l.b16 %v2309
          %v2374 = vunpack.c.l.b16 %v2310
          %v2375 = vunpack.c.l.b16 %v2311
          %v2376 = vunpack.c.l.b16 %v2312
          %v2377 = vunpack.c.l.b16 %v2313
          %v2378 = vunpack.c.l.b16 %v2314
          %v2379 = vunpack.c.l.b16 %v2315
          %v2380 = vunpack.c.l.b16 %v2316
          %v2381 = vunpack.c.l.b16 %v2317
          %v2382 = vunpack.c.l.b16 %v2318
          %v2383 = vunpack.c.l.b16 %v2319
          %v2384 = vunpack.c.l.b16 %v2320
          %v2385 = vunpack.c.l.b16 %v2321
          %v2386 = vunpack.c.l.b16 %v2322
          %v2387 = vunpack.c.l.b16 %v2323
          %v2388 = vunpack.c.l.b16 %v2324
          %v2389 = vunpack.c.l.b16 %v2325
          %v2390 = vunpack.c.l.b16 %v2326
          %v2391 = vpack.c.b16 %v2360, %v2359
          %v2392 = vpack.c.b16 %v2362, %v2361
          %v2393 = vpack.c.b16 %v2364, %v2363
          %v2394 = vpack.c.b16 %v2366, %v2365
          %v2395 = vpack.c.b16 %v2368, %v2367
          %v2396 = vpack.c.b16 %v2370, %v2369
          %v2397 = vpack.c.b16 %v2372, %v2371
          %v2398 = vpack.c.b16 %v2374, %v2373
          %v2399 = vpack.c.b16 %v2376, %v2375
          %v2400 = vpack.c.b16 %v2378, %v2377
          %v2401 = vpack.c.b16 %v2380, %v2379
          %v2402 = vpack.c.b16 %v2382, %v2381
          %v2403 = vpack.c.b16 %v2384, %v2383
          %v2404 = vpack.c.b16 %v2386, %v2385
          %v2405 = vpack.c.b16 %v2388, %v2387
          %v2406 = vpack.c.b16 %v2390, %v2389
          %2423 = vmatprep.subr.bf16.mxu0 0
          %2424 = vmatpush1.bf16.msra.mxu0 %v2398
          %2425 = vmatprep.subr.bf16.mxu0 0
          %2426 = vmatpush1.bf16.msra.mxu0 %v2397
          %2427 = vmatprep.subr.bf16.mxu0 0
          %2428 = vmatpush1.bf16.msra.mxu0 %v2396
          %2429 = vmatprep.subr.bf16.mxu0 0
          %2430 = vmatpush1.bf16.msra.mxu0 %v2395
          %2431 = vmatprep.subr.bf16.mxu0 0
          %2432 = vmatpush1.bf16.msra.mxu0 %v2394
          %2433 = vmatprep.subr.bf16.mxu0 0
          %2434 = vmatpush1.bf16.msra.mxu0 %v2393
          %2435 = vmatprep.subr.bf16.mxu0 0
          %2436 = vmatpush1.bf16.msra.mxu0 %v2392
          %2437 = vmatprep.subr.bf16.mxu0 0
          %2438 = vmatpush1.bf16.msra.mxu0 %v2391
          %2439 = vmatprep.subr.bf16.mxu0 0
          %2440 = vmatpush2.bf16.msra.mxu0 %v2406
          %2441 = vmatprep.subr.bf16.mxu0 0
          %2442 = vmatpush2.bf16.msra.mxu0 %v2405
          %2443 = vmatprep.subr.bf16.mxu0 0
          %2444 = vmatpush2.bf16.msra.mxu0 %v2404
          %2445 = vmatprep.subr.bf16.mxu0 0
          %2446 = vmatpush2.bf16.msra.mxu0 %v2403
          %2447 = vmatprep.subr.bf16.mxu0 0
          %2448 = vmatpush2.bf16.msra.mxu0 %v2402
          %2449 = vmatprep.subr.bf16.mxu0 0
          %2450 = vmatpush2.bf16.msra.mxu0 %v2401
          %2451 = vmatprep.subr.bf16.mxu0 0
          %2452 = vmatpush2.bf16.msra.mxu0 %v2400
          %2453 = vmatprep.subr.bf16.mxu0 0
          %2454 = vmatpush2.bf16.msra.mxu0 %v2399
          %2455 = vmatprep.mubr.bf16.mxu0 %v2294
          %2456 = vmatmul.mubr.bf16.gmra.mxu0 %v2293
          %v2457 = vpop.f32.mrf.mxu0
          %v2458 = vadd.f32 0.0, %v2457
          %v2459 = vpop.f32.mrf.mxu0
          %v2460 = vpop.f32.mrf.mxu0
          %v2461 = vpop.f32.mrf.mxu0
          %2462 = vdwg.mxu0
          %v2495 = vunpack.c.l.b16 %v2261
          %v2496 = vunpack.c.l.b16 %v2262
          %v2497 = vunpack.c.l.b16 %v2263
          %v2498 = vunpack.c.l.b16 %v2264
          %v2499 = vunpack.c.l.b16 %v2265
          %v2500 = vunpack.c.l.b16 %v2266
          %v2501 = vunpack.c.l.b16 %v2267
          %v2502 = vunpack.c.l.b16 %v2268
          %v2503 = vunpack.c.l.b16 %v2269
          %v2504 = vunpack.c.l.b16 %v2270
          %v2505 = vunpack.c.l.b16 %v2271
          %v2506 = vunpack.c.l.b16 %v2272
          %v2507 = vunpack.c.l.b16 %v2273
          %v2508 = vunpack.c.l.b16 %v2274
          %v2509 = vunpack.c.l.b16 %v2275
          %v2510 = vunpack.c.l.b16 %v2276
          %v2511 = vunpack.c.l.b16 %v2277
          %v2512 = vunpack.c.l.b16 %v2278
          %v2513 = vunpack.c.l.b16 %v2279
          %v2514 = vunpack.c.l.b16 %v2280
          %v2515 = vunpack.c.l.b16 %v2281
          %v2516 = vunpack.c.l.b16 %v2282
          %v2517 = vunpack.c.l.b16 %v2283
          %v2518 = vunpack.c.l.b16 %v2284
          %v2519 = vunpack.c.l.b16 %v2285
          %v2520 = vunpack.c.l.b16 %v2286
          %v2521 = vunpack.c.l.b16 %v2287
          %v2522 = vunpack.c.l.b16 %v2288
          %v2523 = vunpack.c.l.b16 %v2289
          %v2524 = vunpack.c.l.b16 %v2290
          %v2525 = vunpack.c.l.b16 %v2291
          %v2526 = vunpack.c.l.b16 %v2292
          %v2527 = vpack.c.b16 %v2496, %v2495
          %v2528 = vpack.c.b16 %v2498, %v2497
          %v2529 = vpack.c.b16 %v2500, %v2499
          %v2530 = vpack.c.b16 %v2502, %v2501
          %v2531 = vpack.c.b16 %v2504, %v2503
          %v2532 = vpack.c.b16 %v2506, %v2505
          %v2533 = vpack.c.b16 %v2508, %v2507
          %v2534 = vpack.c.b16 %v2510, %v2509
          %v2535 = vpack.c.b16 %v2512, %v2511
          %v2536 = vpack.c.b16 %v2514, %v2513
          %v2537 = vpack.c.b16 %v2516, %v2515
          %v2538 = vpack.c.b16 %v2518, %v2517
          %v2539 = vpack.c.b16 %v2520, %v2519
          %v2540 = vpack.c.b16 %v2522, %v2521
          %v2541 = vpack.c.b16 %v2524, %v2523
          %v2542 = vpack.c.b16 %v2526, %v2525
          %2559 = vmatprep.subr.bf16.mxu0 0
          %2560 = vmatpush1.bf16.msra.mxu0 %v2534
          %2561 = vmatprep.subr.bf16.mxu0 0
          %2562 = vmatpush1.bf16.msra.mxu0 %v2533
          %2563 = vmatprep.subr.bf16.mxu0 0
          %2564 = vmatpush1.bf16.msra.mxu0 %v2532
          %2565 = vmatprep.subr.bf16.mxu0 0
          %2566 = vmatpush1.bf16.msra.mxu0 %v2531
          %2567 = vmatprep.subr.bf16.mxu0 0
          %2568 = vmatpush1.bf16.msra.mxu0 %v2530
          %2569 = vmatprep.subr.bf16.mxu0 0
          %2570 = vmatpush1.bf16.msra.mxu0 %v2529
          %2571 = vmatprep.subr.bf16.mxu0 0
          %2572 = vmatpush1.bf16.msra.mxu0 %v2528
          %2573 = vmatprep.subr.bf16.mxu0 0
          %2574 = vmatpush1.bf16.msra.mxu0 %v2527
          %2575 = vmatprep.subr.bf16.mxu0 0
          %2576 = vmatpush2.bf16.msra.mxu0 %v2542
          %2577 = vmatprep.subr.bf16.mxu0 0
          %2578 = vmatpush2.bf16.msra.mxu0 %v2541
          %2579 = vmatprep.subr.bf16.mxu0 0
          %2580 = vmatpush2.bf16.msra.mxu0 %v2540
          %2581 = vmatprep.subr.bf16.mxu0 0
          %2582 = vmatpush2.bf16.msra.mxu0 %v2539
          %2583 = vmatprep.subr.bf16.mxu0 0
          %2584 = vmatpush2.bf16.msra.mxu0 %v2538
          %2585 = vmatprep.subr.bf16.mxu0 0
          %2586 = vmatpush2.bf16.msra.mxu0 %v2537
          %2587 = vmatprep.subr.bf16.mxu0 0
          %2588 = vmatpush2.bf16.msra.mxu0 %v2536
          %2589 = vmatprep.subr.bf16.mxu0 0
          %2590 = vmatpush2.bf16.msra.mxu0 %v2535
          %2591 = vmatprep.mubr.bf16.mxu0 %v2260
          %2592 = vmatmul.mubr.bf16.gmra.mxu0 %v2259
          %v2593 = vpop.f32.mrf.mxu0
          %v2594 = vadd.f32 %v2458, %v2593
          %v2595 = vpop.f32.mrf.mxu0
          %v2596 = vpop.f32.mrf.mxu0
          %v2597 = vpop.f32.mrf.mxu0
          %2598 = vdwg.mxu0
          %v2599 = vld [vmem:[%s17] sm:$0x1]
          %v2601 = vlaneseq
          %v2602 = vshrl.u32 %v2601, 7
          %v2603 = vsub.s32 0, %v2602
          %v2604 = vrot.slane %v2599, %v2603
          %v2606 = vadd.f32 %v2594, %v2604
          %v2607 = vmax.f32 %v2606, 0.0
          %v2608 = vpack.c.bf16 %v2607, %v2607
          %v2609 = vld [vmem:[#allocation22] sm:$0xf]
          %v2610 = vld [vmem:[#allocation22 + $0x4] sm:$0xf]
          %v2611 = vld [vmem:[#allocation22 + $0x8] sm:$0xf]
          %v2612 = vld [vmem:[#allocation22 + $0xc] sm:$0xf]
          %v2613 = vld [vmem:[#allocation22 + $0x10] sm:$0xf]
          %v2614 = vld [vmem:[#allocation22 + $0x14] sm:$0xf]
          %v2615 = vld [vmem:[#allocation22 + $0x18] sm:$0xf]
          %v2616 = vld [vmem:[#allocation22 + $0x1c] sm:$0xf]
          %v2617 = vld [vmem:[#allocation22 + $0x20] sm:$0xf]
          %v2618 = vld [vmem:[#allocation22 + $0x24] sm:$0xf]
          %v2619 = vld [vmem:[#allocation22 + $0x28] sm:$0xf]
          %v2620 = vld [vmem:[#allocation22 + $0x2c] sm:$0xf]
          %v2621 = vld [vmem:[#allocation22 + $0x30] sm:$0xf]
          %v2622 = vld [vmem:[#allocation22 + $0x34] sm:$0xf]
          %v2623 = vld [vmem:[#allocation22 + $0x38] sm:$0xf]
          %v2624 = vld [vmem:[#allocation22 + $0x3c] sm:$0xf]
          %v2625 = vld [vmem:[#allocation24] sm:$0x1]
          %v2627 = vlaneseq
          %v2628 = vshrl.u32 %v2627, 7
          %v2629 = vsub.s32 0, %v2628
          %v2630 = vrot.slane %v2625, %v2629
          %v2648 = vunpack.c.l.b16 %v2609
          %v2649 = vunpack.c.l.b16 %v2610
          %v2650 = vunpack.c.l.b16 %v2611
          %v2651 = vunpack.c.l.b16 %v2612
          %v2652 = vunpack.c.l.b16 %v2613
          %v2653 = vunpack.c.l.b16 %v2614
          %v2654 = vunpack.c.l.b16 %v2615
          %v2655 = vunpack.c.l.b16 %v2616
          %v2656 = vunpack.c.l.b16 %v2617
          %v2657 = vunpack.c.l.b16 %v2618
          %v2658 = vunpack.c.l.b16 %v2619
          %v2659 = vunpack.c.l.b16 %v2620
          %v2660 = vunpack.c.l.b16 %v2621
          %v2661 = vunpack.c.l.b16 %v2622
          %v2662 = vunpack.c.l.b16 %v2623
          %v2663 = vunpack.c.l.b16 %v2624
          %v2664 = vpack.c.b16 %v2649, %v2648
          %v2665 = vpack.c.b16 %v2651, %v2650
          %v2666 = vpack.c.b16 %v2653, %v2652
          %v2667 = vpack.c.b16 %v2655, %v2654
          %v2668 = vpack.c.b16 %v2657, %v2656
          %v2669 = vpack.c.b16 %v2659, %v2658
          %v2670 = vpack.c.b16 %v2661, %v2660
          %v2671 = vpack.c.b16 %v2663, %v2662
          %2680 = vmatprep.subr.bf16.mxu0 0
          %2681 = vmatpush1.bf16.msra.mxu0 %v2671
          %2682 = vmatprep.subr.bf16.mxu0 0
          %2683 = vmatpush1.bf16.msra.mxu0 %v2670
          %2684 = vmatprep.subr.bf16.mxu0 0
          %2685 = vmatpush1.bf16.msra.mxu0 %v2669
          %2686 = vmatprep.subr.bf16.mxu0 0
          %2687 = vmatpush1.bf16.msra.mxu0 %v2668
          %2688 = vmatprep.subr.bf16.mxu0 0
          %2689 = vmatpush1.bf16.msra.mxu0 %v2667
          %2690 = vmatprep.subr.bf16.mxu0 0
          %2691 = vmatpush1.bf16.msra.mxu0 %v2666
          %2692 = vmatprep.subr.bf16.mxu0 0
          %2693 = vmatpush1.bf16.msra.mxu0 %v2665
          %2694 = vmatprep.subr.bf16.mxu0 0
          %2695 = vmatpush1.bf16.msra.mxu0 %v2664
          %2696 = vmatprep.subr.bf16.mxu0 0
          %2697 = vmatpush2.bf16.msra.mxu0 0
          %2698 = vmatprep.subr.bf16.mxu0 0
          %2699 = vmatpush2.bf16.msra.mxu0 0
          %2700 = vmatprep.subr.bf16.mxu0 0
          %2701 = vmatpush2.bf16.msra.mxu0 0
          %2702 = vmatprep.subr.bf16.mxu0 0
          %2703 = vmatpush2.bf16.msra.mxu0 0
          %2704 = vmatprep.subr.bf16.mxu0 0
          %2705 = vmatpush2.bf16.msra.mxu0 0
          %2706 = vmatprep.subr.bf16.mxu0 0
          %2707 = vmatpush2.bf16.msra.mxu0 0
          %2708 = vmatprep.subr.bf16.mxu0 0
          %2709 = vmatpush2.bf16.msra.mxu0 0
          %2710 = vmatprep.subr.bf16.mxu0 0
          %2711 = vmatpush2.bf16.msra.mxu0 0
          %2712 = vmatprep.mubr.bf16.mxu0 0
          %2713 = vmatmul.mubr.bf16.gmra.mxu0 %v2608
          %v2714 = vpop.f32.mrf.mxu0
          %v2715 = vadd.f32 %v2630, %v2714
          %v2716 = vpop.f32.mrf.mxu0
          %v2717 = vpop.f32.mrf.mxu0
          %v2718 = vpop.f32.mrf.mxu0
          %2719 = vdwg.mxu0
          %2720 = vst [vmem:[#allocation25] sm:$0x3] %v2715
          %v2721 = vlaneseq
          %v2722 = vand.u32 %v2721, 127
          %vm2723 = vcmp.lt.s32.totalorder %v2722, 4
          %v2724 = vsel %vm2723, 1, 0
          %v2725 = vcvt.s32.f32 %v2724
          %v2726 = vld [vmem:[%s6] sm:$0x3]
          %v2727 = vmul.f32 %v2726, 2.0
          %v2728 = vsub.f32 1.0, %v2727
          %v2729 = vmul.f32 %v2728, %v2715
          %v2730 = vmul.f32 %v2726, 1e+12
          %v2731 = vsub.f32 %v2729, %v2730
          %v2732 = vsub.f32 1.0, %v2725
          %v2733 = vmul.f32 %v2732, 1e+12
          %v2734 = vsub.f32 %v2731, %v2733
          %v2735 = vsub.f32 1.0, %v2726
          %v2736 = vmul.f32 %v2735, 1e+12
          %v2737 = vsub.f32 %v2729, %v2736
          %vm2738 = vcmask 1041408
          %v2739 = vsel %vm2738, %v2734, -inf
          %2740 = vmax.xlane.f32.xlu0 %v2739
          %v2741 = vpop.xlane.xlu0 %2740
          %v2742 = vmax.f32 %v2741, 0.0
          %v2743 = vsub.f32 %v2734, %v2742
          %v2744 = vmul.f32 %v2743, 1.442695
          %v2745 = vpow.pop %v2744
          %v2746 = vsel %vm2738, %v2745, 0.0
          %2747 = vadd.xlane.f32.xlu0 %v2746
          %v2748 = vpop.xlane.xlu0 %2747
          %v2749 = vsub.f32 0.0, %v2742
          %v2750 = vmul.f32 %v2749, 1.442695
          %v2751 = vpow.pop %v2750
          %v2752 = vadd.f32 %v2748, %v2751
          %v2753 = vlog2.pop %v2752
          %v2754 = vmul.f32 %v2753, 0.6931472
          %v2755 = vadd.f32 %v2742, %v2754
          %v2756 = vsel %vm2738, %v2737, -inf
          %2757 = vmax.xlane.f32.xlu0 %v2756
          %v2758 = vpop.xlane.xlu0 %2757
          %v2759 = vmax.f32 %v2758, 0.0
          %v2760 = vsub.f32 %v2737, %v2759
          %v2761 = vmul.f32 %v2760, 1.442695
          %v2762 = vpow.pop %v2761
          %v2763 = vsel %vm2738, %v2762, 0.0
          %2764 = vadd.xlane.f32.xlu0 %v2763
          %v2765 = vpop.xlane.xlu0 %2764
          %v2766 = vsub.f32 0.0, %v2759
          %v2767 = vmul.f32 %v2766, 1.442695
          %v2768 = vpow.pop %v2767
          %v2769 = vadd.f32 %v2765, %v2768
          %v2770 = vlog2.pop %v2769
          %v2771 = vmul.f32 %v2770, 0.6931472
          %v2772 = vadd.f32 %v2759, %v2771
          %v2773 = vadd.f32 %v2755, %v2772
          %vm2774 = vcmask 1024
          %v2775 = vsel %vm2774, %v2773, 0.0
          %2776 = vadd.xlane.f32.xlu0 %v2775
          %v2777 = vpop.xlane.xlu0 %2776
          %v2778 = vrot.slane %v2777, 4
          %v2779 = vadd.f32 %v2777, %v2778
          %v2780 = vrot.slane %v2779, 2
          %v2781 = vadd.f32 %v2779, %v2780
          %v2782 = vrot.slane %v2781, 1
          %v2783 = vadd.f32 %v2781, %v2782
          %s2784 = vtos %v2783
          %v2785 = vrcp.pop 2.0
          %s2786 = vtos %v2785
          %s2787 = smul.f32 %s2784, %s2786
          %v2788 = vstv %s2787
          %vm2789 = vcmask 0
          %2790 = vst.msk [vmem:[#allocation26] sm:$0x1] %vm2789, %v2788
        $region164: #{forward.1} parent=99 // pred_fallthru
          _
        // Predicated region
        $region165: #{forward.1} parent=99 // pred_check
          %p2791 = pneg %p499
        $region166: #{forward.1} parent=99 // pred_check_branch
          %2793 = sbr.rel (%p2791) target = $region168
        $region167: #{forward.1} parent=99 // pred_region
          %s2795 = ssub.s32 32, 32
          %2796 = vsyncadd [#allocation6], %s2795
          %s2798 = sshll.u32 [#allocation25], 4
          %s2799 = int_to_ptr.vmem [resolvable:$true] %s2798
          %2801 = dma.vmem_to_hbm [thread:$0]  %s2799, 32, %s20, [#allocation6]
        $region168: #{forward.1} parent=99 // pred_fallthru
          _
        // Predicated region
        $region169: #{forward.1} parent=99 // pred_check
          %p2802 = pneg %p520
        $region170: #{forward.1} parent=99 // pred_check_branch
          %2804 = sbr.rel (%p2802) target = $region172
        $region171: #{forward.1} parent=99 // pred_region
          %s2806 = ssub.s32 16, 16
          %2807 = vsyncadd [#allocation27], %s2806
          %s2809 = sshll.u32 [#allocation26], 4
          %s2810 = int_to_ptr.vmem [resolvable:$true] %s2809
          %2812 = dma.vmem_to_hbm [thread:$0]  %s2810, 16, %s21, [#allocation27]
        $region172: #{forward.1} parent=99 // pred_fallthru
          _
        // Predicated region
        $region173: #{forward.1} parent=99 // pred_check
          %p2813 = pneg %p499
        $region174: #{forward.1} parent=99 // pred_check_branch
          %2815 = sbr.rel (%p2813) target = $region176
        $region175: #{forward.1} parent=99 // pred_region
          %2816 = dma.done [#allocation6], 32
        $region176: #{forward.1} parent=99 // pred_fallthru
          _
        // Predicated region
        $region177: #{forward.1} parent=99 // pred_check
          %p2817 = pneg %p520
        $region178: #{forward.1} parent=99 // pred_check_branch
          %2819 = sbr.rel (%p2817) target = $region180
        $region179: #{forward.1} parent=99 // pred_region
          %2820 = dma.done [#allocation27], 16
        $region180: #{forward.1} parent=99 // pred_fallthru
          _
      $region100: #{forward.1} parent=5 // pred_fallthru
        _
      %p2821 = scmp.le.s32.totalorder 2, %s41
      // Predicated region
      $region181: #{forward.1} parent=5 // pred_check
        %p2822 = pneg %p2821
      $region182: #{forward.1} parent=5 // pred_check_branch
        %2824 = sbr.rel (%p2822) target = $region184
      $region183: #{forward.1} parent=5 // pred_region
        %s2825 = ssub.s32 %s41, 2
      $region184: #{forward.1} parent=5 // pred_fallthru
        _
    $region6: #{forward.1} parent=1 // loop_footer
      %s45 = sadd.s32 1, %s41
    $region7: #{forward.1} parent=1 // loop_footer_branch
      %40 = sbr.rel target = $region3
    $region8: #{forward.1} parent=1 // loop_exit
      _
    %2826 = vsyncpa [#allocation5], 1
    %s2827 = scalar_lea.sflag [#allocation5], 1
    %2828 = vsyncpa %s2827, 1
    %2829 = vsyncpa [#allocation8], 1
    %2830 = vsyncpa [#allocation11], 1
    %2831 = vsyncpa [#allocation14], 1
    %s2832 = scalar_lea.sflag [#allocation14], 1
    %2833 = vsyncpa %s2832, 1
    %2834 = vsyncpa [#allocation17], 1
    %s2835 = scalar_lea.sflag [#allocation17], 1
    %2836 = vsyncpa %s2835, 1
    %2837 = vsyncpa [#allocation20], 1
    %2838 = vsyncpa [#allocation23], 1
    %2839 = vsyncpa [#allocation6], 1
    %s2840 = scalar_lea.sflag [#allocation6], 1
    %2841 = vsyncpa %s2840, 1
    %2842 = vsyncpa [#allocation27], 1

</llo_original>
